<compile_context>
chip_gen: v6e
topology: v6e:2x2x1
jax: 0.10.0
libtpu: 0.0.40
codegen_flags: <defaults>
</compile_context>

<pallas_src>
import functools
import math

import jax
import jax.numpy as jnp
from jax import lax
from jax.experimental import pallas as pl
from jax.experimental.pallas import tpu as pltpu


# ----------------------------- Pallas kernel ------------------------------ #

def _bilstm_stack_kernel(x_ref, h0_ref, c0_ref, *rest,
                         num_layers, hidden_dim, seq_len, batch_pad):
    """Whole bidirectional LSTM stack in one kernel invocation.

    x_ref:   (T*B, E)       time-major flattened embedded input (B padded to 8)
    h0_ref:  (L, B, 2H)     packed initial hidden  [h_fwd | h_bwd] along lanes
    c0_ref:  (L, B, 2H)     packed initial cell
    weights per layer (5): wih_f (D_in,4H), b_f (1,4H),
                           wih_b (D_in,4H), b_b (1,4H),
                           whh_cat (2H,8H) block-diagonal
    outputs: y (T*B, 2H), hT (L,B,2H), cT (L,B,2H)
    scratch: xpf_sc, xpb_sc (T*B, 4H)  per-layer input projections
    """
    H, T, B = hidden_dim, seq_len, batch_pad
    n_w = 5 * num_layers
    w_refs = rest[:n_w]
    y_ref, hT_ref, cT_ref = rest[n_w:n_w + 3]
    xpf_sc, xpb_sc = rest[n_w + 3:n_w + 5]

    # Loop-invariant lane mask: within a 4H gate block, lanes [2H:3H) hold the
    # cell-candidate gate (tanh); everything else is sigmoid.
    lane = lax.broadcasted_iota(jnp.int32, (B, 4 * H), 1)
    tanh_lanes = (lane >= 2 * H) & (lane < 3 * H)

    def lstm_cell(gates, c_prev):
        # Two full-vreg transcendentals + VPU lane select (EUP work full-width).
        sig = jax.nn.sigmoid(gates)
        th = jnp.tanh(gates)
        act = jnp.where(tanh_lanes, th, sig)
        i_g = act[:, 0 * H:1 * H]
        f_g = act[:, 1 * H:2 * H]
        g_g = act[:, 2 * H:3 * H]
        o_g = act[:, 3 * H:4 * H]
        c_new = f_g * c_prev + i_g * g_g
        h_new = o_g * jnp.tanh(c_new)
        return h_new, c_new

    for l in range(num_layers):
        wih_f = w_refs[5 * l + 0][...]
        b_f = w_refs[5 * l + 1][...]
        wih_b = w_refs[5 * l + 2][...]
        b_b = w_refs[5 * l + 3][...]
        whh_cat = w_refs[5 * l + 4][...]          # (2H, 8H) block-diagonal

        # ---- time-parallel input projection (bias hoisted out of the loop) --
        # Layer 0 reads the embedded input; deeper layers read the previous
        # layer's packed (T*B, 2H) output slab directly -> single dot each dir.
        src = x_ref[...] if l == 0 else y_ref[...]
        xpf_sc[...] = jnp.dot(src, wih_f,
                              preferred_element_type=jnp.float32) + b_f
        xpb_sc[...] = jnp.dot(src, wih_b,
                              preferred_element_type=jnp.float32) + b_b

        # ---- serial recurrence: one block-diag matmul serves both directions -
        def step(t, carry):
            h_cat, c_f, c_b = carry
            row_f = pl.multiple_of(t * B, B)              # time t       (fwd)
            row_b = pl.multiple_of((T - 1 - t) * B, B)    # time T-1-t   (bwd)
            g_rec = jnp.dot(h_cat, whh_cat,
                            preferred_element_type=jnp.float32)   # (B, 8H)
            gf = g_rec[:, :4 * H] + xpf_sc[pl.ds(row_f, B), :]
            gb = g_rec[:, 4 * H:] + xpb_sc[pl.ds(row_b, B), :]
            h_f, c_f = lstm_cell(gf, c_f)
            h_b, c_b = lstm_cell(gb, c_b)
            y_ref[pl.ds(row_f, B), pl.ds(0, H)] = h_f
            y_ref[pl.ds(row_b, B), pl.ds(H, H)] = h_b
            h_cat = jnp.concatenate([h_f, h_b], axis=1)
            return (h_cat, c_f, c_b)

        c0_cat = c0_ref[l]
        h_cat, c_f, c_b = lax.fori_loop(
            0, T, step,
            (h0_ref[l], c0_cat[:, :H], c0_cat[:, H:]),
            unroll=True if T <= 16 else 4)

        # Packed epilogue stores (one lane-dense (B,2H) store per state).
        hT_ref[l] = h_cat
        cT_ref[l] = jnp.concatenate([c_f, c_b], axis=1)


def _full_block_spec(shape):
    zeros = (0,) * len(shape)
    return pl.BlockSpec(shape, lambda i, _z=zeros: _z)


def bilstm_stack(x_flat, h0, c0, flat_weights, *, num_layers, hidden_dim,
                 seq_len, batch_pad):
    """Run the whole bidirectional LSTM stack in a single Pallas call."""
    T, B, H, L = seq_len, batch_pad, hidden_dim, num_layers
    kernel = functools.partial(_bilstm_stack_kernel, num_layers=L,
                               hidden_dim=H, seq_len=T, batch_pad=B)
    out_shape = (jax.ShapeDtypeStruct((T * B, 2 * H), jnp.float32),   # y packed
                 jax.ShapeDtypeStruct((L, B, 2 * H), jnp.float32),    # hT packed
                 jax.ShapeDtypeStruct((L, B, 2 * H), jnp.float32))    # cT packed
    in_arrays = (x_flat, h0, c0, *flat_weights)

    # Explicit VMEM budget from the resident footprint (everything resident,
    # single grid step). 2x for double-buffered in/out + slack for temps.
    eb = 4
    footprint = sum(math.prod(a.shape) * eb for a in in_arrays)
    footprint += sum(math.prod(s.shape) * eb for s in out_shape)
    scratch_bytes = 2 * (T * B * 4 * H) * eb
    vmem_limit = int(min(64 * 1024 * 1024,
                         2 * footprint + scratch_bytes + 16 * 1024 * 1024))

    y, h_n, c_n = pl.pallas_call(
        kernel,
        out_shape=out_shape,
        grid_spec=pltpu.PrefetchScalarGridSpec(
            num_scalar_prefetch=0,
            grid=(1,),                                   # single invocation
            in_specs=[_full_block_spec(a.shape) for a in in_arrays],
            out_specs=[_full_block_spec(s.shape) for s in out_shape],
            scratch_shapes=[pltpu.VMEM((T * B, 4 * H), jnp.float32),
                            pltpu.VMEM((T * B, 4 * H), jnp.float32)]),
        compiler_params=pltpu.CompilerParams(
            dimension_semantics=("arbitrary",),
            vmem_limit_bytes=vmem_limit),
    )(*in_arrays)
    return y, h_n, c_n


# ------------------------------ Decoder glue ------------------------------ #

def init_decoder_params(key, num_embeddings, num_layers, embedding_dim,
                        hidden_dim, bidirectional=True):
    num_dirs = 2 if bidirectional else 1
    keys = jax.random.split(key, 1 + num_layers * num_dirs * 4)
    emb = jax.random.normal(keys[0], (num_embeddings, embedding_dim),
                            jnp.float32)
    bound = 1.0 / jnp.sqrt(hidden_dim)
    lstm = []
    k = 1
    for layer in range(num_layers):
        d_in = embedding_dim if layer == 0 else num_dirs * hidden_dim
        dirs = []
        for _ in range(num_dirs):
            w_ih = jax.random.uniform(keys[k], (4 * hidden_dim, d_in),
                                      jnp.float32, -bound, bound); k += 1
            w_hh = jax.random.uniform(keys[k], (4 * hidden_dim, hidden_dim),
                                      jnp.float32, -bound, bound); k += 1
            b_ih = jax.random.uniform(keys[k], (4 * hidden_dim,),
                                      jnp.float32, -bound, bound); k += 1
            b_hh = jax.random.uniform(keys[k], (4 * hidden_dim,),
                                      jnp.float32, -bound, bound); k += 1
            dirs.append({"wih_t": w_ih.T,
                         "whh_t": w_hh.T,
                         "b": (b_ih + b_hh)[None, :]})
        lstm.append(dirs)
    return {"embedding": emb, "lstm": lstm}


def decoder_forward(params, tokens, hidden, cell):
    """tokens: (B, T) int32; hidden/cell: (num_layers*2, B, H)."""
    emb = jnp.take(params["embedding"], tokens, axis=0)       # (B, T, E)
    # TODO(synk): dropout is eval-mode identity.
    B, T, E = emb.shape

    lstm = params["lstm"]
    L = len(lstm)
    assert len(lstm[0]) == 2, "kernel implements the bidirectional=True default"
    H = lstm[0][0]["whh_t"].shape[0]
    B_pad = max(8, -(-B // 8) * 8)                            # sublane-dense

    x_tm = jnp.transpose(emb, (1, 0, 2))                      # (T, B, E)
    x_tm = jnp.pad(x_tm, ((0, 0), (0, B_pad - B), (0, 0)))    # zero pad rows
    x_flat = x_tm.reshape(T * B_pad, E)

    def pack_state(s):        # (2L, B, H) -> (L, B_pad, 2H), [fwd | bwd] lanes
        s = jnp.pad(s, ((0, 0), (0, B_pad - B), (0, 0)))
        return (s.reshape(L, 2, B_pad, H).transpose(0, 2, 1, 3)
                 .reshape(L, B_pad, 2 * H))

    h0 = pack_state(hidden)
    c0 = pack_state(cell)

    flat_w = []
    for layer in lstm:
        f, b = layer[0], layer[1]
        whh_cat = jnp.zeros((2 * H, 8 * H), jnp.float32)      # block-diagonal
        whh_cat = whh_cat.at[:H, :4 * H].set(f["whh_t"])
        whh_cat = whh_cat.at[H:, 4 * H:].set(b["whh_t"])
        flat_w += [f["wih_t"], f["b"], b["wih_t"], b["b"], whh_cat]

    y_pack, h_pack, c_pack = bilstm_stack(
        x_flat, h0, c0, flat_w, num_layers=L, hidden_dim=H,
        seq_len=T, batch_pad=B_pad)

    outputs = jnp.transpose(y_pack.reshape(T, B_pad, 2 * H)[:, :B], (1, 0, 2))

    def unpack_state(s):      # (L, B_pad, 2H) -> (2L, B, H)
        return (s.reshape(L, B_pad, 2, H).transpose(0, 2, 1, 3)
                 .reshape(2 * L, B_pad, H)[:, :B])

    return outputs, unpack_state(h_pack), unpack_state(c_pack)


# --------------------------- Pure-JAX reference ---------------------------- #

def _ref_lstm_dir(x_tm, wih_t, whh_t, b, h0, c0):
    H = h0.shape[-1]

    def step(carry, x_t):
        h, c = carry
        g = x_t @ wih_t + h @ whh_t + b
        i = jax.nn.sigmoid(g[:, :H])
        f = jax.nn.sigmoid(g[:, H:2 * H])
        gg = jnp.tanh(g[:, 2 * H:3 * H])
        o = jax.nn.sigmoid(g[:, 3 * H:])
        c = f * c + i * gg
        h = o * jnp.tanh(c)
        return (h, c), h

    (hT, cT), ys = jax.lax.scan(step, (h0, c0), x_tm)
    return ys, hT, cT


def ref_decoder_forward(params, tokens, hidden, cell):
    emb = jnp.take(params["embedding"], tokens, axis=0)
    x = jnp.transpose(emb, (1, 0, 2))
    num_layers = len(params["lstm"])
    num_dirs = len(params["lstm"][0])
    h_out, c_out = [], []
    for layer in range(num_layers):
        layer_ys = []
        for d in range(num_dirs):
            p = params["lstm"][layer][d]
            idx = layer * num_dirs + d
            xin = x if d == 0 else jnp.flip(x, axis=0)
            y, hT, cT = _ref_lstm_dir(xin, p["wih_t"], p["whh_t"], p["b"],
                                      hidden[idx], cell[idx])
            if d == 1:
                y = jnp.flip(y, axis=0)
            layer_ys.append(y)
            h_out.append(hT)
            c_out.append(cT)
        x = jnp.concatenate(layer_ys, axis=-1)
    return (jnp.transpose(x, (1, 0, 2)),
            jnp.stack(h_out, axis=0), jnp.stack(c_out, axis=0))


# ---------------------------------- main ----------------------------------- #

if __name__ == "__main__":
    NUM_EMBEDDINGS = 20
    NUM_LAYERS = 2
    EMBEDDING_DIM = 32
    HIDDEN_DIM = 32
    NUM_DIRS = 2
    BATCH = 2
    SEQ = 8

    key = jax.random.PRNGKey(0)
    k_param, k_tok, k_h, k_c = jax.random.split(key, 4)

    params = init_decoder_params(k_param, NUM_EMBEDDINGS, NUM_LAYERS,
                                 EMBEDDING_DIM, HIDDEN_DIM, bidirectional=True)

    tokens = jax.random.randint(k_tok, (BATCH, SEQ), 0, NUM_EMBEDDINGS,
                                dtype=jnp.int32)
    hidden0 = jax.random.normal(k_h, (NUM_LAYERS * NUM_DIRS, BATCH, HIDDEN_DIM),
                                jnp.float32)
    cell0 = jax.random.normal(k_c, (NUM_LAYERS * NUM_DIRS, BATCH, HIDDEN_DIM),
                              jnp.float32)

    outputs, h_n, c_n = jax.jit(decoder_forward)(params, tokens, hidden0, cell0)
    jax.block_until_ready((outputs, h_n, c_n))

    # sanity-check against a pure-JAX reference (same params / semantics)
    ref_out, ref_h, ref_c = ref_decoder_forward(params, tokens, hidden0, cell0)
    assert outputs.shape == (BATCH, SEQ, NUM_DIRS * HIDDEN_DIM)
    assert h_n.shape == (NUM_LAYERS * NUM_DIRS, BATCH, HIDDEN_DIM)
    assert c_n.shape == (NUM_LAYERS * NUM_DIRS, BATCH, HIDDEN_DIM)
    assert jnp.allclose(outputs, ref_out, rtol=1e-4, atol=1e-5)
    assert jnp.allclose(h_n, ref_h, rtol=1e-4, atol=1e-5)
    assert jnp.allclose(c_n, ref_c, rtol=1e-4, atol=1e-5)

    print("KERNEL_OK")
</pallas_src>

<mosaic_0001>
module attributes {stable_mosaic.version = 11 : i64} {
  func.func @_bilstm_stack_kernel(%arg0: i32, %arg1: memref<64x32xf32, #tpu.memory_space<vmem>>, %arg2: memref<2x8x64xf32, #tpu.memory_space<vmem>>, %arg3: memref<2x8x64xf32, #tpu.memory_space<vmem>>, %arg4: memref<32x128xf32, #tpu.memory_space<vmem>>, %arg5: memref<1x128xf32, #tpu.memory_space<vmem>>, %arg6: memref<32x128xf32, #tpu.memory_space<vmem>>, %arg7: memref<1x128xf32, #tpu.memory_space<vmem>>, %arg8: memref<64x256xf32, #tpu.memory_space<vmem>>, %arg9: memref<64x128xf32, #tpu.memory_space<vmem>>, %arg10: memref<1x128xf32, #tpu.memory_space<vmem>>, %arg11: memref<64x128xf32, #tpu.memory_space<vmem>>, %arg12: memref<1x128xf32, #tpu.memory_space<vmem>>, %arg13: memref<64x256xf32, #tpu.memory_space<vmem>>, %arg14: memref<64x64xf32, #tpu.memory_space<vmem>>, %arg15: memref<2x8x64xf32, #tpu.memory_space<vmem>>, %arg16: memref<2x8x64xf32, #tpu.memory_space<vmem>>, %arg17: memref<64x128xf32, #tpu.memory_space<vmem>>, %arg18: memref<64x128xf32, #tpu.memory_space<vmem>>) attributes {dimension_semantics = [#tpu.dimension_semantics<arbitrary>], iteration_bounds = array<i64: 1>, scalar_prefetch = 0 : i64, scratch_operands = 2 : i64, tpu.core_type = #tpu.core_type<tc>, window_params = [{pipeline_mode = #tpu.pipeline_mode<synchronous>, transform_indices = @transform_0, window_bounds = array<i64: 64, 32>}, {pipeline_mode = #tpu.pipeline_mode<synchronous>, transform_indices = @transform_1, window_bounds = array<i64: 2, 8, 64>}, {pipeline_mode = #tpu.pipeline_mode<synchronous>, transform_indices = @transform_2, window_bounds = array<i64: 2, 8, 64>}, {pipeline_mode = #tpu.pipeline_mode<synchronous>, transform_indices = @transform_3, window_bounds = array<i64: 32, 128>}, {pipeline_mode = #tpu.pipeline_mode<synchronous>, transform_indices = @transform_4, window_bounds = array<i64: 1, 128>}, {pipeline_mode = #tpu.pipeline_mode<synchronous>, transform_indices = @transform_5, window_bounds = array<i64: 32, 128>}, {pipeline_mode = #tpu.pipeline_mode<synchronous>, transform_indices = @transform_6, window_bounds = array<i64: 1, 128>}, {pipeline_mode = #tpu.pipeline_mode<synchronous>, transform_indices = @transform_7, window_bounds = array<i64: 64, 256>}, {pipeline_mode = #tpu.pipeline_mode<synchronous>, transform_indices = @transform_8, window_bounds = array<i64: 64, 128>}, {pipeline_mode = #tpu.pipeline_mode<synchronous>, transform_indices = @transform_9, window_bounds = array<i64: 1, 128>}, {pipeline_mode = #tpu.pipeline_mode<synchronous>, transform_indices = @transform_10, window_bounds = array<i64: 64, 128>}, {pipeline_mode = #tpu.pipeline_mode<synchronous>, transform_indices = @transform_11, window_bounds = array<i64: 1, 128>}, {pipeline_mode = #tpu.pipeline_mode<synchronous>, transform_indices = @transform_12, window_bounds = array<i64: 64, 256>}, {pipeline_mode = #tpu.pipeline_mode<synchronous>, transform_indices = @transform_13, window_bounds = array<i64: 64, 64>}, {pipeline_mode = #tpu.pipeline_mode<synchronous>, transform_indices = @transform_14, window_bounds = array<i64: 2, 8, 64>}, {pipeline_mode = #tpu.pipeline_mode<synchronous>, transform_indices = @transform_15, window_bounds = array<i64: 2, 8, 64>}]} {
    %0 = tpu.iota {dimensions = array<i32: 1>} : vector<8x128xi32>
    %c64_i32 = arith.constant 64 : i32
    %1 = vector.broadcast %c64_i32 : i32 to vector<8x128xi32>
    %2 = arith.cmpi sge, %0, %1 : vector<8x128xi32>
    %c96_i32 = arith.constant 96 : i32
    %3 = vector.broadcast %c96_i32 : i32 to vector<8x128xi32>
    %4 = arith.cmpi slt, %0, %3 : vector<8x128xi32>
    %5 = arith.andi %2, %4 : vector<8x128xi1>
    %c0 = arith.constant 0 : index
    %c0_0 = arith.constant 0 : index
    %6 = vector.load %arg4[%c0, %c0_0] : memref<32x128xf32, #tpu.memory_space<vmem>>, vector<32x128xf32>
    %c0_1 = arith.constant 0 : index
    %c0_2 = arith.constant 0 : index
    %7 = vector.load %arg5[%c0_1, %c0_2] : memref<1x128xf32, #tpu.memory_space<vmem>>, vector<1x128xf32>
    %c0_3 = arith.constant 0 : index
    %c0_4 = arith.constant 0 : index
    %8 = vector.load %arg6[%c0_3, %c0_4] : memref<32x128xf32, #tpu.memory_space<vmem>>, vector<32x128xf32>
    %c0_5 = arith.constant 0 : index
    %c0_6 = arith.constant 0 : index
    %9 = vector.load %arg7[%c0_5, %c0_6] : memref<1x128xf32, #tpu.memory_space<vmem>>, vector<1x128xf32>
    %c0_7 = arith.constant 0 : index
    %c0_8 = arith.constant 0 : index
    %10 = vector.load %arg8[%c0_7, %c0_8] : memref<64x256xf32, #tpu.memory_space<vmem>>, vector<64x256xf32>
    %c0_9 = arith.constant 0 : index
    %c0_10 = arith.constant 0 : index
    %11 = vector.load %arg1[%c0_9, %c0_10] : memref<64x32xf32, #tpu.memory_space<vmem>>, vector<64x32xf32>
    %cst = arith.constant dense<0.000000e+00> : vector<64x128xf32>
    %12 = tpu.matmul %11, %6, %cst {dimension_numbers = #tpu.dot_dimension_numbers<[1], [0], [0], [1], [0, 0, 1, 1], [], []>} : vector<64x32xf32>, vector<32x128xf32>, vector<64x128xf32> -> vector<64x128xf32>
    %13 = vector.broadcast %7 : vector<1x128xf32> to vector<64x128xf32>
    %14 = arith.addf %12, %13 : vector<64x128xf32>
    %c0_11 = arith.constant 0 : index
    %c0_12 = arith.constant 0 : index
    %15 = vector.load %arg17[%c0_11, %c0_12] : memref<64x128xf32, #tpu.memory_space<vmem>>, vector<64x128xf32>
    tpu.vector_store %arg17[%c0_11, %c0_12], %14 {strides = array<i32>} : memref<64x128xf32, #tpu.memory_space<vmem>>, vector<64x128xf32>,
    %cst_13 = arith.constant dense<0.000000e+00> : vector<64x128xf32>
    %16 = tpu.matmul %11, %8, %cst_13 {dimension_numbers = #tpu.dot_dimension_numbers<[1], [0], [0], [1], [0, 0, 1, 1], [], []>} : vector<64x32xf32>, vector<32x128xf32>, vector<64x128xf32> -> vector<64x128xf32>
    %17 = vector.broadcast %9 : vector<1x128xf32> to vector<64x128xf32>
    %18 = arith.addf %16, %17 : vector<64x128xf32>
    %c0_14 = arith.constant 0 : index
    %c0_15 = arith.constant 0 : index
    %19 = vector.load %arg18[%c0_14, %c0_15] : memref<64x128xf32, #tpu.memory_space<vmem>>, vector<64x128xf32>
    tpu.vector_store %arg18[%c0_14, %c0_15], %18 {strides = array<i32>} : memref<64x128xf32, #tpu.memory_space<vmem>>, vector<64x128xf32>,
    %c0_16 = arith.constant 0 : index
    %c0_17 = arith.constant 0 : index
    %c0_18 = arith.constant 0 : index
    %20 = vector.load %arg3[%c0_16, %c0_17, %c0_18] : memref<2x8x64xf32, #tpu.memory_space<vmem>>, vector<1x8x64xf32>
    %21 = vector.shape_cast %20 : vector<1x8x64xf32> to vector<8x64xf32>
    %c0_19 = arith.constant 0 : index
    %c0_20 = arith.constant 0 : index
    %c0_21 = arith.constant 0 : index
    %22 = vector.load %arg2[%c0_19, %c0_20, %c0_21] : memref<2x8x64xf32, #tpu.memory_space<vmem>>, vector<1x8x64xf32>
    %23 = vector.shape_cast %22 : vector<1x8x64xf32> to vector<8x64xf32>
    %24 = vector.extract_strided_slice %21 {offsets = [0, 0], sizes = [8, 32], strides = [1, 1]} : vector<8x64xf32> to vector<8x32xf32>
    %25 = vector.extract_strided_slice %21 {offsets = [0, 32], sizes = [8, 32], strides = [1, 1]} : vector<8x64xf32> to vector<8x32xf32>
    %c0_i32 = arith.constant 0 : i32
    %c8_i32 = arith.constant 8 : i32
    %26 = arith.muli %c0_i32, %c8_i32 : i32
    %27 = tpu.assume_multiple %26, 8 : i32
    %c7_i32 = arith.constant 7 : i32
    %28 = arith.subi %c7_i32, %c0_i32 : i32
    %c8_i32_22 = arith.constant 8 : i32
    %29 = arith.muli %28, %c8_i32_22 : i32
    %30 = tpu.assume_multiple %29, 8 : i32
    %cst_23 = arith.constant dense<0.000000e+00> : vector<8x256xf32>
    %31 = tpu.matmul %23, %10, %cst_23 {dimension_numbers = #tpu.dot_dimension_numbers<[1], [0], [0], [1], [0, 0, 1, 1], [], []>} : vector<8x64xf32>, vector<64x256xf32>, vector<8x256xf32> -> vector<8x256xf32>
    %32 = vector.extract_strided_slice %31 {offsets = [0, 0], sizes = [8, 128], strides = [1, 1]} : vector<8x256xf32> to vector<8x128xf32>
    %33 = arith.index_cast %27 : i32 to index
    %c0_24 = arith.constant 0 : index
    %34 = vector.load %arg17[%33, %c0_24] : memref<64x128xf32, #tpu.memory_space<vmem>>, vector<8x128xf32>
    %35 = arith.addf %32, %34 : vector<8x128xf32>
    %36 = vector.extract_strided_slice %31 {offsets = [0, 128], sizes = [8, 128], strides = [1, 1]} : vector<8x256xf32> to vector<8x128xf32>
    %37 = arith.index_cast %30 : i32 to index
    %c0_25 = arith.constant 0 : index
    %38 = vector.load %arg18[%37, %c0_25] : memref<64x128xf32, #tpu.memory_space<vmem>>, vector<8x128xf32>
    %39 = arith.addf %36, %38 : vector<8x128xf32>
    %40 = arith.negf %35 : vector<8x128xf32>
    %41 = math.exp %40 : vector<8x128xf32>
    %cst_26 = arith.constant 1.000000e+00 : f32
    %42 = vector.broadcast %cst_26 : f32 to vector<8x128xf32>
    %43 = arith.addf %42, %41 : vector<8x128xf32>
    %44 = arith.divf %42, %43 : vector<8x128xf32>
    %45 = math.tanh %35 : vector<8x128xf32>
    %46 = arith.select %5, %45, %44 : vector<8x128xi1>, vector<8x128xf32>
    %47 = vector.extract_strided_slice %46 {offsets = [0, 0], sizes = [8, 32], strides = [1, 1]} : vector<8x128xf32> to vector<8x32xf32>
    %48 = vector.extract_strided_slice %46 {offsets = [0, 32], sizes = [8, 32], strides = [1, 1]} : vector<8x128xf32> to vector<8x32xf32>
    %49 = vector.extract_strided_slice %46 {offsets = [0, 64], sizes = [8, 32], strides = [1, 1]} : vector<8x128xf32> to vector<8x32xf32>
    %50 = vector.extract_strided_slice %46 {offsets = [0, 96], sizes = [8, 32], strides = [1, 1]} : vector<8x128xf32> to vector<8x32xf32>
    %51 = arith.mulf %48, %24 : vector<8x32xf32>
    %52 = arith.mulf %47, %49 : vector<8x32xf32>
    %53 = arith.addf %51, %52 : vector<8x32xf32>
    %54 = math.tanh %53 : vector<8x32xf32>
    %55 = arith.mulf %50, %54 : vector<8x32xf32>
    %56 = arith.negf %39 : vector<8x128xf32>
    %57 = math.exp %56 : vector<8x128xf32>
    %cst_27 = arith.constant 1.000000e+00 : f32
    %58 = vector.broadcast %cst_27 : f32 to vector<8x128xf32>
    %59 = arith.addf %58, %57 : vector<8x128xf32>
    %60 = arith.divf %58, %59 : vector<8x128xf32>
    %61 = math.tanh %39 : vector<8x128xf32>
    %62 = arith.select %5, %61, %60 : vector<8x128xi1>, vector<8x128xf32>
    %63 = vector.extract_strided_slice %62 {offsets = [0, 0], sizes = [8, 32], strides = [1, 1]} : vector<8x128xf32> to vector<8x32xf32>
    %64 = vector.extract_strided_slice %62 {offsets = [0, 32], sizes = [8, 32], strides = [1, 1]} : vector<8x128xf32> to vector<8x32xf32>
    %65 = vector.extract_strided_slice %62 {offsets = [0, 64], sizes = [8, 32], strides = [1, 1]} : vector<8x128xf32> to vector<8x32xf32>
    %66 = vector.extract_strided_slice %62 {offsets = [0, 96], sizes = [8, 32], strides = [1, 1]} : vector<8x128xf32> to vector<8x32xf32>
    %67 = arith.mulf %64, %25 : vector<8x32xf32>
    %68 = arith.mulf %63, %65 : vector<8x32xf32>
    %69 = arith.addf %67, %68 : vector<8x32xf32>
    %70 = math.tanh %69 : vector<8x32xf32>
    %71 = arith.mulf %66, %70 : vector<8x32xf32>
    %72 = arith.index_cast %27 : i32 to index
    %c0_28 = arith.constant 0 : index
    %73 = vector.load %arg14[%72, %c0_28] : memref<64x64xf32, #tpu.memory_space<vmem>>, vector<8x32xf32>
    tpu.vector_store %arg14[%72, %c0_28], %55 {strides = array<i32>} : memref<64x64xf32, #tpu.memory_space<vmem>>, vector<8x32xf32>,
    %74 = arith.index_cast %30 : i32 to index
    %c32 = arith.constant 32 : index
    %75 = vector.load %arg14[%74, %c32] : memref<64x64xf32, #tpu.memory_space<vmem>>, vector<8x32xf32>
    tpu.vector_store %arg14[%74, %c32], %71 {strides = array<i32>} : memref<64x64xf32, #tpu.memory_space<vmem>>, vector<8x32xf32>,
    %76 = tpu.concatenate %55, %71 in 1 : vector<8x32xf32>, vector<8x32xf32> -> vector<8x64xf32>
    %c1_i32 = arith.constant 1 : i32
    %c8_i32_29 = arith.constant 8 : i32
    %77 = arith.muli %c1_i32, %c8_i32_29 : i32
    %78 = tpu.assume_multiple %77, 8 : i32
    %c7_i32_30 = arith.constant 7 : i32
    %79 = arith.subi %c7_i32_30, %c1_i32 : i32
    %c8_i32_31 = arith.constant 8 : i32
    %80 = arith.muli %79, %c8_i32_31 : i32
    %81 = tpu.assume_multiple %80, 8 : i32
    %cst_32 = arith.constant dense<0.000000e+00> : vector<8x256xf32>
    %82 = tpu.matmul %76, %10, %cst_32 {dimension_numbers = #tpu.dot_dimension_numbers<[1], [0], [0], [1], [0, 0, 1, 1], [], []>} : vector<8x64xf32>, vector<64x256xf32>, vector<8x256xf32> -> vector<8x256xf32>
    %83 = vector.extract_strided_slice %82 {offsets = [0, 0], sizes = [8, 128], strides = [1, 1]} : vector<8x256xf32> to vector<8x128xf32>
    %84 = arith.index_cast %78 : i32 to index
    %c0_33 = arith.constant 0 : index
    %85 = vector.load %arg17[%84, %c0_33] : memref<64x128xf32, #tpu.memory_space<vmem>>, vector<8x128xf32>
    %86 = arith.addf %83, %85 : vector<8x128xf32>
    %87 = vector.extract_strided_slice %82 {offsets = [0, 128], sizes = [8, 128], strides = [1, 1]} : vector<8x256xf32> to vector<8x128xf32>
    %88 = arith.index_cast %81 : i32 to index
    %c0_34 = arith.constant 0 : index
    %89 = vector.load %arg18[%88, %c0_34] : memref<64x128xf32, #tpu.memory_space<vmem>>, vector<8x128xf32>
    %90 = arith.addf %87, %89 : vector<8x128xf32>
    %91 = arith.negf %86 : vector<8x128xf32>
    %92 = math.exp %91 : vector<8x128xf32>
    %cst_35 = arith.constant 1.000000e+00 : f32
    %93 = vector.broadcast %cst_35 : f32 to vector<8x128xf32>
    %94 = arith.addf %93, %92 : vector<8x128xf32>
    %95 = arith.divf %93, %94 : vector<8x128xf32>
    %96 = math.tanh %86 : vector<8x128xf32>
    %97 = arith.select %5, %96, %95 : vector<8x128xi1>, vector<8x128xf32>
    %98 = vector.extract_strided_slice %97 {offsets = [0, 0], sizes = [8, 32], strides = [1, 1]} : vector<8x128xf32> to vector<8x32xf32>
    %99 = vector.extract_strided_slice %97 {offsets = [0, 32], sizes = [8, 32], strides = [1, 1]} : vector<8x128xf32> to vector<8x32xf32>
    %100 = vector.extract_strided_slice %97 {offsets = [0, 64], sizes = [8, 32], strides = [1, 1]} : vector<8x128xf32> to vector<8x32xf32>
    %101 = vector.extract_strided_slice %97 {offsets = [0, 96], sizes = [8, 32], strides = [1, 1]} : vector<8x128xf32> to vector<8x32xf32>
    %102 = arith.mulf %99, %53 : vector<8x32xf32>
    %103 = arith.mulf %98, %100 : vector<8x32xf32>
    %104 = arith.addf %102, %103 : vector<8x32xf32>
    %105 = math.tanh %104 : vector<8x32xf32>
    %106 = arith.mulf %101, %105 : vector<8x32xf32>
    %107 = arith.negf %90 : vector<8x128xf32>
    %108 = math.exp %107 : vector<8x128xf32>
    %cst_36 = arith.constant 1.000000e+00 : f32
    %109 = vector.broadcast %cst_36 : f32 to vector<8x128xf32>
    %110 = arith.addf %109, %108 : vector<8x128xf32>
    %111 = arith.divf %109, %110 : vector<8x128xf32>
    %112 = math.tanh %90 : vector<8x128xf32>
    %113 = arith.select %5, %112, %111 : vector<8x128xi1>, vector<8x128xf32>
    %114 = vector.extract_strided_slice %113 {offsets = [0, 0], sizes = [8, 32], strides = [1, 1]} : vector<8x128xf32> to vector<8x32xf32>
    %115 = vector.extract_strided_slice %113 {offsets = [0, 32], sizes = [8, 32], strides = [1, 1]} : vector<8x128xf32> to vector<8x32xf32>
    %116 = vector.extract_strided_slice %113 {offsets = [0, 64], sizes = [8, 32], strides = [1, 1]} : vector<8x128xf32> to vector<8x32xf32>
    %117 = vector.extract_strided_slice %113 {offsets = [0, 96], sizes = [8, 32], strides = [1, 1]} : vector<8x128xf32> to vector<8x32xf32>
    %118 = arith.mulf %115, %69 : vector<8x32xf32>
    %119 = arith.mulf %114, %116 : vector<8x32xf32>
    %120 = arith.addf %118, %119 : vector<8x32xf32>
    %121 = math.tanh %120 : vector<8x32xf32>
    %122 = arith.mulf %117, %121 : vector<8x32xf32>
    %123 = arith.index_cast %78 : i32 to index
    %c0_37 = arith.constant 0 : index
    %124 = vector.load %arg14[%123, %c0_37] : memref<64x64xf32, #tpu.memory_space<vmem>>, vector<8x32xf32>
    tpu.vector_store %arg14[%123, %c0_37], %106 {strides = array<i32>} : memref<64x64xf32, #tpu.memory_space<vmem>>, vector<8x32xf32>,
    %125 = arith.index_cast %81 : i32 to index
    %c32_38 = arith.constant 32 : index
    %126 = vector.load %arg14[%125, %c32_38] : memref<64x64xf32, #tpu.memory_space<vmem>>, vector<8x32xf32>
    tpu.vector_store %arg14[%125, %c32_38], %122 {strides = array<i32>} : memref<64x64xf32, #tpu.memory_space<vmem>>, vector<8x32xf32>,
    %127 = tpu.concatenate %106, %122 in 1 : vector<8x32xf32>, vector<8x32xf32> -> vector<8x64xf32>
    %c2_i32 = arith.constant 2 : i32
    %c8_i32_39 = arith.constant 8 : i32
    %128 = arith.muli %c2_i32, %c8_i32_39 : i32
    %129 = tpu.assume_multiple %128, 8 : i32
    %c7_i32_40 = arith.constant 7 : i32
    %130 = arith.subi %c7_i32_40, %c2_i32 : i32
    %c8_i32_41 = arith.constant 8 : i32
    %131 = arith.muli %130, %c8_i32_41 : i32
    %132 = tpu.assume_multiple %131, 8 : i32
    %cst_42 = arith.constant dense<0.000000e+00> : vector<8x256xf32>
    %133 = tpu.matmul %127, %10, %cst_42 {dimension_numbers = #tpu.dot_dimension_numbers<[1], [0], [0], [1], [0, 0, 1, 1], [], []>} : vector<8x64xf32>, vector<64x256xf32>, vector<8x256xf32> -> vector<8x256xf32>
    %134 = vector.extract_strided_slice %133 {offsets = [0, 0], sizes = [8, 128], strides = [1, 1]} : vector<8x256xf32> to vector<8x128xf32>
    %135 = arith.index_cast %129 : i32 to index
    %c0_43 = arith.constant 0 : index
    %136 = vector.load %arg17[%135, %c0_43] : memref<64x128xf32, #tpu.memory_space<vmem>>, vector<8x128xf32>
    %137 = arith.addf %134, %136 : vector<8x128xf32>
    %138 = vector.extract_strided_slice %133 {offsets = [0, 128], sizes = [8, 128], strides = [1, 1]} : vector<8x256xf32> to vector<8x128xf32>
    %139 = arith.index_cast %132 : i32 to index
    %c0_44 = arith.constant 0 : index
    %140 = vector.load %arg18[%139, %c0_44] : memref<64x128xf32, #tpu.memory_space<vmem>>, vector<8x128xf32>
    %141 = arith.addf %138, %140 : vector<8x128xf32>
    %142 = arith.negf %137 : vector<8x128xf32>
    %143 = math.exp %142 : vector<8x128xf32>
    %cst_45 = arith.constant 1.000000e+00 : f32
    %144 = vector.broadcast %cst_45 : f32 to vector<8x128xf32>
    %145 = arith.addf %144, %143 : vector<8x128xf32>
    %146 = arith.divf %144, %145 : vector<8x128xf32>
    %147 = math.tanh %137 : vector<8x128xf32>
    %148 = arith.select %5, %147, %146 : vector<8x128xi1>, vector<8x128xf32>
    %149 = vector.extract_strided_slice %148 {offsets = [0, 0], sizes = [8, 32], strides = [1, 1]} : vector<8x128xf32> to vector<8x32xf32>
    %150 = vector.extract_strided_slice %148 {offsets = [0, 32], sizes = [8, 32], strides = [1, 1]} : vector<8x128xf32> to vector<8x32xf32>
    %151 = vector.extract_strided_slice %148 {offsets = [0, 64], sizes = [8, 32], strides = [1, 1]} : vector<8x128xf32> to vector<8x32xf32>
    %152 = vector.extract_strided_slice %148 {offsets = [0, 96], sizes = [8, 32], strides = [1, 1]} : vector<8x128xf32> to vector<8x32xf32>
    %153 = arith.mulf %150, %104 : vector<8x32xf32>
    %154 = arith.mulf %149, %151 : vector<8x32xf32>
    %155 = arith.addf %153, %154 : vector<8x32xf32>
    %156 = math.tanh %155 : vector<8x32xf32>
    %157 = arith.mulf %152, %156 : vector<8x32xf32>
    %158 = arith.negf %141 : vector<8x128xf32>
    %159 = math.exp %158 : vector<8x128xf32>
    %cst_46 = arith.constant 1.000000e+00 : f32
    %160 = vector.broadcast %cst_46 : f32 to vector<8x128xf32>
    %161 = arith.addf %160, %159 : vector<8x128xf32>
    %162 = arith.divf %160, %161 : vector<8x128xf32>
    %163 = math.tanh %141 : vector<8x128xf32>
    %164 = arith.select %5, %163, %162 : vector<8x128xi1>, vector<8x128xf32>
    %165 = vector.extract_strided_slice %164 {offsets = [0, 0], sizes = [8, 32], strides = [1, 1]} : vector<8x128xf32> to vector<8x32xf32>
    %166 = vector.extract_strided_slice %164 {offsets = [0, 32], sizes = [8, 32], strides = [1, 1]} : vector<8x128xf32> to vector<8x32xf32>
    %167 = vector.extract_strided_slice %164 {offsets = [0, 64], sizes = [8, 32], strides = [1, 1]} : vector<8x128xf32> to vector<8x32xf32>
    %168 = vector.extract_strided_slice %164 {offsets = [0, 96], sizes = [8, 32], strides = [1, 1]} : vector<8x128xf32> to vector<8x32xf32>
    %169 = arith.mulf %166, %120 : vector<8x32xf32>
    %170 = arith.mulf %165, %167 : vector<8x32xf32>
    %171 = arith.addf %169, %170 : vector<8x32xf32>
    %172 = math.tanh %171 : vector<8x32xf32>
    %173 = arith.mulf %168, %172 : vector<8x32xf32>
    %174 = arith.index_cast %129 : i32 to index
    %c0_47 = arith.constant 0 : index
    %175 = vector.load %arg14[%174, %c0_47] : memref<64x64xf32, #tpu.memory_space<vmem>>, vector<8x32xf32>
    tpu.vector_store %arg14[%174, %c0_47], %157 {strides = array<i32>} : memref<64x64xf32, #tpu.memory_space<vmem>>, vector<8x32xf32>,
    %176 = arith.index_cast %132 : i32 to index
    %c32_48 = arith.constant 32 : index
    %177 = vector.load %arg14[%176, %c32_48] : memref<64x64xf32, #tpu.memory_space<vmem>>, vector<8x32xf32>
    tpu.vector_store %arg14[%176, %c32_48], %173 {strides = array<i32>} : memref<64x64xf32, #tpu.memory_space<vmem>>, vector<8x32xf32>,
    %178 = tpu.concatenate %157, %173 in 1 : vector<8x32xf32>, vector<8x32xf32> -> vector<8x64xf32>
    %c3_i32 = arith.constant 3 : i32
    %c8_i32_49 = arith.constant 8 : i32
    %179 = arith.muli %c3_i32, %c8_i32_49 : i32
    %180 = tpu.assume_multiple %179, 8 : i32
    %c7_i32_50 = arith.constant 7 : i32
    %181 = arith.subi %c7_i32_50, %c3_i32 : i32
    %c8_i32_51 = arith.constant 8 : i32
    %182 = arith.muli %181, %c8_i32_51 : i32
    %183 = tpu.assume_multiple %182, 8 : i32
    %cst_52 = arith.constant dense<0.000000e+00> : vector<8x256xf32>
    %184 = tpu.matmul %178, %10, %cst_52 {dimension_numbers = #tpu.dot_dimension_numbers<[1], [0], [0], [1], [0, 0, 1, 1], [], []>} : vector<8x64xf32>, vector<64x256xf32>, vector<8x256xf32> -> vector<8x256xf32>
    %185 = vector.extract_strided_slice %184 {offsets = [0, 0], sizes = [8, 128], strides = [1, 1]} : vector<8x256xf32> to vector<8x128xf32>
    %186 = arith.index_cast %180 : i32 to index
    %c0_53 = arith.constant 0 : index
    %187 = vector.load %arg17[%186, %c0_53] : memref<64x128xf32, #tpu.memory_space<vmem>>, vector<8x128xf32>
    %188 = arith.addf %185, %187 : vector<8x128xf32>
    %189 = vector.extract_strided_slice %184 {offsets = [0, 128], sizes = [8, 128], strides = [1, 1]} : vector<8x256xf32> to vector<8x128xf32>
    %190 = arith.index_cast %183 : i32 to index
    %c0_54 = arith.constant 0 : index
    %191 = vector.load %arg18[%190, %c0_54] : memref<64x128xf32, #tpu.memory_space<vmem>>, vector<8x128xf32>
    %192 = arith.addf %189, %191 : vector<8x128xf32>
    %193 = arith.negf %188 : vector<8x128xf32>
    %194 = math.exp %193 : vector<8x128xf32>
    %cst_55 = arith.constant 1.000000e+00 : f32
    %195 = vector.broadcast %cst_55 : f32 to vector<8x128xf32>
    %196 = arith.addf %195, %194 : vector<8x128xf32>
    %197 = arith.divf %195, %196 : vector<8x128xf32>
    %198 = math.tanh %188 : vector<8x128xf32>
    %199 = arith.select %5, %198, %197 : vector<8x128xi1>, vector<8x128xf32>
    %200 = vector.extract_strided_slice %199 {offsets = [0, 0], sizes = [8, 32], strides = [1, 1]} : vector<8x128xf32> to vector<8x32xf32>
    %201 = vector.extract_strided_slice %199 {offsets = [0, 32], sizes = [8, 32], strides = [1, 1]} : vector<8x128xf32> to vector<8x32xf32>
    %202 = vector.extract_strided_slice %199 {offsets = [0, 64], sizes = [8, 32], strides = [1, 1]} : vector<8x128xf32> to vector<8x32xf32>
    %203 = vector.extract_strided_slice %199 {offsets = [0, 96], sizes = [8, 32], strides = [1, 1]} : vector<8x128xf32> to vector<8x32xf32>
    %204 = arith.mulf %201, %155 : vector<8x32xf32>
    %205 = arith.mulf %200, %202 : vector<8x32xf32>
    %206 = arith.addf %204, %205 : vector<8x32xf32>
    %207 = math.tanh %206 : vector<8x32xf32>
    %208 = arith.mulf %203, %207 : vector<8x32xf32>
    %209 = arith.negf %192 : vector<8x128xf32>
    %210 = math.exp %209 : vector<8x128xf32>
    %cst_56 = arith.constant 1.000000e+00 : f32
    %211 = vector.broadcast %cst_56 : f32 to vector<8x128xf32>
    %212 = arith.addf %211, %210 : vector<8x128xf32>
    %213 = arith.divf %211, %212 : vector<8x128xf32>
    %214 = math.tanh %192 : vector<8x128xf32>
    %215 = arith.select %5, %214, %213 : vector<8x128xi1>, vector<8x128xf32>
    %216 = vector.extract_strided_slice %215 {offsets = [0, 0], sizes = [8, 32], strides = [1, 1]} : vector<8x128xf32> to vector<8x32xf32>
    %217 = vector.extract_strided_slice %215 {offsets = [0, 32], sizes = [8, 32], strides = [1, 1]} : vector<8x128xf32> to vector<8x32xf32>
    %218 = vector.extract_strided_slice %215 {offsets = [0, 64], sizes = [8, 32], strides = [1, 1]} : vector<8x128xf32> to vector<8x32xf32>
    %219 = vector.extract_strided_slice %215 {offsets = [0, 96], sizes = [8, 32], strides = [1, 1]} : vector<8x128xf32> to vector<8x32xf32>
    %220 = arith.mulf %217, %171 : vector<8x32xf32>
    %221 = arith.mulf %216, %218 : vector<8x32xf32>
    %222 = arith.addf %220, %221 : vector<8x32xf32>
    %223 = math.tanh %222 : vector<8x32xf32>
    %224 = arith.mulf %219, %223 : vector<8x32xf32>
    %225 = arith.index_cast %180 : i32 to index
    %c0_57 = arith.constant 0 : index
    %226 = vector.load %arg14[%225, %c0_57] : memref<64x64xf32, #tpu.memory_space<vmem>>, vector<8x32xf32>
    tpu.vector_store %arg14[%225, %c0_57], %208 {strides = array<i32>} : memref<64x64xf32, #tpu.memory_space<vmem>>, vector<8x32xf32>,
    %227 = arith.index_cast %183 : i32 to index
    %c32_58 = arith.constant 32 : index
    %228 = vector.load %arg14[%227, %c32_58] : memref<64x64xf32, #tpu.memory_space<vmem>>, vector<8x32xf32>
    tpu.vector_store %arg14[%227, %c32_58], %224 {strides = array<i32>} : memref<64x64xf32, #tpu.memory_space<vmem>>, vector<8x32xf32>,
    %229 = tpu.concatenate %208, %224 in 1 : vector<8x32xf32>, vector<8x32xf32> -> vector<8x64xf32>
    %c4_i32 = arith.constant 4 : i32
    %c8_i32_59 = arith.constant 8 : i32
    %230 = arith.muli %c4_i32, %c8_i32_59 : i32
    %231 = tpu.assume_multiple %230, 8 : i32
    %c7_i32_60 = arith.constant 7 : i32
    %232 = arith.subi %c7_i32_60, %c4_i32 : i32
    %c8_i32_61 = arith.constant 8 : i32
    %233 = arith.muli %232, %c8_i32_61 : i32
    %234 = tpu.assume_multiple %233, 8 : i32
    %cst_62 = arith.constant dense<0.000000e+00> : vector<8x256xf32>
    %235 = tpu.matmul %229, %10, %cst_62 {dimension_numbers = #tpu.dot_dimension_numbers<[1], [0], [0], [1], [0, 0, 1, 1], [], []>} : vector<8x64xf32>, vector<64x256xf32>, vector<8x256xf32> -> vector<8x256xf32>
    %236 = vector.extract_strided_slice %235 {offsets = [0, 0], sizes = [8, 128], strides = [1, 1]} : vector<8x256xf32> to vector<8x128xf32>
    %237 = arith.index_cast %231 : i32 to index
    %c0_63 = arith.constant 0 : index
    %238 = vector.load %arg17[%237, %c0_63] : memref<64x128xf32, #tpu.memory_space<vmem>>, vector<8x128xf32>
    %239 = arith.addf %236, %238 : vector<8x128xf32>
    %240 = vector.extract_strided_slice %235 {offsets = [0, 128], sizes = [8, 128], strides = [1, 1]} : vector<8x256xf32> to vector<8x128xf32>
    %241 = arith.index_cast %234 : i32 to index
    %c0_64 = arith.constant 0 : index
    %242 = vector.load %arg18[%241, %c0_64] : memref<64x128xf32, #tpu.memory_space<vmem>>, vector<8x128xf32>
    %243 = arith.addf %240, %242 : vector<8x128xf32>
    %244 = arith.negf %239 : vector<8x128xf32>
    %245 = math.exp %244 : vector<8x128xf32>
    %cst_65 = arith.constant 1.000000e+00 : f32
    %246 = vector.broadcast %cst_65 : f32 to vector<8x128xf32>
    %247 = arith.addf %246, %245 : vector<8x128xf32>
    %248 = arith.divf %246, %247 : vector<8x128xf32>
    %249 = math.tanh %239 : vector<8x128xf32>
    %250 = arith.select %5, %249, %248 : vector<8x128xi1>, vector<8x128xf32>
    %251 = vector.extract_strided_slice %250 {offsets = [0, 0], sizes = [8, 32], strides = [1, 1]} : vector<8x128xf32> to vector<8x32xf32>
    %252 = vector.extract_strided_slice %250 {offsets = [0, 32], sizes = [8, 32], strides = [1, 1]} : vector<8x128xf32> to vector<8x32xf32>
    %253 = vector.extract_strided_slice %250 {offsets = [0, 64], sizes = [8, 32], strides = [1, 1]} : vector<8x128xf32> to vector<8x32xf32>
    %254 = vector.extract_strided_slice %250 {offsets = [0, 96], sizes = [8, 32], strides = [1, 1]} : vector<8x128xf32> to vector<8x32xf32>
    %255 = arith.mulf %252, %206 : vector<8x32xf32>
    %256 = arith.mulf %251, %253 : vector<8x32xf32>
    %257 = arith.addf %255, %256 : vector<8x32xf32>
    %258 = math.tanh %257 : vector<8x32xf32>
    %259 = arith.mulf %254, %258 : vector<8x32xf32>
    %260 = arith.negf %243 : vector<8x128xf32>
    %261 = math.exp %260 : vector<8x128xf32>
    %cst_66 = arith.constant 1.000000e+00 : f32
    %262 = vector.broadcast %cst_66 : f32 to vector<8x128xf32>
    %263 = arith.addf %262, %261 : vector<8x128xf32>
    %264 = arith.divf %262, %263 : vector<8x128xf32>
    %265 = math.tanh %243 : vector<8x128xf32>
    %266 = arith.select %5, %265, %264 : vector<8x128xi1>, vector<8x128xf32>
    %267 = vector.extract_strided_slice %266 {offsets = [0, 0], sizes = [8, 32], strides = [1, 1]} : vector<8x128xf32> to vector<8x32xf32>
    %268 = vector.extract_strided_slice %266 {offsets = [0, 32], sizes = [8, 32], strides = [1, 1]} : vector<8x128xf32> to vector<8x32xf32>
    %269 = vector.extract_strided_slice %266 {offsets = [0, 64], sizes = [8, 32], strides = [1, 1]} : vector<8x128xf32> to vector<8x32xf32>
    %270 = vector.extract_strided_slice %266 {offsets = [0, 96], sizes = [8, 32], strides = [1, 1]} : vector<8x128xf32> to vector<8x32xf32>
    %271 = arith.mulf %268, %222 : vector<8x32xf32>
    %272 = arith.mulf %267, %269 : vector<8x32xf32>
    %273 = arith.addf %271, %272 : vector<8x32xf32>
    %274 = math.tanh %273 : vector<8x32xf32>
    %275 = arith.mulf %270, %274 : vector<8x32xf32>
    %276 = arith.index_cast %231 : i32 to index
    %c0_67 = arith.constant 0 : index
    %277 = vector.load %arg14[%276, %c0_67] : memref<64x64xf32, #tpu.memory_space<vmem>>, vector<8x32xf32>
    tpu.vector_store %arg14[%276, %c0_67], %259 {strides = array<i32>} : memref<64x64xf32, #tpu.memory_space<vmem>>, vector<8x32xf32>,
    %278 = arith.index_cast %234 : i32 to index
    %c32_68 = arith.constant 32 : index
    %279 = vector.load %arg14[%278, %c32_68] : memref<64x64xf32, #tpu.memory_space<vmem>>, vector<8x32xf32>
    tpu.vector_store %arg14[%278, %c32_68], %275 {strides = array<i32>} : memref<64x64xf32, #tpu.memory_space<vmem>>, vector<8x32xf32>,
    %280 = tpu.concatenate %259, %275 in 1 : vector<8x32xf32>, vector<8x32xf32> -> vector<8x64xf32>
    %c5_i32 = arith.constant 5 : i32
    %c8_i32_69 = arith.constant 8 : i32
    %281 = arith.muli %c5_i32, %c8_i32_69 : i32
    %282 = tpu.assume_multiple %281, 8 : i32
    %c7_i32_70 = arith.constant 7 : i32
    %283 = arith.subi %c7_i32_70, %c5_i32 : i32
    %c8_i32_71 = arith.constant 8 : i32
    %284 = arith.muli %283, %c8_i32_71 : i32
    %285 = tpu.assume_multiple %284, 8 : i32
    %cst_72 = arith.constant dense<0.000000e+00> : vector<8x256xf32>
    %286 = tpu.matmul %280, %10, %cst_72 {dimension_numbers = #tpu.dot_dimension_numbers<[1], [0], [0], [1], [0, 0, 1, 1], [], []>} : vector<8x64xf32>, vector<64x256xf32>, vector<8x256xf32> -> vector<8x256xf32>
    %287 = vector.extract_strided_slice %286 {offsets = [0, 0], sizes = [8, 128], strides = [1, 1]} : vector<8x256xf32> to vector<8x128xf32>
    %288 = arith.index_cast %282 : i32 to index
    %c0_73 = arith.constant 0 : index
    %289 = vector.load %arg17[%288, %c0_73] : memref<64x128xf32, #tpu.memory_space<vmem>>, vector<8x128xf32>
    %290 = arith.addf %287, %289 : vector<8x128xf32>
    %291 = vector.extract_strided_slice %286 {offsets = [0, 128], sizes = [8, 128], strides = [1, 1]} : vector<8x256xf32> to vector<8x128xf32>
    %292 = arith.index_cast %285 : i32 to index
    %c0_74 = arith.constant 0 : index
    %293 = vector.load %arg18[%292, %c0_74] : memref<64x128xf32, #tpu.memory_space<vmem>>, vector<8x128xf32>
    %294 = arith.addf %291, %293 : vector<8x128xf32>
    %295 = arith.negf %290 : vector<8x128xf32>
    %296 = math.exp %295 : vector<8x128xf32>
    %cst_75 = arith.constant 1.000000e+00 : f32
    %297 = vector.broadcast %cst_75 : f32 to vector<8x128xf32>
    %298 = arith.addf %297, %296 : vector<8x128xf32>
    %299 = arith.divf %297, %298 : vector<8x128xf32>
    %300 = math.tanh %290 : vector<8x128xf32>
    %301 = arith.select %5, %300, %299 : vector<8x128xi1>, vector<8x128xf32>
    %302 = vector.extract_strided_slice %301 {offsets = [0, 0], sizes = [8, 32], strides = [1, 1]} : vector<8x128xf32> to vector<8x32xf32>
    %303 = vector.extract_strided_slice %301 {offsets = [0, 32], sizes = [8, 32], strides = [1, 1]} : vector<8x128xf32> to vector<8x32xf32>
    %304 = vector.extract_strided_slice %301 {offsets = [0, 64], sizes = [8, 32], strides = [1, 1]} : vector<8x128xf32> to vector<8x32xf32>
    %305 = vector.extract_strided_slice %301 {offsets = [0, 96], sizes = [8, 32], strides = [1, 1]} : vector<8x128xf32> to vector<8x32xf32>
    %306 = arith.mulf %303, %257 : vector<8x32xf32>
    %307 = arith.mulf %302, %304 : vector<8x32xf32>
    %308 = arith.addf %306, %307 : vector<8x32xf32>
    %309 = math.tanh %308 : vector<8x32xf32>
    %310 = arith.mulf %305, %309 : vector<8x32xf32>
    %311 = arith.negf %294 : vector<8x128xf32>
    %312 = math.exp %311 : vector<8x128xf32>
    %cst_76 = arith.constant 1.000000e+00 : f32
    %313 = vector.broadcast %cst_76 : f32 to vector<8x128xf32>
    %314 = arith.addf %313, %312 : vector<8x128xf32>
    %315 = arith.divf %313, %314 : vector<8x128xf32>
    %316 = math.tanh %294 : vector<8x128xf32>
    %317 = arith.select %5, %316, %315 : vector<8x128xi1>, vector<8x128xf32>
    %318 = vector.extract_strided_slice %317 {offsets = [0, 0], sizes = [8, 32], strides = [1, 1]} : vector<8x128xf32> to vector<8x32xf32>
    %319 = vector.extract_strided_slice %317 {offsets = [0, 32], sizes = [8, 32], strides = [1, 1]} : vector<8x128xf32> to vector<8x32xf32>
    %320 = vector.extract_strided_slice %317 {offsets = [0, 64], sizes = [8, 32], strides = [1, 1]} : vector<8x128xf32> to vector<8x32xf32>
    %321 = vector.extract_strided_slice %317 {offsets = [0, 96], sizes = [8, 32], strides = [1, 1]} : vector<8x128xf32> to vector<8x32xf32>
    %322 = arith.mulf %319, %273 : vector<8x32xf32>
    %323 = arith.mulf %318, %320 : vector<8x32xf32>
    %324 = arith.addf %322, %323 : vector<8x32xf32>
    %325 = math.tanh %324 : vector<8x32xf32>
    %326 = arith.mulf %321, %325 : vector<8x32xf32>
    %327 = arith.index_cast %282 : i32 to index
    %c0_77 = arith.constant 0 : index
    %328 = vector.load %arg14[%327, %c0_77] : memref<64x64xf32, #tpu.memory_space<vmem>>, vector<8x32xf32>
    tpu.vector_store %arg14[%327, %c0_77], %310 {strides = array<i32>} : memref<64x64xf32, #tpu.memory_space<vmem>>, vector<8x32xf32>,
    %329 = arith.index_cast %285 : i32 to index
    %c32_78 = arith.constant 32 : index
    %330 = vector.load %arg14[%329, %c32_78] : memref<64x64xf32, #tpu.memory_space<vmem>>, vector<8x32xf32>
    tpu.vector_store %arg14[%329, %c32_78], %326 {strides = array<i32>} : memref<64x64xf32, #tpu.memory_space<vmem>>, vector<8x32xf32>,
    %331 = tpu.concatenate %310, %326 in 1 : vector<8x32xf32>, vector<8x32xf32> -> vector<8x64xf32>
    %c6_i32 = arith.constant 6 : i32
    %c8_i32_79 = arith.constant 8 : i32
    %332 = arith.muli %c6_i32, %c8_i32_79 : i32
    %333 = tpu.assume_multiple %332, 8 : i32
    %c7_i32_80 = arith.constant 7 : i32
    %334 = arith.subi %c7_i32_80, %c6_i32 : i32
    %c8_i32_81 = arith.constant 8 : i32
    %335 = arith.muli %334, %c8_i32_81 : i32
    %336 = tpu.assume_multiple %335, 8 : i32
    %cst_82 = arith.constant dense<0.000000e+00> : vector<8x256xf32>
    %337 = tpu.matmul %331, %10, %cst_82 {dimension_numbers = #tpu.dot_dimension_numbers<[1], [0], [0], [1], [0, 0, 1, 1], [], []>} : vector<8x64xf32>, vector<64x256xf32>, vector<8x256xf32> -> vector<8x256xf32>
    %338 = vector.extract_strided_slice %337 {offsets = [0, 0], sizes = [8, 128], strides = [1, 1]} : vector<8x256xf32> to vector<8x128xf32>
    %339 = arith.index_cast %333 : i32 to index
    %c0_83 = arith.constant 0 : index
    %340 = vector.load %arg17[%339, %c0_83] : memref<64x128xf32, #tpu.memory_space<vmem>>, vector<8x128xf32>
    %341 = arith.addf %338, %340 : vector<8x128xf32>
    %342 = vector.extract_strided_slice %337 {offsets = [0, 128], sizes = [8, 128], strides = [1, 1]} : vector<8x256xf32> to vector<8x128xf32>
    %343 = arith.index_cast %336 : i32 to index
    %c0_84 = arith.constant 0 : index
    %344 = vector.load %arg18[%343, %c0_84] : memref<64x128xf32, #tpu.memory_space<vmem>>, vector<8x128xf32>
    %345 = arith.addf %342, %344 : vector<8x128xf32>
    %346 = arith.negf %341 : vector<8x128xf32>
    %347 = math.exp %346 : vector<8x128xf32>
    %cst_85 = arith.constant 1.000000e+00 : f32
    %348 = vector.broadcast %cst_85 : f32 to vector<8x128xf32>
    %349 = arith.addf %348, %347 : vector<8x128xf32>
    %350 = arith.divf %348, %349 : vector<8x128xf32>
    %351 = math.tanh %341 : vector<8x128xf32>
    %352 = arith.select %5, %351, %350 : vector<8x128xi1>, vector<8x128xf32>
    %353 = vector.extract_strided_slice %352 {offsets = [0, 0], sizes = [8, 32], strides = [1, 1]} : vector<8x128xf32> to vector<8x32xf32>
    %354 = vector.extract_strided_slice %352 {offsets = [0, 32], sizes = [8, 32], strides = [1, 1]} : vector<8x128xf32> to vector<8x32xf32>
    %355 = vector.extract_strided_slice %352 {offsets = [0, 64], sizes = [8, 32], strides = [1, 1]} : vector<8x128xf32> to vector<8x32xf32>
    %356 = vector.extract_strided_slice %352 {offsets = [0, 96], sizes = [8, 32], strides = [1, 1]} : vector<8x128xf32> to vector<8x32xf32>
    %357 = arith.mulf %354, %308 : vector<8x32xf32>
    %358 = arith.mulf %353, %355 : vector<8x32xf32>
    %359 = arith.addf %357, %358 : vector<8x32xf32>
    %360 = math.tanh %359 : vector<8x32xf32>
    %361 = arith.mulf %356, %360 : vector<8x32xf32>
    %362 = arith.negf %345 : vector<8x128xf32>
    %363 = math.exp %362 : vector<8x128xf32>
    %cst_86 = arith.constant 1.000000e+00 : f32
    %364 = vector.broadcast %cst_86 : f32 to vector<8x128xf32>
    %365 = arith.addf %364, %363 : vector<8x128xf32>
    %366 = arith.divf %364, %365 : vector<8x128xf32>
    %367 = math.tanh %345 : vector<8x128xf32>
    %368 = arith.select %5, %367, %366 : vector<8x128xi1>, vector<8x128xf32>
    %369 = vector.extract_strided_slice %368 {offsets = [0, 0], sizes = [8, 32], strides = [1, 1]} : vector<8x128xf32> to vector<8x32xf32>
    %370 = vector.extract_strided_slice %368 {offsets = [0, 32], sizes = [8, 32], strides = [1, 1]} : vector<8x128xf32> to vector<8x32xf32>
    %371 = vector.extract_strided_slice %368 {offsets = [0, 64], sizes = [8, 32], strides = [1, 1]} : vector<8x128xf32> to vector<8x32xf32>
    %372 = vector.extract_strided_slice %368 {offsets = [0, 96], sizes = [8, 32], strides = [1, 1]} : vector<8x128xf32> to vector<8x32xf32>
    %373 = arith.mulf %370, %324 : vector<8x32xf32>
    %374 = arith.mulf %369, %371 : vector<8x32xf32>
    %375 = arith.addf %373, %374 : vector<8x32xf32>
    %376 = math.tanh %375 : vector<8x32xf32>
    %377 = arith.mulf %372, %376 : vector<8x32xf32>
    %378 = arith.index_cast %333 : i32 to index
    %c0_87 = arith.constant 0 : index
    %379 = vector.load %arg14[%378, %c0_87] : memref<64x64xf32, #tpu.memory_space<vmem>>, vector<8x32xf32>
    tpu.vector_store %arg14[%378, %c0_87], %361 {strides = array<i32>} : memref<64x64xf32, #tpu.memory_space<vmem>>, vector<8x32xf32>,
    %380 = arith.index_cast %336 : i32 to index
    %c32_88 = arith.constant 32 : index
    %381 = vector.load %arg14[%380, %c32_88] : memref<64x64xf32, #tpu.memory_space<vmem>>, vector<8x32xf32>
    tpu.vector_store %arg14[%380, %c32_88], %377 {strides = array<i32>} : memref<64x64xf32, #tpu.memory_space<vmem>>, vector<8x32xf32>,
    %382 = tpu.concatenate %361, %377 in 1 : vector<8x32xf32>, vector<8x32xf32> -> vector<8x64xf32>
    %c7_i32_89 = arith.constant 7 : i32
    %c8_i32_90 = arith.constant 8 : i32
    %383 = arith.muli %c7_i32_89, %c8_i32_90 : i32
    %384 = tpu.assume_multiple %383, 8 : i32
    %c7_i32_91 = arith.constant 7 : i32
    %385 = arith.subi %c7_i32_91, %c7_i32_89 : i32
    %c8_i32_92 = arith.constant 8 : i32
    %386 = arith.muli %385, %c8_i32_92 : i32
    %387 = tpu.assume_multiple %386, 8 : i32
    %cst_93 = arith.constant dense<0.000000e+00> : vector<8x256xf32>
    %388 = tpu.matmul %382, %10, %cst_93 {dimension_numbers = #tpu.dot_dimension_numbers<[1], [0], [0], [1], [0, 0, 1, 1], [], []>} : vector<8x64xf32>, vector<64x256xf32>, vector<8x256xf32> -> vector<8x256xf32>
    %389 = vector.extract_strided_slice %388 {offsets = [0, 0], sizes = [8, 128], strides = [1, 1]} : vector<8x256xf32> to vector<8x128xf32>
    %390 = arith.index_cast %384 : i32 to index
    %c0_94 = arith.constant 0 : index
    %391 = vector.load %arg17[%390, %c0_94] : memref<64x128xf32, #tpu.memory_space<vmem>>, vector<8x128xf32>
    %392 = arith.addf %389, %391 : vector<8x128xf32>
    %393 = vector.extract_strided_slice %388 {offsets = [0, 128], sizes = [8, 128], strides = [1, 1]} : vector<8x256xf32> to vector<8x128xf32>
    %394 = arith.index_cast %387 : i32 to index
    %c0_95 = arith.constant 0 : index
    %395 = vector.load %arg18[%394, %c0_95] : memref<64x128xf32, #tpu.memory_space<vmem>>, vector<8x128xf32>
    %396 = arith.addf %393, %395 : vector<8x128xf32>
    %397 = arith.negf %392 : vector<8x128xf32>
    %398 = math.exp %397 : vector<8x128xf32>
    %cst_96 = arith.constant 1.000000e+00 : f32
    %399 = vector.broadcast %cst_96 : f32 to vector<8x128xf32>
    %400 = arith.addf %399, %398 : vector<8x128xf32>
    %401 = arith.divf %399, %400 : vector<8x128xf32>
    %402 = math.tanh %392 : vector<8x128xf32>
    %403 = arith.select %5, %402, %401 : vector<8x128xi1>, vector<8x128xf32>
    %404 = vector.extract_strided_slice %403 {offsets = [0, 0], sizes = [8, 32], strides = [1, 1]} : vector<8x128xf32> to vector<8x32xf32>
    %405 = vector.extract_strided_slice %403 {offsets = [0, 32], sizes = [8, 32], strides = [1, 1]} : vector<8x128xf32> to vector<8x32xf32>
    %406 = vector.extract_strided_slice %403 {offsets = [0, 64], sizes = [8, 32], strides = [1, 1]} : vector<8x128xf32> to vector<8x32xf32>
    %407 = vector.extract_strided_slice %403 {offsets = [0, 96], sizes = [8, 32], strides = [1, 1]} : vector<8x128xf32> to vector<8x32xf32>
    %408 = arith.mulf %405, %359 : vector<8x32xf32>
    %409 = arith.mulf %404, %406 : vector<8x32xf32>
    %410 = arith.addf %408, %409 : vector<8x32xf32>
    %411 = math.tanh %410 : vector<8x32xf32>
    %412 = arith.mulf %407, %411 : vector<8x32xf32>
    %413 = arith.negf %396 : vector<8x128xf32>
    %414 = math.exp %413 : vector<8x128xf32>
    %cst_97 = arith.constant 1.000000e+00 : f32
    %415 = vector.broadcast %cst_97 : f32 to vector<8x128xf32>
    %416 = arith.addf %415, %414 : vector<8x128xf32>
    %417 = arith.divf %415, %416 : vector<8x128xf32>
    %418 = math.tanh %396 : vector<8x128xf32>
    %419 = arith.select %5, %418, %417 : vector<8x128xi1>, vector<8x128xf32>
    %420 = vector.extract_strided_slice %419 {offsets = [0, 0], sizes = [8, 32], strides = [1, 1]} : vector<8x128xf32> to vector<8x32xf32>
    %421 = vector.extract_strided_slice %419 {offsets = [0, 32], sizes = [8, 32], strides = [1, 1]} : vector<8x128xf32> to vector<8x32xf32>
    %422 = vector.extract_strided_slice %419 {offsets = [0, 64], sizes = [8, 32], strides = [1, 1]} : vector<8x128xf32> to vector<8x32xf32>
    %423 = vector.extract_strided_slice %419 {offsets = [0, 96], sizes = [8, 32], strides = [1, 1]} : vector<8x128xf32> to vector<8x32xf32>
    %424 = arith.mulf %421, %375 : vector<8x32xf32>
    %425 = arith.mulf %420, %422 : vector<8x32xf32>
    %426 = arith.addf %424, %425 : vector<8x32xf32>
    %427 = math.tanh %426 : vector<8x32xf32>
    %428 = arith.mulf %423, %427 : vector<8x32xf32>
    %429 = arith.index_cast %384 : i32 to index
    %c0_98 = arith.constant 0 : index
    %430 = vector.load %arg14[%429, %c0_98] : memref<64x64xf32, #tpu.memory_space<vmem>>, vector<8x32xf32>
    tpu.vector_store %arg14[%429, %c0_98], %412 {strides = array<i32>} : memref<64x64xf32, #tpu.memory_space<vmem>>, vector<8x32xf32>,
    %431 = arith.index_cast %387 : i32 to index
    %c32_99 = arith.constant 32 : index
    %432 = vector.load %arg14[%431, %c32_99] : memref<64x64xf32, #tpu.memory_space<vmem>>, vector<8x32xf32>
    tpu.vector_store %arg14[%431, %c32_99], %428 {strides = array<i32>} : memref<64x64xf32, #tpu.memory_space<vmem>>, vector<8x32xf32>,
    %433 = tpu.concatenate %412, %428 in 1 : vector<8x32xf32>, vector<8x32xf32> -> vector<8x64xf32>
    %c8_i32_100 = arith.constant 8 : i32
    %c0_101 = arith.constant 0 : index
    %c0_102 = arith.constant 0 : index
    %c0_103 = arith.constant 0 : index
    %434 = vector.load %arg15[%c0_101, %c0_102, %c0_103] : memref<2x8x64xf32, #tpu.memory_space<vmem>>, vector<1x8x64xf32>
    %435 = vector.shape_cast %434 : vector<1x8x64xf32> to vector<8x64xf32>
    %436 = vector.shape_cast %433 : vector<8x64xf32> to vector<1x8x64xf32>
    tpu.vector_store %arg15[%c0_101, %c0_102, %c0_103], %436 {strides = array<i32>} : memref<2x8x64xf32, #tpu.memory_space<vmem>>, vector<1x8x64xf32>,
    %437 = tpu.concatenate %410, %426 in 1 : vector<8x32xf32>, vector<8x32xf32> -> vector<8x64xf32>
    %c0_104 = arith.constant 0 : index
    %c0_105 = arith.constant 0 : index
    %c0_106 = arith.constant 0 : index
    %438 = vector.load %arg16[%c0_104, %c0_105, %c0_106] : memref<2x8x64xf32, #tpu.memory_space<vmem>>, vector<1x8x64xf32>
    %439 = vector.shape_cast %438 : vector<1x8x64xf32> to vector<8x64xf32>
    %440 = vector.shape_cast %437 : vector<8x64xf32> to vector<1x8x64xf32>
    tpu.vector_store %arg16[%c0_104, %c0_105, %c0_106], %440 {strides = array<i32>} : memref<2x8x64xf32, #tpu.memory_space<vmem>>, vector<1x8x64xf32>,
    %c0_107 = arith.constant 0 : index
    %c0_108 = arith.constant 0 : index
    %441 = vector.load %arg9[%c0_107, %c0_108] : memref<64x128xf32, #tpu.memory_space<vmem>>, vector<64x128xf32>
    %c0_109 = arith.constant 0 : index
    %c0_110 = arith.constant 0 : index
    %442 = vector.load %arg10[%c0_109, %c0_110] : memref<1x128xf32, #tpu.memory_space<vmem>>, vector<1x128xf32>
    %c0_111 = arith.constant 0 : index
    %c0_112 = arith.constant 0 : index
    %443 = vector.load %arg11[%c0_111, %c0_112] : memref<64x128xf32, #tpu.memory_space<vmem>>, vector<64x128xf32>
    %c0_113 = arith.constant 0 : index
    %c0_114 = arith.constant 0 : index
    %444 = vector.load %arg12[%c0_113, %c0_114] : memref<1x128xf32, #tpu.memory_space<vmem>>, vector<1x128xf32>
    %c0_115 = arith.constant 0 : index
    %c0_116 = arith.constant 0 : index
    %445 = vector.load %arg13[%c0_115, %c0_116] : memref<64x256xf32, #tpu.memory_space<vmem>>, vector<64x256xf32>
    %c0_117 = arith.constant 0 : index
    %c0_118 = arith.constant 0 : index
    %446 = vector.load %arg14[%c0_117, %c0_118] : memref<64x64xf32, #tpu.memory_space<vmem>>, vector<64x64xf32>
    %cst_119 = arith.constant dense<0.000000e+00> : vector<64x128xf32>
    %447 = tpu.matmul %446, %441, %cst_119 {dimension_numbers = #tpu.dot_dimension_numbers<[1], [0], [0], [1], [0, 0, 1, 1], [], []>} : vector<64x64xf32>, vector<64x128xf32>, vector<64x128xf32> -> vector<64x128xf32>
    %448 = vector.broadcast %442 : vector<1x128xf32> to vector<64x128xf32>
    %449 = arith.addf %447, %448 : vector<64x128xf32>
    %c0_120 = arith.constant 0 : index
    %c0_121 = arith.constant 0 : index
    %450 = vector.load %arg17[%c0_120, %c0_121] : memref<64x128xf32, #tpu.memory_space<vmem>>, vector<64x128xf32>
    tpu.vector_store %arg17[%c0_120, %c0_121], %449 {strides = array<i32>} : memref<64x128xf32, #tpu.memory_space<vmem>>, vector<64x128xf32>,
    %cst_122 = arith.constant dense<0.000000e+00> : vector<64x128xf32>
    %451 = tpu.matmul %446, %443, %cst_122 {dimension_numbers = #tpu.dot_dimension_numbers<[1], [0], [0], [1], [0, 0, 1, 1], [], []>} : vector<64x64xf32>, vector<64x128xf32>, vector<64x128xf32> -> vector<64x128xf32>
    %452 = vector.broadcast %444 : vector<1x128xf32> to vector<64x128xf32>
    %453 = arith.addf %451, %452 : vector<64x128xf32>
    %c0_123 = arith.constant 0 : index
    %c0_124 = arith.constant 0 : index
    %454 = vector.load %arg18[%c0_123, %c0_124] : memref<64x128xf32, #tpu.memory_space<vmem>>, vector<64x128xf32>
    tpu.vector_store %arg18[%c0_123, %c0_124], %453 {strides = array<i32>} : memref<64x128xf32, #tpu.memory_space<vmem>>, vector<64x128xf32>,
    %c1 = arith.constant 1 : index
    %c0_125 = arith.constant 0 : index
    %c0_126 = arith.constant 0 : index
    %455 = vector.load %arg3[%c1, %c0_125, %c0_126] : memref<2x8x64xf32, #tpu.memory_space<vmem>>, vector<1x8x64xf32>
    %456 = vector.shape_cast %455 : vector<1x8x64xf32> to vector<8x64xf32>
    %c1_127 = arith.constant 1 : index
    %c0_128 = arith.constant 0 : index
    %c0_129 = arith.constant 0 : index
    %457 = vector.load %arg2[%c1_127, %c0_128, %c0_129] : memref<2x8x64xf32, #tpu.memory_space<vmem>>, vector<1x8x64xf32>
    %458 = vector.shape_cast %457 : vector<1x8x64xf32> to vector<8x64xf32>
    %459 = vector.extract_strided_slice %456 {offsets = [0, 0], sizes = [8, 32], strides = [1, 1]} : vector<8x64xf32> to vector<8x32xf32>
    %460 = vector.extract_strided_slice %456 {offsets = [0, 32], sizes = [8, 32], strides = [1, 1]} : vector<8x64xf32> to vector<8x32xf32>
    %c0_i32_130 = arith.constant 0 : i32
    %c8_i32_131 = arith.constant 8 : i32
    %461 = arith.muli %c0_i32_130, %c8_i32_131 : i32
    %462 = tpu.assume_multiple %461, 8 : i32
    %c7_i32_132 = arith.constant 7 : i32
    %463 = arith.subi %c7_i32_132, %c0_i32_130 : i32
    %c8_i32_133 = arith.constant 8 : i32
    %464 = arith.muli %463, %c8_i32_133 : i32
    %465 = tpu.assume_multiple %464, 8 : i32
    %cst_134 = arith.constant dense<0.000000e+00> : vector<8x256xf32>
    %466 = tpu.matmul %458, %445, %cst_134 {dimension_numbers = #tpu.dot_dimension_numbers<[1], [0], [0], [1], [0, 0, 1, 1], [], []>} : vector<8x64xf32>, vector<64x256xf32>, vector<8x256xf32> -> vector<8x256xf32>
    %467 = vector.extract_strided_slice %466 {offsets = [0, 0], sizes = [8, 128], strides = [1, 1]} : vector<8x256xf32> to vector<8x128xf32>
    %468 = arith.index_cast %462 : i32 to index
    %c0_135 = arith.constant 0 : index
    %469 = vector.load %arg17[%468, %c0_135] : memref<64x128xf32, #tpu.memory_space<vmem>>, vector<8x128xf32>
    %470 = arith.addf %467, %469 : vector<8x128xf32>
    %471 = vector.extract_strided_slice %466 {offsets = [0, 128], sizes = [8, 128], strides = [1, 1]} : vector<8x256xf32> to vector<8x128xf32>
    %472 = arith.index_cast %465 : i32 to index
    %c0_136 = arith.constant 0 : index
    %473 = vector.load %arg18[%472, %c0_136] : memref<64x128xf32, #tpu.memory_space<vmem>>, vector<8x128xf32>
    %474 = arith.addf %471, %473 : vector<8x128xf32>
    %475 = arith.negf %470 : vector<8x128xf32>
    %476 = math.exp %475 : vector<8x128xf32>
    %cst_137 = arith.constant 1.000000e+00 : f32
    %477 = vector.broadcast %cst_137 : f32 to vector<8x128xf32>
    %478 = arith.addf %477, %476 : vector<8x128xf32>
    %479 = arith.divf %477, %478 : vector<8x128xf32>
    %480 = math.tanh %470 : vector<8x128xf32>
    %481 = arith.select %5, %480, %479 : vector<8x128xi1>, vector<8x128xf32>
    %482 = vector.extract_strided_slice %481 {offsets = [0, 0], sizes = [8, 32], strides = [1, 1]} : vector<8x128xf32> to vector<8x32xf32>
    %483 = vector.extract_strided_slice %481 {offsets = [0, 32], sizes = [8, 32], strides = [1, 1]} : vector<8x128xf32> to vector<8x32xf32>
    %484 = vector.extract_strided_slice %481 {offsets = [0, 64], sizes = [8, 32], strides = [1, 1]} : vector<8x128xf32> to vector<8x32xf32>
    %485 = vector.extract_strided_slice %481 {offsets = [0, 96], sizes = [8, 32], strides = [1, 1]} : vector<8x128xf32> to vector<8x32xf32>
    %486 = arith.mulf %483, %459 : vector<8x32xf32>
    %487 = arith.mulf %482, %484 : vector<8x32xf32>
    %488 = arith.addf %486, %487 : vector<8x32xf32>
    %489 = math.tanh %488 : vector<8x32xf32>
    %490 = arith.mulf %485, %489 : vector<8x32xf32>
    %491 = arith.negf %474 : vector<8x128xf32>
    %492 = math.exp %491 : vector<8x128xf32>
    %cst_138 = arith.constant 1.000000e+00 : f32
    %493 = vector.broadcast %cst_138 : f32 to vector<8x128xf32>
    %494 = arith.addf %493, %492 : vector<8x128xf32>
    %495 = arith.divf %493, %494 : vector<8x128xf32>
    %496 = math.tanh %474 : vector<8x128xf32>
    %497 = arith.select %5, %496, %495 : vector<8x128xi1>, vector<8x128xf32>
    %498 = vector.extract_strided_slice %497 {offsets = [0, 0], sizes = [8, 32], strides = [1, 1]} : vector<8x128xf32> to vector<8x32xf32>
    %499 = vector.extract_strided_slice %497 {offsets = [0, 32], sizes = [8, 32], strides = [1, 1]} : vector<8x128xf32> to vector<8x32xf32>
    %500 = vector.extract_strided_slice %497 {offsets = [0, 64], sizes = [8, 32], strides = [1, 1]} : vector<8x128xf32> to vector<8x32xf32>
    %501 = vector.extract_strided_slice %497 {offsets = [0, 96], sizes = [8, 32], strides = [1, 1]} : vector<8x128xf32> to vector<8x32xf32>
    %502 = arith.mulf %499, %460 : vector<8x32xf32>
    %503 = arith.mulf %498, %500 : vector<8x32xf32>
    %504 = arith.addf %502, %503 : vector<8x32xf32>
    %505 = math.tanh %504 : vector<8x32xf32>
    %506 = arith.mulf %501, %505 : vector<8x32xf32>
    %507 = arith.index_cast %462 : i32 to index
    %c0_139 = arith.constant 0 : index
    %508 = vector.load %arg14[%507, %c0_139] : memref<64x64xf32, #tpu.memory_space<vmem>>, vector<8x32xf32>
    tpu.vector_store %arg14[%507, %c0_139], %490 {strides = array<i32>} : memref<64x64xf32, #tpu.memory_space<vmem>>, vector<8x32xf32>,
    %509 = arith.index_cast %465 : i32 to index
    %c32_140 = arith.constant 32 : index
    %510 = vector.load %arg14[%509, %c32_140] : memref<64x64xf32, #tpu.memory_space<vmem>>, vector<8x32xf32>
    tpu.vector_store %arg14[%509, %c32_140], %506 {strides = array<i32>} : memref<64x64xf32, #tpu.memory_space<vmem>>, vector<8x32xf32>,
    %511 = tpu.concatenate %490, %506 in 1 : vector<8x32xf32>, vector<8x32xf32> -> vector<8x64xf32>
    %c1_i32_141 = arith.constant 1 : i32
    %c8_i32_142 = arith.constant 8 : i32
    %512 = arith.muli %c1_i32_141, %c8_i32_142 : i32
    %513 = tpu.assume_multiple %512, 8 : i32
    %c7_i32_143 = arith.constant 7 : i32
    %514 = arith.subi %c7_i32_143, %c1_i32_141 : i32
    %c8_i32_144 = arith.constant 8 : i32
    %515 = arith.muli %514, %c8_i32_144 : i32
    %516 = tpu.assume_multiple %515, 8 : i32
    %cst_145 = arith.constant dense<0.000000e+00> : vector<8x256xf32>
    %517 = tpu.matmul %511, %445, %cst_145 {dimension_numbers = #tpu.dot_dimension_numbers<[1], [0], [0], [1], [0, 0, 1, 1], [], []>} : vector<8x64xf32>, vector<64x256xf32>, vector<8x256xf32> -> vector<8x256xf32>
    %518 = vector.extract_strided_slice %517 {offsets = [0, 0], sizes = [8, 128], strides = [1, 1]} : vector<8x256xf32> to vector<8x128xf32>
    %519 = arith.index_cast %513 : i32 to index
    %c0_146 = arith.constant 0 : index
    %520 = vector.load %arg17[%519, %c0_146] : memref<64x128xf32, #tpu.memory_space<vmem>>, vector<8x128xf32>
    %521 = arith.addf %518, %520 : vector<8x128xf32>
    %522 = vector.extract_strided_slice %517 {offsets = [0, 128], sizes = [8, 128], strides = [1, 1]} : vector<8x256xf32> to vector<8x128xf32>
    %523 = arith.index_cast %516 : i32 to index
    %c0_147 = arith.constant 0 : index
    %524 = vector.load %arg18[%523, %c0_147] : memref<64x128xf32, #tpu.memory_space<vmem>>, vector<8x128xf32>
    %525 = arith.addf %522, %524 : vector<8x128xf32>
    %526 = arith.negf %521 : vector<8x128xf32>
    %527 = math.exp %526 : vector<8x128xf32>
    %cst_148 = arith.constant 1.000000e+00 : f32
    %528 = vector.broadcast %cst_148 : f32 to vector<8x128xf32>
    %529 = arith.addf %528, %527 : vector<8x128xf32>
    %530 = arith.divf %528, %529 : vector<8x128xf32>
    %531 = math.tanh %521 : vector<8x128xf32>
    %532 = arith.select %5, %531, %530 : vector<8x128xi1>, vector<8x128xf32>
    %533 = vector.extract_strided_slice %532 {offsets = [0, 0], sizes = [8, 32], strides = [1, 1]} : vector<8x128xf32> to vector<8x32xf32>
    %534 = vector.extract_strided_slice %532 {offsets = [0, 32], sizes = [8, 32], strides = [1, 1]} : vector<8x128xf32> to vector<8x32xf32>
    %535 = vector.extract_strided_slice %532 {offsets = [0, 64], sizes = [8, 32], strides = [1, 1]} : vector<8x128xf32> to vector<8x32xf32>
    %536 = vector.extract_strided_slice %532 {offsets = [0, 96], sizes = [8, 32], strides = [1, 1]} : vector<8x128xf32> to vector<8x32xf32>
    %537 = arith.mulf %534, %488 : vector<8x32xf32>
    %538 = arith.mulf %533, %535 : vector<8x32xf32>
    %539 = arith.addf %537, %538 : vector<8x32xf32>
    %540 = math.tanh %539 : vector<8x32xf32>
    %541 = arith.mulf %536, %540 : vector<8x32xf32>
    %542 = arith.negf %525 : vector<8x128xf32>
    %543 = math.exp %542 : vector<8x128xf32>
    %cst_149 = arith.constant 1.000000e+00 : f32
    %544 = vector.broadcast %cst_149 : f32 to vector<8x128xf32>
    %545 = arith.addf %544, %543 : vector<8x128xf32>
    %546 = arith.divf %544, %545 : vector<8x128xf32>
    %547 = math.tanh %525 : vector<8x128xf32>
    %548 = arith.select %5, %547, %546 : vector<8x128xi1>, vector<8x128xf32>
    %549 = vector.extract_strided_slice %548 {offsets = [0, 0], sizes = [8, 32], strides = [1, 1]} : vector<8x128xf32> to vector<8x32xf32>
    %550 = vector.extract_strided_slice %548 {offsets = [0, 32], sizes = [8, 32], strides = [1, 1]} : vector<8x128xf32> to vector<8x32xf32>
    %551 = vector.extract_strided_slice %548 {offsets = [0, 64], sizes = [8, 32], strides = [1, 1]} : vector<8x128xf32> to vector<8x32xf32>
    %552 = vector.extract_strided_slice %548 {offsets = [0, 96], sizes = [8, 32], strides = [1, 1]} : vector<8x128xf32> to vector<8x32xf32>
    %553 = arith.mulf %550, %504 : vector<8x32xf32>
    %554 = arith.mulf %549, %551 : vector<8x32xf32>
    %555 = arith.addf %553, %554 : vector<8x32xf32>
    %556 = math.tanh %555 : vector<8x32xf32>
    %557 = arith.mulf %552, %556 : vector<8x32xf32>
    %558 = arith.index_cast %513 : i32 to index
    %c0_150 = arith.constant 0 : index
    %559 = vector.load %arg14[%558, %c0_150] : memref<64x64xf32, #tpu.memory_space<vmem>>, vector<8x32xf32>
    tpu.vector_store %arg14[%558, %c0_150], %541 {strides = array<i32>} : memref<64x64xf32, #tpu.memory_space<vmem>>, vector<8x32xf32>,
    %560 = arith.index_cast %516 : i32 to index
    %c32_151 = arith.constant 32 : index
    %561 = vector.load %arg14[%560, %c32_151] : memref<64x64xf32, #tpu.memory_space<vmem>>, vector<8x32xf32>
    tpu.vector_store %arg14[%560, %c32_151], %557 {strides = array<i32>} : memref<64x64xf32, #tpu.memory_space<vmem>>, vector<8x32xf32>,
    %562 = tpu.concatenate %541, %557 in 1 : vector<8x32xf32>, vector<8x32xf32> -> vector<8x64xf32>
    %c2_i32_152 = arith.constant 2 : i32
    %c8_i32_153 = arith.constant 8 : i32
    %563 = arith.muli %c2_i32_152, %c8_i32_153 : i32
    %564 = tpu.assume_multiple %563, 8 : i32
    %c7_i32_154 = arith.constant 7 : i32
    %565 = arith.subi %c7_i32_154, %c2_i32_152 : i32
    %c8_i32_155 = arith.constant 8 : i32
    %566 = arith.muli %565, %c8_i32_155 : i32
    %567 = tpu.assume_multiple %566, 8 : i32
    %cst_156 = arith.constant dense<0.000000e+00> : vector<8x256xf32>
    %568 = tpu.matmul %562, %445, %cst_156 {dimension_numbers = #tpu.dot_dimension_numbers<[1], [0], [0], [1], [0, 0, 1, 1], [], []>} : vector<8x64xf32>, vector<64x256xf32>, vector<8x256xf32> -> vector<8x256xf32>
    %569 = vector.extract_strided_slice %568 {offsets = [0, 0], sizes = [8, 128], strides = [1, 1]} : vector<8x256xf32> to vector<8x128xf32>
    %570 = arith.index_cast %564 : i32 to index
    %c0_157 = arith.constant 0 : index
    %571 = vector.load %arg17[%570, %c0_157] : memref<64x128xf32, #tpu.memory_space<vmem>>, vector<8x128xf32>
    %572 = arith.addf %569, %571 : vector<8x128xf32>
    %573 = vector.extract_strided_slice %568 {offsets = [0, 128], sizes = [8, 128], strides = [1, 1]} : vector<8x256xf32> to vector<8x128xf32>
    %574 = arith.index_cast %567 : i32 to index
    %c0_158 = arith.constant 0 : index
    %575 = vector.load %arg18[%574, %c0_158] : memref<64x128xf32, #tpu.memory_space<vmem>>, vector<8x128xf32>
    %576 = arith.addf %573, %575 : vector<8x128xf32>
    %577 = arith.negf %572 : vector<8x128xf32>
    %578 = math.exp %577 : vector<8x128xf32>
    %cst_159 = arith.constant 1.000000e+00 : f32
    %579 = vector.broadcast %cst_159 : f32 to vector<8x128xf32>
    %580 = arith.addf %579, %578 : vector<8x128xf32>
    %581 = arith.divf %579, %580 : vector<8x128xf32>
    %582 = math.tanh %572 : vector<8x128xf32>
    %583 = arith.select %5, %582, %581 : vector<8x128xi1>, vector<8x128xf32>
    %584 = vector.extract_strided_slice %583 {offsets = [0, 0], sizes = [8, 32], strides = [1, 1]} : vector<8x128xf32> to vector<8x32xf32>
    %585 = vector.extract_strided_slice %583 {offsets = [0, 32], sizes = [8, 32], strides = [1, 1]} : vector<8x128xf32> to vector<8x32xf32>
    %586 = vector.extract_strided_slice %583 {offsets = [0, 64], sizes = [8, 32], strides = [1, 1]} : vector<8x128xf32> to vector<8x32xf32>
    %587 = vector.extract_strided_slice %583 {offsets = [0, 96], sizes = [8, 32], strides = [1, 1]} : vector<8x128xf32> to vector<8x32xf32>
    %588 = arith.mulf %585, %539 : vector<8x32xf32>
    %589 = arith.mulf %584, %586 : vector<8x32xf32>
    %590 = arith.addf %588, %589 : vector<8x32xf32>
    %591 = math.tanh %590 : vector<8x32xf32>
    %592 = arith.mulf %587, %591 : vector<8x32xf32>
    %593 = arith.negf %576 : vector<8x128xf32>
    %594 = math.exp %593 : vector<8x128xf32>
    %cst_160 = arith.constant 1.000000e+00 : f32
    %595 = vector.broadcast %cst_160 : f32 to vector<8x128xf32>
    %596 = arith.addf %595, %594 : vector<8x128xf32>
    %597 = arith.divf %595, %596 : vector<8x128xf32>
    %598 = math.tanh %576 : vector<8x128xf32>
    %599 = arith.select %5, %598, %597 : vector<8x128xi1>, vector<8x128xf32>
    %600 = vector.extract_strided_slice %599 {offsets = [0, 0], sizes = [8, 32], strides = [1, 1]} : vector<8x128xf32> to vector<8x32xf32>
    %601 = vector.extract_strided_slice %599 {offsets = [0, 32], sizes = [8, 32], strides = [1, 1]} : vector<8x128xf32> to vector<8x32xf32>
    %602 = vector.extract_strided_slice %599 {offsets = [0, 64], sizes = [8, 32], strides = [1, 1]} : vector<8x128xf32> to vector<8x32xf32>
    %603 = vector.extract_strided_slice %599 {offsets = [0, 96], sizes = [8, 32], strides = [1, 1]} : vector<8x128xf32> to vector<8x32xf32>
    %604 = arith.mulf %601, %555 : vector<8x32xf32>
    %605 = arith.mulf %600, %602 : vector<8x32xf32>
    %606 = arith.addf %604, %605 : vector<8x32xf32>
    %607 = math.tanh %606 : vector<8x32xf32>
    %608 = arith.mulf %603, %607 : vector<8x32xf32>
    %609 = arith.index_cast %564 : i32 to index
    %c0_161 = arith.constant 0 : index
    %610 = vector.load %arg14[%609, %c0_161] : memref<64x64xf32, #tpu.memory_space<vmem>>, vector<8x32xf32>
    tpu.vector_store %arg14[%609, %c0_161], %592 {strides = array<i32>} : memref<64x64xf32, #tpu.memory_space<vmem>>, vector<8x32xf32>,
    %611 = arith.index_cast %567 : i32 to index
    %c32_162 = arith.constant 32 : index
    %612 = vector.load %arg14[%611, %c32_162] : memref<64x64xf32, #tpu.memory_space<vmem>>, vector<8x32xf32>
    tpu.vector_store %arg14[%611, %c32_162], %608 {strides = array<i32>} : memref<64x64xf32, #tpu.memory_space<vmem>>, vector<8x32xf32>,
    %613 = tpu.concatenate %592, %608 in 1 : vector<8x32xf32>, vector<8x32xf32> -> vector<8x64xf32>
    %c3_i32_163 = arith.constant 3 : i32
    %c8_i32_164 = arith.constant 8 : i32
    %614 = arith.muli %c3_i32_163, %c8_i32_164 : i32
    %615 = tpu.assume_multiple %614, 8 : i32
    %c7_i32_165 = arith.constant 7 : i32
    %616 = arith.subi %c7_i32_165, %c3_i32_163 : i32
    %c8_i32_166 = arith.constant 8 : i32
    %617 = arith.muli %616, %c8_i32_166 : i32
    %618 = tpu.assume_multiple %617, 8 : i32
    %cst_167 = arith.constant dense<0.000000e+00> : vector<8x256xf32>
    %619 = tpu.matmul %613, %445, %cst_167 {dimension_numbers = #tpu.dot_dimension_numbers<[1], [0], [0], [1], [0, 0, 1, 1], [], []>} : vector<8x64xf32>, vector<64x256xf32>, vector<8x256xf32> -> vector<8x256xf32>
    %620 = vector.extract_strided_slice %619 {offsets = [0, 0], sizes = [8, 128], strides = [1, 1]} : vector<8x256xf32> to vector<8x128xf32>
    %621 = arith.index_cast %615 : i32 to index
    %c0_168 = arith.constant 0 : index
    %622 = vector.load %arg17[%621, %c0_168] : memref<64x128xf32, #tpu.memory_space<vmem>>, vector<8x128xf32>
    %623 = arith.addf %620, %622 : vector<8x128xf32>
    %624 = vector.extract_strided_slice %619 {offsets = [0, 128], sizes = [8, 128], strides = [1, 1]} : vector<8x256xf32> to vector<8x128xf32>
    %625 = arith.index_cast %618 : i32 to index
    %c0_169 = arith.constant 0 : index
    %626 = vector.load %arg18[%625, %c0_169] : memref<64x128xf32, #tpu.memory_space<vmem>>, vector<8x128xf32>
    %627 = arith.addf %624, %626 : vector<8x128xf32>
    %628 = arith.negf %623 : vector<8x128xf32>
    %629 = math.exp %628 : vector<8x128xf32>
    %cst_170 = arith.constant 1.000000e+00 : f32
    %630 = vector.broadcast %cst_170 : f32 to vector<8x128xf32>
    %631 = arith.addf %630, %629 : vector<8x128xf32>
    %632 = arith.divf %630, %631 : vector<8x128xf32>
    %633 = math.tanh %623 : vector<8x128xf32>
    %634 = arith.select %5, %633, %632 : vector<8x128xi1>, vector<8x128xf32>
    %635 = vector.extract_strided_slice %634 {offsets = [0, 0], sizes = [8, 32], strides = [1, 1]} : vector<8x128xf32> to vector<8x32xf32>
    %636 = vector.extract_strided_slice %634 {offsets = [0, 32], sizes = [8, 32], strides = [1, 1]} : vector<8x128xf32> to vector<8x32xf32>
    %637 = vector.extract_strided_slice %634 {offsets = [0, 64], sizes = [8, 32], strides = [1, 1]} : vector<8x128xf32> to vector<8x32xf32>
    %638 = vector.extract_strided_slice %634 {offsets = [0, 96], sizes = [8, 32], strides = [1, 1]} : vector<8x128xf32> to vector<8x32xf32>
    %639 = arith.mulf %636, %590 : vector<8x32xf32>
    %640 = arith.mulf %635, %637 : vector<8x32xf32>
    %641 = arith.addf %639, %640 : vector<8x32xf32>
    %642 = math.tanh %641 : vector<8x32xf32>
    %643 = arith.mulf %638, %642 : vector<8x32xf32>
    %644 = arith.negf %627 : vector<8x128xf32>
    %645 = math.exp %644 : vector<8x128xf32>
    %cst_171 = arith.constant 1.000000e+00 : f32
    %646 = vector.broadcast %cst_171 : f32 to vector<8x128xf32>
    %647 = arith.addf %646, %645 : vector<8x128xf32>
    %648 = arith.divf %646, %647 : vector<8x128xf32>
    %649 = math.tanh %627 : vector<8x128xf32>
    %650 = arith.select %5, %649, %648 : vector<8x128xi1>, vector<8x128xf32>
    %651 = vector.extract_strided_slice %650 {offsets = [0, 0], sizes = [8, 32], strides = [1, 1]} : vector<8x128xf32> to vector<8x32xf32>
    %652 = vector.extract_strided_slice %650 {offsets = [0, 32], sizes = [8, 32], strides = [1, 1]} : vector<8x128xf32> to vector<8x32xf32>
    %653 = vector.extract_strided_slice %650 {offsets = [0, 64], sizes = [8, 32], strides = [1, 1]} : vector<8x128xf32> to vector<8x32xf32>
    %654 = vector.extract_strided_slice %650 {offsets = [0, 96], sizes = [8, 32], strides = [1, 1]} : vector<8x128xf32> to vector<8x32xf32>
    %655 = arith.mulf %652, %606 : vector<8x32xf32>
    %656 = arith.mulf %651, %653 : vector<8x32xf32>
    %657 = arith.addf %655, %656 : vector<8x32xf32>
    %658 = math.tanh %657 : vector<8x32xf32>
    %659 = arith.mulf %654, %658 : vector<8x32xf32>
    %660 = arith.index_cast %615 : i32 to index
    %c0_172 = arith.constant 0 : index
    %661 = vector.load %arg14[%660, %c0_172] : memref<64x64xf32, #tpu.memory_space<vmem>>, vector<8x32xf32>
    tpu.vector_store %arg14[%660, %c0_172], %643 {strides = array<i32>} : memref<64x64xf32, #tpu.memory_space<vmem>>, vector<8x32xf32>,
    %662 = arith.index_cast %618 : i32 to index
    %c32_173 = arith.constant 32 : index
    %663 = vector.load %arg14[%662, %c32_173] : memref<64x64xf32, #tpu.memory_space<vmem>>, vector<8x32xf32>
    tpu.vector_store %arg14[%662, %c32_173], %659 {strides = array<i32>} : memref<64x64xf32, #tpu.memory_space<vmem>>, vector<8x32xf32>,
    %664 = tpu.concatenate %643, %659 in 1 : vector<8x32xf32>, vector<8x32xf32> -> vector<8x64xf32>
    %c4_i32_174 = arith.constant 4 : i32
    %c8_i32_175 = arith.constant 8 : i32
    %665 = arith.muli %c4_i32_174, %c8_i32_175 : i32
    %666 = tpu.assume_multiple %665, 8 : i32
    %c7_i32_176 = arith.constant 7 : i32
    %667 = arith.subi %c7_i32_176, %c4_i32_174 : i32
    %c8_i32_177 = arith.constant 8 : i32
    %668 = arith.muli %667, %c8_i32_177 : i32
    %669 = tpu.assume_multiple %668, 8 : i32
    %cst_178 = arith.constant dense<0.000000e+00> : vector<8x256xf32>
    %670 = tpu.matmul %664, %445, %cst_178 {dimension_numbers = #tpu.dot_dimension_numbers<[1], [0], [0], [1], [0, 0, 1, 1], [], []>} : vector<8x64xf32>, vector<64x256xf32>, vector<8x256xf32> -> vector<8x256xf32>
    %671 = vector.extract_strided_slice %670 {offsets = [0, 0], sizes = [8, 128], strides = [1, 1]} : vector<8x256xf32> to vector<8x128xf32>
    %672 = arith.index_cast %666 : i32 to index
    %c0_179 = arith.constant 0 : index
    %673 = vector.load %arg17[%672, %c0_179] : memref<64x128xf32, #tpu.memory_space<vmem>>, vector<8x128xf32>
    %674 = arith.addf %671, %673 : vector<8x128xf32>
    %675 = vector.extract_strided_slice %670 {offsets = [0, 128], sizes = [8, 128], strides = [1, 1]} : vector<8x256xf32> to vector<8x128xf32>
    %676 = arith.index_cast %669 : i32 to index
    %c0_180 = arith.constant 0 : index
    %677 = vector.load %arg18[%676, %c0_180] : memref<64x128xf32, #tpu.memory_space<vmem>>, vector<8x128xf32>
    %678 = arith.addf %675, %677 : vector<8x128xf32>
    %679 = arith.negf %674 : vector<8x128xf32>
    %680 = math.exp %679 : vector<8x128xf32>
    %cst_181 = arith.constant 1.000000e+00 : f32
    %681 = vector.broadcast %cst_181 : f32 to vector<8x128xf32>
    %682 = arith.addf %681, %680 : vector<8x128xf32>
    %683 = arith.divf %681, %682 : vector<8x128xf32>
    %684 = math.tanh %674 : vector<8x128xf32>
    %685 = arith.select %5, %684, %683 : vector<8x128xi1>, vector<8x128xf32>
    %686 = vector.extract_strided_slice %685 {offsets = [0, 0], sizes = [8, 32], strides = [1, 1]} : vector<8x128xf32> to vector<8x32xf32>
    %687 = vector.extract_strided_slice %685 {offsets = [0, 32], sizes = [8, 32], strides = [1, 1]} : vector<8x128xf32> to vector<8x32xf32>
    %688 = vector.extract_strided_slice %685 {offsets = [0, 64], sizes = [8, 32], strides = [1, 1]} : vector<8x128xf32> to vector<8x32xf32>
    %689 = vector.extract_strided_slice %685 {offsets = [0, 96], sizes = [8, 32], strides = [1, 1]} : vector<8x128xf32> to vector<8x32xf32>
    %690 = arith.mulf %687, %641 : vector<8x32xf32>
    %691 = arith.mulf %686, %688 : vector<8x32xf32>
    %692 = arith.addf %690, %691 : vector<8x32xf32>
    %693 = math.tanh %692 : vector<8x32xf32>
    %694 = arith.mulf %689, %693 : vector<8x32xf32>
    %695 = arith.negf %678 : vector<8x128xf32>
    %696 = math.exp %695 : vector<8x128xf32>
    %cst_182 = arith.constant 1.000000e+00 : f32
    %697 = vector.broadcast %cst_182 : f32 to vector<8x128xf32>
    %698 = arith.addf %697, %696 : vector<8x128xf32>
    %699 = arith.divf %697, %698 : vector<8x128xf32>
    %700 = math.tanh %678 : vector<8x128xf32>
    %701 = arith.select %5, %700, %699 : vector<8x128xi1>, vector<8x128xf32>
    %702 = vector.extract_strided_slice %701 {offsets = [0, 0], sizes = [8, 32], strides = [1, 1]} : vector<8x128xf32> to vector<8x32xf32>
    %703 = vector.extract_strided_slice %701 {offsets = [0, 32], sizes = [8, 32], strides = [1, 1]} : vector<8x128xf32> to vector<8x32xf32>
    %704 = vector.extract_strided_slice %701 {offsets = [0, 64], sizes = [8, 32], strides = [1, 1]} : vector<8x128xf32> to vector<8x32xf32>
    %705 = vector.extract_strided_slice %701 {offsets = [0, 96], sizes = [8, 32], strides = [1, 1]} : vector<8x128xf32> to vector<8x32xf32>
    %706 = arith.mulf %703, %657 : vector<8x32xf32>
    %707 = arith.mulf %702, %704 : vector<8x32xf32>
    %708 = arith.addf %706, %707 : vector<8x32xf32>
    %709 = math.tanh %708 : vector<8x32xf32>
    %710 = arith.mulf %705, %709 : vector<8x32xf32>
    %711 = arith.index_cast %666 : i32 to index
    %c0_183 = arith.constant 0 : index
    %712 = vector.load %arg14[%711, %c0_183] : memref<64x64xf32, #tpu.memory_space<vmem>>, vector<8x32xf32>
    tpu.vector_store %arg14[%711, %c0_183], %694 {strides = array<i32>} : memref<64x64xf32, #tpu.memory_space<vmem>>, vector<8x32xf32>,
    %713 = arith.index_cast %669 : i32 to index
    %c32_184 = arith.constant 32 : index
    %714 = vector.load %arg14[%713, %c32_184] : memref<64x64xf32, #tpu.memory_space<vmem>>, vector<8x32xf32>
    tpu.vector_store %arg14[%713, %c32_184], %710 {strides = array<i32>} : memref<64x64xf32, #tpu.memory_space<vmem>>, vector<8x32xf32>,
    %715 = tpu.concatenate %694, %710 in 1 : vector<8x32xf32>, vector<8x32xf32> -> vector<8x64xf32>
    %c5_i32_185 = arith.constant 5 : i32
    %c8_i32_186 = arith.constant 8 : i32
    %716 = arith.muli %c5_i32_185, %c8_i32_186 : i32
    %717 = tpu.assume_multiple %716, 8 : i32
    %c7_i32_187 = arith.constant 7 : i32
    %718 = arith.subi %c7_i32_187, %c5_i32_185 : i32
    %c8_i32_188 = arith.constant 8 : i32
    %719 = arith.muli %718, %c8_i32_188 : i32
    %720 = tpu.assume_multiple %719, 8 : i32
    %cst_189 = arith.constant dense<0.000000e+00> : vector<8x256xf32>
    %721 = tpu.matmul %715, %445, %cst_189 {dimension_numbers = #tpu.dot_dimension_numbers<[1], [0], [0], [1], [0, 0, 1, 1], [], []>} : vector<8x64xf32>, vector<64x256xf32>, vector<8x256xf32> -> vector<8x256xf32>
    %722 = vector.extract_strided_slice %721 {offsets = [0, 0], sizes = [8, 128], strides = [1, 1]} : vector<8x256xf32> to vector<8x128xf32>
    %723 = arith.index_cast %717 : i32 to index
    %c0_190 = arith.constant 0 : index
    %724 = vector.load %arg17[%723, %c0_190] : memref<64x128xf32, #tpu.memory_space<vmem>>, vector<8x128xf32>
    %725 = arith.addf %722, %724 : vector<8x128xf32>
    %726 = vector.extract_strided_slice %721 {offsets = [0, 128], sizes = [8, 128], strides = [1, 1]} : vector<8x256xf32> to vector<8x128xf32>
    %727 = arith.index_cast %720 : i32 to index
    %c0_191 = arith.constant 0 : index
    %728 = vector.load %arg18[%727, %c0_191] : memref<64x128xf32, #tpu.memory_space<vmem>>, vector<8x128xf32>
    %729 = arith.addf %726, %728 : vector<8x128xf32>
    %730 = arith.negf %725 : vector<8x128xf32>
    %731 = math.exp %730 : vector<8x128xf32>
    %cst_192 = arith.constant 1.000000e+00 : f32
    %732 = vector.broadcast %cst_192 : f32 to vector<8x128xf32>
    %733 = arith.addf %732, %731 : vector<8x128xf32>
    %734 = arith.divf %732, %733 : vector<8x128xf32>
    %735 = math.tanh %725 : vector<8x128xf32>
    %736 = arith.select %5, %735, %734 : vector<8x128xi1>, vector<8x128xf32>
    %737 = vector.extract_strided_slice %736 {offsets = [0, 0], sizes = [8, 32], strides = [1, 1]} : vector<8x128xf32> to vector<8x32xf32>
    %738 = vector.extract_strided_slice %736 {offsets = [0, 32], sizes = [8, 32], strides = [1, 1]} : vector<8x128xf32> to vector<8x32xf32>
    %739 = vector.extract_strided_slice %736 {offsets = [0, 64], sizes = [8, 32], strides = [1, 1]} : vector<8x128xf32> to vector<8x32xf32>
    %740 = vector.extract_strided_slice %736 {offsets = [0, 96], sizes = [8, 32], strides = [1, 1]} : vector<8x128xf32> to vector<8x32xf32>
    %741 = arith.mulf %738, %692 : vector<8x32xf32>
    %742 = arith.mulf %737, %739 : vector<8x32xf32>
    %743 = arith.addf %741, %742 : vector<8x32xf32>
    %744 = math.tanh %743 : vector<8x32xf32>
    %745 = arith.mulf %740, %744 : vector<8x32xf32>
    %746 = arith.negf %729 : vector<8x128xf32>
    %747 = math.exp %746 : vector<8x128xf32>
    %cst_193 = arith.constant 1.000000e+00 : f32
    %748 = vector.broadcast %cst_193 : f32 to vector<8x128xf32>
    %749 = arith.addf %748, %747 : vector<8x128xf32>
    %750 = arith.divf %748, %749 : vector<8x128xf32>
    %751 = math.tanh %729 : vector<8x128xf32>
    %752 = arith.select %5, %751, %750 : vector<8x128xi1>, vector<8x128xf32>
    %753 = vector.extract_strided_slice %752 {offsets = [0, 0], sizes = [8, 32], strides = [1, 1]} : vector<8x128xf32> to vector<8x32xf32>
    %754 = vector.extract_strided_slice %752 {offsets = [0, 32], sizes = [8, 32], strides = [1, 1]} : vector<8x128xf32> to vector<8x32xf32>
    %755 = vector.extract_strided_slice %752 {offsets = [0, 64], sizes = [8, 32], strides = [1, 1]} : vector<8x128xf32> to vector<8x32xf32>
    %756 = vector.extract_strided_slice %752 {offsets = [0, 96], sizes = [8, 32], strides = [1, 1]} : vector<8x128xf32> to vector<8x32xf32>
    %757 = arith.mulf %754, %708 : vector<8x32xf32>
    %758 = arith.mulf %753, %755 : vector<8x32xf32>
    %759 = arith.addf %757, %758 : vector<8x32xf32>
    %760 = math.tanh %759 : vector<8x32xf32>
    %761 = arith.mulf %756, %760 : vector<8x32xf32>
    %762 = arith.index_cast %717 : i32 to index
    %c0_194 = arith.constant 0 : index
    %763 = vector.load %arg14[%762, %c0_194] : memref<64x64xf32, #tpu.memory_space<vmem>>, vector<8x32xf32>
    tpu.vector_store %arg14[%762, %c0_194], %745 {strides = array<i32>} : memref<64x64xf32, #tpu.memory_space<vmem>>, vector<8x32xf32>,
    %764 = arith.index_cast %720 : i32 to index
    %c32_195 = arith.constant 32 : index
    %765 = vector.load %arg14[%764, %c32_195] : memref<64x64xf32, #tpu.memory_space<vmem>>, vector<8x32xf32>
    tpu.vector_store %arg14[%764, %c32_195], %761 {strides = array<i32>} : memref<64x64xf32, #tpu.memory_space<vmem>>, vector<8x32xf32>,
    %766 = tpu.concatenate %745, %761 in 1 : vector<8x32xf32>, vector<8x32xf32> -> vector<8x64xf32>
    %c6_i32_196 = arith.constant 6 : i32
    %c8_i32_197 = arith.constant 8 : i32
    %767 = arith.muli %c6_i32_196, %c8_i32_197 : i32
    %768 = tpu.assume_multiple %767, 8 : i32
    %c7_i32_198 = arith.constant 7 : i32
    %769 = arith.subi %c7_i32_198, %c6_i32_196 : i32
    %c8_i32_199 = arith.constant 8 : i32
    %770 = arith.muli %769, %c8_i32_199 : i32
    %771 = tpu.assume_multiple %770, 8 : i32
    %cst_200 = arith.constant dense<0.000000e+00> : vector<8x256xf32>
    %772 = tpu.matmul %766, %445, %cst_200 {dimension_numbers = #tpu.dot_dimension_numbers<[1], [0], [0], [1], [0, 0, 1, 1], [], []>} : vector<8x64xf32>, vector<64x256xf32>, vector<8x256xf32> -> vector<8x256xf32>
    %773 = vector.extract_strided_slice %772 {offsets = [0, 0], sizes = [8, 128], strides = [1, 1]} : vector<8x256xf32> to vector<8x128xf32>
    %774 = arith.index_cast %768 : i32 to index
    %c0_201 = arith.constant 0 : index
    %775 = vector.load %arg17[%774, %c0_201] : memref<64x128xf32, #tpu.memory_space<vmem>>, vector<8x128xf32>
    %776 = arith.addf %773, %775 : vector<8x128xf32>
    %777 = vector.extract_strided_slice %772 {offsets = [0, 128], sizes = [8, 128], strides = [1, 1]} : vector<8x256xf32> to vector<8x128xf32>
    %778 = arith.index_cast %771 : i32 to index
    %c0_202 = arith.constant 0 : index
    %779 = vector.load %arg18[%778, %c0_202] : memref<64x128xf32, #tpu.memory_space<vmem>>, vector<8x128xf32>
    %780 = arith.addf %777, %779 : vector<8x128xf32>
    %781 = arith.negf %776 : vector<8x128xf32>
    %782 = math.exp %781 : vector<8x128xf32>
    %cst_203 = arith.constant 1.000000e+00 : f32
    %783 = vector.broadcast %cst_203 : f32 to vector<8x128xf32>
    %784 = arith.addf %783, %782 : vector<8x128xf32>
    %785 = arith.divf %783, %784 : vector<8x128xf32>
    %786 = math.tanh %776 : vector<8x128xf32>
    %787 = arith.select %5, %786, %785 : vector<8x128xi1>, vector<8x128xf32>
    %788 = vector.extract_strided_slice %787 {offsets = [0, 0], sizes = [8, 32], strides = [1, 1]} : vector<8x128xf32> to vector<8x32xf32>
    %789 = vector.extract_strided_slice %787 {offsets = [0, 32], sizes = [8, 32], strides = [1, 1]} : vector<8x128xf32> to vector<8x32xf32>
    %790 = vector.extract_strided_slice %787 {offsets = [0, 64], sizes = [8, 32], strides = [1, 1]} : vector<8x128xf32> to vector<8x32xf32>
    %791 = vector.extract_strided_slice %787 {offsets = [0, 96], sizes = [8, 32], strides = [1, 1]} : vector<8x128xf32> to vector<8x32xf32>
    %792 = arith.mulf %789, %743 : vector<8x32xf32>
    %793 = arith.mulf %788, %790 : vector<8x32xf32>
    %794 = arith.addf %792, %793 : vector<8x32xf32>
    %795 = math.tanh %794 : vector<8x32xf32>
    %796 = arith.mulf %791, %795 : vector<8x32xf32>
    %797 = arith.negf %780 : vector<8x128xf32>
    %798 = math.exp %797 : vector<8x128xf32>
    %cst_204 = arith.constant 1.000000e+00 : f32
    %799 = vector.broadcast %cst_204 : f32 to vector<8x128xf32>
    %800 = arith.addf %799, %798 : vector<8x128xf32>
    %801 = arith.divf %799, %800 : vector<8x128xf32>
    %802 = math.tanh %780 : vector<8x128xf32>
    %803 = arith.select %5, %802, %801 : vector<8x128xi1>, vector<8x128xf32>
    %804 = vector.extract_strided_slice %803 {offsets = [0, 0], sizes = [8, 32], strides = [1, 1]} : vector<8x128xf32> to vector<8x32xf32>
    %805 = vector.extract_strided_slice %803 {offsets = [0, 32], sizes = [8, 32], strides = [1, 1]} : vector<8x128xf32> to vector<8x32xf32>
    %806 = vector.extract_strided_slice %803 {offsets = [0, 64], sizes = [8, 32], strides = [1, 1]} : vector<8x128xf32> to vector<8x32xf32>
    %807 = vector.extract_strided_slice %803 {offsets = [0, 96], sizes = [8, 32], strides = [1, 1]} : vector<8x128xf32> to vector<8x32xf32>
    %808 = arith.mulf %805, %759 : vector<8x32xf32>
    %809 = arith.mulf %804, %806 : vector<8x32xf32>
    %810 = arith.addf %808, %809 : vector<8x32xf32>
    %811 = math.tanh %810 : vector<8x32xf32>
    %812 = arith.mulf %807, %811 : vector<8x32xf32>
    %813 = arith.index_cast %768 : i32 to index
    %c0_205 = arith.constant 0 : index
    %814 = vector.load %arg14[%813, %c0_205] : memref<64x64xf32, #tpu.memory_space<vmem>>, vector<8x32xf32>
    tpu.vector_store %arg14[%813, %c0_205], %796 {strides = array<i32>} : memref<64x64xf32, #tpu.memory_space<vmem>>, vector<8x32xf32>,
    %815 = arith.index_cast %771 : i32 to index
    %c32_206 = arith.constant 32 : index
    %816 = vector.load %arg14[%815, %c32_206] : memref<64x64xf32, #tpu.memory_space<vmem>>, vector<8x32xf32>
    tpu.vector_store %arg14[%815, %c32_206], %812 {strides = array<i32>} : memref<64x64xf32, #tpu.memory_space<vmem>>, vector<8x32xf32>,
    %817 = tpu.concatenate %796, %812 in 1 : vector<8x32xf32>, vector<8x32xf32> -> vector<8x64xf32>
    %c7_i32_207 = arith.constant 7 : i32
    %c8_i32_208 = arith.constant 8 : i32
    %818 = arith.muli %c7_i32_207, %c8_i32_208 : i32
    %819 = tpu.assume_multiple %818, 8 : i32
    %c7_i32_209 = arith.constant 7 : i32
    %820 = arith.subi %c7_i32_209, %c7_i32_207 : i32
    %c8_i32_210 = arith.constant 8 : i32
    %821 = arith.muli %820, %c8_i32_210 : i32
    %822 = tpu.assume_multiple %821, 8 : i32
    %cst_211 = arith.constant dense<0.000000e+00> : vector<8x256xf32>
    %823 = tpu.matmul %817, %445, %cst_211 {dimension_numbers = #tpu.dot_dimension_numbers<[1], [0], [0], [1], [0, 0, 1, 1], [], []>} : vector<8x64xf32>, vector<64x256xf32>, vector<8x256xf32> -> vector<8x256xf32>
    %824 = vector.extract_strided_slice %823 {offsets = [0, 0], sizes = [8, 128], strides = [1, 1]} : vector<8x256xf32> to vector<8x128xf32>
    %825 = arith.index_cast %819 : i32 to index
    %c0_212 = arith.constant 0 : index
    %826 = vector.load %arg17[%825, %c0_212] : memref<64x128xf32, #tpu.memory_space<vmem>>, vector<8x128xf32>
    %827 = arith.addf %824, %826 : vector<8x128xf32>
    %828 = vector.extract_strided_slice %823 {offsets = [0, 128], sizes = [8, 128], strides = [1, 1]} : vector<8x256xf32> to vector<8x128xf32>
    %829 = arith.index_cast %822 : i32 to index
    %c0_213 = arith.constant 0 : index
    %830 = vector.load %arg18[%829, %c0_213] : memref<64x128xf32, #tpu.memory_space<vmem>>, vector<8x128xf32>
    %831 = arith.addf %828, %830 : vector<8x128xf32>
    %832 = arith.negf %827 : vector<8x128xf32>
    %833 = math.exp %832 : vector<8x128xf32>
    %cst_214 = arith.constant 1.000000e+00 : f32
    %834 = vector.broadcast %cst_214 : f32 to vector<8x128xf32>
    %835 = arith.addf %834, %833 : vector<8x128xf32>
    %836 = arith.divf %834, %835 : vector<8x128xf32>
    %837 = math.tanh %827 : vector<8x128xf32>
    %838 = arith.select %5, %837, %836 : vector<8x128xi1>, vector<8x128xf32>
    %839 = vector.extract_strided_slice %838 {offsets = [0, 0], sizes = [8, 32], strides = [1, 1]} : vector<8x128xf32> to vector<8x32xf32>
    %840 = vector.extract_strided_slice %838 {offsets = [0, 32], sizes = [8, 32], strides = [1, 1]} : vector<8x128xf32> to vector<8x32xf32>
    %841 = vector.extract_strided_slice %838 {offsets = [0, 64], sizes = [8, 32], strides = [1, 1]} : vector<8x128xf32> to vector<8x32xf32>
    %842 = vector.extract_strided_slice %838 {offsets = [0, 96], sizes = [8, 32], strides = [1, 1]} : vector<8x128xf32> to vector<8x32xf32>
    %843 = arith.mulf %840, %794 : vector<8x32xf32>
    %844 = arith.mulf %839, %841 : vector<8x32xf32>
    %845 = arith.addf %843, %844 : vector<8x32xf32>
    %846 = math.tanh %845 : vector<8x32xf32>
    %847 = arith.mulf %842, %846 : vector<8x32xf32>
    %848 = arith.negf %831 : vector<8x128xf32>
    %849 = math.exp %848 : vector<8x128xf32>
    %cst_215 = arith.constant 1.000000e+00 : f32
    %850 = vector.broadcast %cst_215 : f32 to vector<8x128xf32>
    %851 = arith.addf %850, %849 : vector<8x128xf32>
    %852 = arith.divf %850, %851 : vector<8x128xf32>
    %853 = math.tanh %831 : vector<8x128xf32>
    %854 = arith.select %5, %853, %852 : vector<8x128xi1>, vector<8x128xf32>
    %855 = vector.extract_strided_slice %854 {offsets = [0, 0], sizes = [8, 32], strides = [1, 1]} : vector<8x128xf32> to vector<8x32xf32>
    %856 = vector.extract_strided_slice %854 {offsets = [0, 32], sizes = [8, 32], strides = [1, 1]} : vector<8x128xf32> to vector<8x32xf32>
    %857 = vector.extract_strided_slice %854 {offsets = [0, 64], sizes = [8, 32], strides = [1, 1]} : vector<8x128xf32> to vector<8x32xf32>
    %858 = vector.extract_strided_slice %854 {offsets = [0, 96], sizes = [8, 32], strides = [1, 1]} : vector<8x128xf32> to vector<8x32xf32>
    %859 = arith.mulf %856, %810 : vector<8x32xf32>
    %860 = arith.mulf %855, %857 : vector<8x32xf32>
    %861 = arith.addf %859, %860 : vector<8x32xf32>
    %862 = math.tanh %861 : vector<8x32xf32>
    %863 = arith.mulf %858, %862 : vector<8x32xf32>
    %864 = arith.index_cast %819 : i32 to index
    %c0_216 = arith.constant 0 : index
    %865 = vector.load %arg14[%864, %c0_216] : memref<64x64xf32, #tpu.memory_space<vmem>>, vector<8x32xf32>
    tpu.vector_store %arg14[%864, %c0_216], %847 {strides = array<i32>} : memref<64x64xf32, #tpu.memory_space<vmem>>, vector<8x32xf32>,
    %866 = arith.index_cast %822 : i32 to index
    %c32_217 = arith.constant 32 : index
    %867 = vector.load %arg14[%866, %c32_217] : memref<64x64xf32, #tpu.memory_space<vmem>>, vector<8x32xf32>
    tpu.vector_store %arg14[%866, %c32_217], %863 {strides = array<i32>} : memref<64x64xf32, #tpu.memory_space<vmem>>, vector<8x32xf32>,
    %868 = tpu.concatenate %847, %863 in 1 : vector<8x32xf32>, vector<8x32xf32> -> vector<8x64xf32>
    %c8_i32_218 = arith.constant 8 : i32
    %c1_219 = arith.constant 1 : index
    %c0_220 = arith.constant 0 : index
    %c0_221 = arith.constant 0 : index
    %869 = vector.load %arg15[%c1_219, %c0_220, %c0_221] : memref<2x8x64xf32, #tpu.memory_space<vmem>>, vector<1x8x64xf32>
    %870 = vector.shape_cast %869 : vector<1x8x64xf32> to vector<8x64xf32>
    %871 = vector.shape_cast %868 : vector<8x64xf32> to vector<1x8x64xf32>
    tpu.vector_store %arg15[%c1_219, %c0_220, %c0_221], %871 {strides = array<i32>} : memref<2x8x64xf32, #tpu.memory_space<vmem>>, vector<1x8x64xf32>,
    %872 = tpu.concatenate %845, %861 in 1 : vector<8x32xf32>, vector<8x32xf32> -> vector<8x64xf32>
    %c1_222 = arith.constant 1 : index
    %c0_223 = arith.constant 0 : index
    %c0_224 = arith.constant 0 : index
    %873 = vector.load %arg16[%c1_222, %c0_223, %c0_224] : memref<2x8x64xf32, #tpu.memory_space<vmem>>, vector<1x8x64xf32>
    %874 = vector.shape_cast %873 : vector<1x8x64xf32> to vector<8x64xf32>
    %875 = vector.shape_cast %872 : vector<8x64xf32> to vector<1x8x64xf32>
    tpu.vector_store %arg16[%c1_222, %c0_223, %c0_224], %875 {strides = array<i32>} : memref<2x8x64xf32, #tpu.memory_space<vmem>>, vector<1x8x64xf32>,
    return
  }
  func.func @transform_0(%arg0: i32) -> (i32, i32) {
    %c0_i32 = arith.constant 0 : i32
    %c0_i32_0 = arith.constant 0 : i32
    %c0_i32_1 = arith.constant 0 : i32
    return %c0_i32, %c0_i32_0 : i32, i32
  }
  func.func @transform_1(%arg0: i32) -> (i32, i32, i32) {
    %c0_i32 = arith.constant 0 : i32
    %c0_i32_0 = arith.constant 0 : i32
    %c0_i32_1 = arith.constant 0 : i32
    %c0_i32_2 = arith.constant 0 : i32
    return %c0_i32, %c0_i32_0, %c0_i32_1 : i32, i32, i32
  }
  func.func @transform_2(%arg0: i32) -> (i32, i32, i32) {
    %c0_i32 = arith.constant 0 : i32
    %c0_i32_0 = arith.constant 0 : i32
    %c0_i32_1 = arith.constant 0 : i32
    %c0_i32_2 = arith.constant 0 : i32
    return %c0_i32, %c0_i32_0, %c0_i32_1 : i32, i32, i32
  }
  func.func @transform_3(%arg0: i32) -> (i32, i32) {
    %c0_i32 = arith.constant 0 : i32
    %c0_i32_0 = arith.constant 0 : i32
    %c0_i32_1 = arith.constant 0 : i32
    return %c0_i32, %c0_i32_0 : i32, i32
  }
  func.func @transform_4(%arg0: i32) -> (i32, i32) {
    %c0_i32 = arith.constant 0 : i32
    %c0_i32_0 = arith.constant 0 : i32
    %c0_i32_1 = arith.constant 0 : i32
    return %c0_i32, %c0_i32_0 : i32, i32
  }
  func.func @transform_5(%arg0: i32) -> (i32, i32) {
    %c0_i32 = arith.constant 0 : i32
    %c0_i32_0 = arith.constant 0 : i32
    %c0_i32_1 = arith.constant 0 : i32
    return %c0_i32, %c0_i32_0 : i32, i32
  }
  func.func @transform_6(%arg0: i32) -> (i32, i32) {
    %c0_i32 = arith.constant 0 : i32
    %c0_i32_0 = arith.constant 0 : i32
    %c0_i32_1 = arith.constant 0 : i32
    return %c0_i32, %c0_i32_0 : i32, i32
  }
  func.func @transform_7(%arg0: i32) -> (i32, i32) {
    %c0_i32 = arith.constant 0 : i32
    %c0_i32_0 = arith.constant 0 : i32
    %c0_i32_1 = arith.constant 0 : i32
    return %c0_i32, %c0_i32_0 : i32, i32
  }
  func.func @transform_8(%arg0: i32) -> (i32, i32) {
    %c0_i32 = arith.constant 0 : i32
    %c0_i32_0 = arith.constant 0 : i32
    %c0_i32_1 = arith.constant 0 : i32
    return %c0_i32, %c0_i32_0 : i32, i32
  }
  func.func @transform_9(%arg0: i32) -> (i32, i32) {
    %c0_i32 = arith.constant 0 : i32
    %c0_i32_0 = arith.constant 0 : i32
    %c0_i32_1 = arith.constant 0 : i32
    return %c0_i32, %c0_i32_0 : i32, i32
  }
  func.func @transform_10(%arg0: i32) -> (i32, i32) {
    %c0_i32 = arith.constant 0 : i32
    %c0_i32_0 = arith.constant 0 : i32
    %c0_i32_1 = arith.constant 0 : i32
    return %c0_i32, %c0_i32_0 : i32, i32
  }
  func.func @transform_11(%arg0: i32) -> (i32, i32) {
    %c0_i32 = arith.constant 0 : i32
    %c0_i32_0 = arith.constant 0 : i32
    %c0_i32_1 = arith.constant 0 : i32
    return %c0_i32, %c0_i32_0 : i32, i32
  }
  func.func @transform_12(%arg0: i32) -> (i32, i32) {
    %c0_i32 = arith.constant 0 : i32
    %c0_i32_0 = arith.constant 0 : i32
    %c0_i32_1 = arith.constant 0 : i32
    return %c0_i32, %c0_i32_0 : i32, i32
  }
  func.func @transform_13(%arg0: i32) -> (i32, i32) {
    %c0_i32 = arith.constant 0 : i32
    %c0_i32_0 = arith.constant 0 : i32
    %c0_i32_1 = arith.constant 0 : i32
    return %c0_i32, %c0_i32_0 : i32, i32
  }
  func.func @transform_14(%arg0: i32) -> (i32, i32, i32) {
    %c0_i32 = arith.constant 0 : i32
    %c0_i32_0 = arith.constant 0 : i32
    %c0_i32_1 = arith.constant 0 : i32
    %c0_i32_2 = arith.constant 0 : i32
    return %c0_i32, %c0_i32_0, %c0_i32_1 : i32, i32, i32
  }
  func.func @transform_15(%arg0: i32) -> (i32, i32, i32) {
    %c0_i32 = arith.constant 0 : i32
    %c0_i32_0 = arith.constant 0 : i32
    %c0_i32_1 = arith.constant 0 : i32
    %c0_i32_2 = arith.constant 0 : i32
    return %c0_i32, %c0_i32_0, %c0_i32_1 : i32, i32, i32
  }
}

</mosaic_0001>

<llo_original>
// kernel: decoder_forward.1
$region0: #{decoder_forward.1}
  #allocation0 [shape = 'u32[]', space=smem, size = 0x4, offset = 0x4, fixed_abs, tag = 'smem constant byte address 0x4 - core index']
  #allocation1 [shape = 'u32[144,128]{1,0:T(1,128)}', space=vmem, size = 0x12000, scoped, tag = 'internal scratch']
  #allocation2 [shape = 'f32[64,128]{1,0:T(8,128)}', space=vmem, size = 0x8000, scoped, tag = 'scratch operand']
  #allocation3 [shape = 'f32[64,128]{1,0:T(8,128)}', space=vmem, size = 0x8000, scoped, tag = 'scratch operand']
  %s0 = inlined_call_operand.vmem [shape: f32[64,32], index: 0, kind: input, shape index: {}]
  %s1 = inlined_call_operand.vmem [shape: f32[2,8,64], index: 1, kind: input, shape index: {}]
  %s2 = inlined_call_operand.vmem [shape: f32[2,8,64], index: 2, kind: input, shape index: {}]
  %s3 = inlined_call_operand.vmem [shape: f32[32,128], index: 3, kind: input, shape index: {}]
  %s4 = inlined_call_operand.vmem [shape: f32[1,128], index: 4, kind: input, shape index: {}]
  %s5 = inlined_call_operand.vmem [shape: f32[32,128], index: 5, kind: input, shape index: {}]
  %s6 = inlined_call_operand.vmem [shape: f32[1,128], index: 6, kind: input, shape index: {}]
  %s7 = inlined_call_operand.vmem [shape: f32[64,256], index: 7, kind: input, shape index: {}]
  %s8 = inlined_call_operand.vmem [shape: f32[64,128], index: 8, kind: input, shape index: {}]
  %s9 = inlined_call_operand.vmem [shape: f32[1,128], index: 9, kind: input, shape index: {}]
  %s10 = inlined_call_operand.vmem [shape: f32[64,128], index: 10, kind: input, shape index: {}]
  %s11 = inlined_call_operand.vmem [shape: f32[1,128], index: 11, kind: input, shape index: {}]
  %s12 = inlined_call_operand.vmem [shape: f32[64,256], index: 12, kind: input, shape index: {}]
  %s13 = inlined_call_operand.vmem [shape: f32[64,64], index: 13, kind: output, shape index: {0}]
  %s14 = inlined_call_operand.vmem [shape: f32[2,8,64], index: 14, kind: output, shape index: {1}]
  %s15 = inlined_call_operand.vmem [shape: f32[2,8,64], index: 15, kind: output, shape index: {2}]
  %16 = xla_tuple %s13, %s14, %s15
  %s17 = sld [smem:[#allocation0]]
  $region78: #{decoder_forward.1} parent=0
    _
  %s19 = ssub.s32 1, %s17
  %s20 = scalar_select 0, %s19, %s17
  // Predicated region
  $region2: #{decoder_forward.1} parent=0 // pred_check
    _
  $region3: #{decoder_forward.1} parent=0 // pred_check_branch
    %22 = sbr.rel (0) target = $region5
  $region4: #{decoder_forward.1} parent=0 // pred_region
    _
  $region5: #{decoder_forward.1} parent=0 // pred_fallthru
    _
  // Predicated region
  $region6: #{decoder_forward.1} parent=0 // pred_check
    _
  $region7: #{decoder_forward.1} parent=0 // pred_check_branch
    %24 = sbr.rel (0) target = $region9
  $region8: #{decoder_forward.1} parent=0 // pred_region
    _
  $region9: #{decoder_forward.1} parent=0 // pred_fallthru
    _
  // Predicated region
  $region10: #{decoder_forward.1} parent=0 // pred_check
    _
  $region11: #{decoder_forward.1} parent=0 // pred_check_branch
    %26 = sbr.rel (0) target = $region13
  $region12: #{decoder_forward.1} parent=0 // pred_region
    _
  $region13: #{decoder_forward.1} parent=0 // pred_fallthru
    _
  // Predicated region
  $region14: #{decoder_forward.1} parent=0 // pred_check
    _
  $region15: #{decoder_forward.1} parent=0 // pred_check_branch
    %28 = sbr.rel (0) target = $region17
  $region16: #{decoder_forward.1} parent=0 // pred_region
    _
  $region17: #{decoder_forward.1} parent=0 // pred_fallthru
    _
  // Predicated region
  $region18: #{decoder_forward.1} parent=0 // pred_check
    _
  $region19: #{decoder_forward.1} parent=0 // pred_check_branch
    %30 = sbr.rel (0) target = $region21
  $region20: #{decoder_forward.1} parent=0 // pred_region
    _
  $region21: #{decoder_forward.1} parent=0 // pred_fallthru
    _
  // Predicated region
  $region22: #{decoder_forward.1} parent=0 // pred_check
    _
  $region23: #{decoder_forward.1} parent=0 // pred_check_branch
    %32 = sbr.rel (0) target = $region25
  $region24: #{decoder_forward.1} parent=0 // pred_region
    _
  $region25: #{decoder_forward.1} parent=0 // pred_fallthru
    _
  // Predicated region
  $region26: #{decoder_forward.1} parent=0 // pred_check
    _
  $region27: #{decoder_forward.1} parent=0 // pred_check_branch
    %34 = sbr.rel (0) target = $region29
  $region28: #{decoder_forward.1} parent=0 // pred_region
    _
  $region29: #{decoder_forward.1} parent=0 // pred_fallthru
    _
  // Predicated region
  $region30: #{decoder_forward.1} parent=0 // pred_check
    _
  $region31: #{decoder_forward.1} parent=0 // pred_check_branch
    %36 = sbr.rel (0) target = $region33
  $region32: #{decoder_forward.1} parent=0 // pred_region
    _
  $region33: #{decoder_forward.1} parent=0 // pred_fallthru
    _
  // Predicated region
  $region34: #{decoder_forward.1} parent=0 // pred_check
    _
  $region35: #{decoder_forward.1} parent=0 // pred_check_branch
    %38 = sbr.rel (0) target = $region37
  $region36: #{decoder_forward.1} parent=0 // pred_region
    _
  $region37: #{decoder_forward.1} parent=0 // pred_fallthru
    _
  // Predicated region
  $region38: #{decoder_forward.1} parent=0 // pred_check
    _
  $region39: #{decoder_forward.1} parent=0 // pred_check_branch
    %40 = sbr.rel (0) target = $region41
  $region40: #{decoder_forward.1} parent=0 // pred_region
    _
  $region41: #{decoder_forward.1} parent=0 // pred_fallthru
    _
  // Predicated region
  $region42: #{decoder_forward.1} parent=0 // pred_check
    _
  $region43: #{decoder_forward.1} parent=0 // pred_check_branch
    %42 = sbr.rel (0) target = $region45
  $region44: #{decoder_forward.1} parent=0 // pred_region
    _
  $region45: #{decoder_forward.1} parent=0 // pred_fallthru
    _
  // Predicated region
  $region46: #{decoder_forward.1} parent=0 // pred_check
    _
  $region47: #{decoder_forward.1} parent=0 // pred_check_branch
    %44 = sbr.rel (0) target = $region49
  $region48: #{decoder_forward.1} parent=0 // pred_region
    _
  $region49: #{decoder_forward.1} parent=0 // pred_fallthru
    _
  // Predicated region
  $region50: #{decoder_forward.1} parent=0 // pred_check
    _
  $region51: #{decoder_forward.1} parent=0 // pred_check_branch
    %46 = sbr.rel (0) target = $region53
  $region52: #{decoder_forward.1} parent=0 // pred_region
    _
  $region53: #{decoder_forward.1} parent=0 // pred_fallthru
    _
  %v47 = vlaneseq
  %v48 = vand.u32 %v47, 127
  %vm49 = vcmp.ge.s32.totalorder %v48, 64
  %vm50 = vcmp.lt.s32.totalorder %v48, 96
  %vm51 = vmand %vm49, %vm50
  %v52 = vld [vmem:[%s3] sm:$0xff]
  %v53 = vld [vmem:[%s3 + $0x8] sm:$0xff]
  %v54 = vld [vmem:[%s3 + $0x10] sm:$0xff]
  %v55 = vld [vmem:[%s3 + $0x18] sm:$0xff]
  %v56 = vld [vmem:[%s4] sm:$0x1]
  %v57 = vld [vmem:[%s5] sm:$0xff]
  %v58 = vld [vmem:[%s5 + $0x8] sm:$0xff]
  %v59 = vld [vmem:[%s5 + $0x10] sm:$0xff]
  %v60 = vld [vmem:[%s5 + $0x18] sm:$0xff]
  %v61 = vld [vmem:[%s6] sm:$0x1]
  %v62 = vld [vmem:[%s7] sm:$0xff]
  %v63 = vld [vmem:[%s7 + $0x8] sm:$0xff]
  %v64 = vld [vmem:[%s7 + $0x10] sm:$0xff]
  %v65 = vld [vmem:[%s7 + $0x18] sm:$0xff]
  %v66 = vld [vmem:[%s7 + $0x20] sm:$0xff]
  %v67 = vld [vmem:[%s7 + $0x28] sm:$0xff]
  %v68 = vld [vmem:[%s7 + $0x30] sm:$0xff]
  %v69 = vld [vmem:[%s7 + $0x38] sm:$0xff]
  %v70 = vld [vmem:[%s7 + $0x40] sm:$0xff]
  %v71 = vld [vmem:[%s7 + $0x48] sm:$0xff]
  %v72 = vld [vmem:[%s7 + $0x50] sm:$0xff]
  %v73 = vld [vmem:[%s7 + $0x58] sm:$0xff]
  %v74 = vld [vmem:[%s7 + $0x60] sm:$0xff]
  %v75 = vld [vmem:[%s7 + $0x68] sm:$0xff]
  %v76 = vld [vmem:[%s7 + $0x70] sm:$0xff]
  %v77 = vld [vmem:[%s7 + $0x78] sm:$0xff]
  %v78 = vld [vmem:[%s0] sm:$0xff]
  %v79 = vld [vmem:[%s0 + $0x8] sm:$0xff]
  %v80 = vld [vmem:[%s0 + $0x10] sm:$0xff]
  %v81 = vld [vmem:[%s0 + $0x18] sm:$0xff]
  %v82 = vld [vmem:[%s0 + $0x20] sm:$0xff]
  %v83 = vld [vmem:[%s0 + $0x28] sm:$0xff]
  %v84 = vld [vmem:[%s0 + $0x30] sm:$0xff]
  %v85 = vld [vmem:[%s0 + $0x38] sm:$0xff]
  %v87 = vlaneseq
  %v88 = vshrl.u32 %v87, 7
  %v89 = vsub.s32 0, %v88
  %v90 = vrot.slane %v56, %v89
  %vm92 = vcmask 261120
  %v94 = vsel %vm92, %v78, 0
  %v97 = vsel %vm92, %v79, 0
  %v100 = vsel %vm92, %v80, 0
  %v103 = vsel %vm92, %v81, 0
  %v106 = vsel %vm92, %v82, 0
  %v109 = vsel %vm92, %v83, 0
  %v112 = vsel %vm92, %v84, 0
  %v115 = vsel %vm92, %v85, 0
  %117 = vmatprep.subr.mxu0 0.0
  %118 = vmatpush1.msra.mxu0 0.0
  %119 = vmatprep.subr.mxu0 0.0
  %120 = vmatpush1.msra.mxu0 0.0
  %121 = vmatprep.subr.mxu0 0.0
  %122 = vmatpush1.msra.mxu0 0.0
  %123 = vmatprep.subr.mxu0 0.0
  %124 = vmatpush1.msra.mxu0 0.0
  %125 = vmatprep.subr.mxu0 0.0
  %126 = vmatpush1.msra.mxu0 0.0
  %127 = vmatprep.subr.mxu0 0.0
  %128 = vmatpush1.msra.mxu0 0.0
  %129 = vmatprep.subr.mxu0 0.0
  %130 = vmatpush1.msra.mxu0 0.0
  %131 = vmatprep.subr.mxu0 0.0
  %132 = vmatpush1.msra.mxu0 0.0
  %133 = vmatprep.subr.mxu0 0.0
  %134 = vmatpush1.msra.mxu0 0.0
  %135 = vmatprep.subr.mxu0 0.0
  %136 = vmatpush1.msra.mxu0 0.0
  %137 = vmatprep.subr.mxu0 0.0
  %138 = vmatpush1.msra.mxu0 0.0
  %139 = vmatprep.subr.mxu0 0.0
  %140 = vmatpush1.msra.mxu0 0.0
  %141 = vmatprep.subr.mxu0 0.0
  %142 = vmatpush1.msra.mxu0 %v55
  %143 = vmatprep.subr.mxu0 0.0
  %144 = vmatpush1.msra.mxu0 %v54
  %145 = vmatprep.subr.mxu0 0.0
  %146 = vmatpush1.msra.mxu0 %v53
  %147 = vmatprep.subr.mxu0 0.0
  %148 = vmatpush1.msra.mxu0 %v52
  %149 = vmatprep.subr.mxu0 0.0
  %150 = vmatpush2.msra.mxu0 0.0
  %151 = vmatprep.subr.mxu0 0.0
  %152 = vmatpush2.msra.mxu0 0.0
  %153 = vmatprep.subr.mxu0 0.0
  %154 = vmatpush2.msra.mxu0 0.0
  %155 = vmatprep.subr.mxu0 0.0
  %156 = vmatpush2.msra.mxu0 0.0
  %157 = vmatprep.subr.mxu0 0.0
  %158 = vmatpush2.msra.mxu0 0.0
  %159 = vmatprep.subr.mxu0 0.0
  %160 = vmatpush2.msra.mxu0 0.0
  %161 = vmatprep.subr.mxu0 0.0
  %162 = vmatpush2.msra.mxu0 0.0
  %163 = vmatprep.subr.mxu0 0.0
  %164 = vmatpush2.msra.mxu0 0.0
  %165 = vmatprep.subr.mxu0 0.0
  %166 = vmatpush2.msra.mxu0 0.0
  %167 = vmatprep.subr.mxu0 0.0
  %168 = vmatpush2.msra.mxu0 0.0
  %169 = vmatprep.subr.mxu0 0.0
  %170 = vmatpush2.msra.mxu0 0.0
  %171 = vmatprep.subr.mxu0 0.0
  %172 = vmatpush2.msra.mxu0 0.0
  %173 = vmatprep.subr.mxu0 0.0
  %174 = vmatpush2.msra.mxu0 0.0
  %175 = vmatprep.subr.mxu0 0.0
  %176 = vmatpush2.msra.mxu0 0.0
  %177 = vmatprep.subr.mxu0 0.0
  %178 = vmatpush2.msra.mxu0 0.0
  %179 = vmatprep.subr.mxu0 0.0
  %180 = vmatpush2.msra.mxu0 0.0
  %181 = vmatprep.mubr.f32.mxu0 0.0
  %182 = vmatmul.mubr.f32.gmra.mxu0 %v94
  %v183 = vpop.f32.mrf.mxu0
  %v184 = vadd.f32 %v90, %v183
  %v185 = vpop.f32.mrf.mxu0
  %186 = vmatprep.mubr.f32.mxu0 0.0
  %187 = vmatmul.mubr.f32.gmra.mxu0 %v97
  %v188 = vpop.f32.mrf.mxu0
  %v189 = vadd.f32 %v90, %v188
  %v190 = vpop.f32.mrf.mxu0
  %191 = vmatprep.mubr.f32.mxu0 0.0
  %192 = vmatmul.mubr.f32.gmra.mxu0 %v100
  %v193 = vpop.f32.mrf.mxu0
  %v194 = vadd.f32 %v90, %v193
  %v195 = vpop.f32.mrf.mxu0
  %196 = vmatprep.mubr.f32.mxu0 0.0
  %197 = vmatmul.mubr.f32.gmra.mxu0 %v103
  %v198 = vpop.f32.mrf.mxu0
  %v199 = vadd.f32 %v90, %v198
  %v200 = vpop.f32.mrf.mxu0
  %201 = vmatprep.mubr.f32.mxu0 0.0
  %202 = vmatmul.mubr.f32.gmra.mxu0 %v106
  %v203 = vpop.f32.mrf.mxu0
  %v204 = vadd.f32 %v90, %v203
  %v205 = vpop.f32.mrf.mxu0
  %206 = vmatprep.mubr.f32.mxu0 0.0
  %207 = vmatmul.mubr.f32.gmra.mxu0 %v109
  %v208 = vpop.f32.mrf.mxu0
  %v209 = vadd.f32 %v90, %v208
  %v210 = vpop.f32.mrf.mxu0
  %211 = vmatprep.mubr.f32.mxu0 0.0
  %212 = vmatmul.mubr.f32.gmra.mxu0 %v112
  %v213 = vpop.f32.mrf.mxu0
  %v214 = vadd.f32 %v90, %v213
  %v215 = vpop.f32.mrf.mxu0
  %216 = vmatprep.mubr.f32.mxu0 0.0
  %217 = vmatmul.mubr.f32.gmra.mxu0 %v115
  %v218 = vpop.f32.mrf.mxu0
  %v219 = vadd.f32 %v90, %v218
  %v220 = vpop.f32.mrf.mxu0
  %221 = vdwg.mxu0
  %222 = vst [vmem:[#allocation2] sm:$0xff] %v184
  %223 = vst [vmem:[#allocation2 + $0x8] sm:$0xff] %v189
  %224 = vst [vmem:[#allocation2 + $0x10] sm:$0xff] %v194
  %225 = vst [vmem:[#allocation2 + $0x18] sm:$0xff] %v199
  %226 = vst [vmem:[#allocation2 + $0x20] sm:$0xff] %v204
  %227 = vst [vmem:[#allocation2 + $0x28] sm:$0xff] %v209
  %228 = vst [vmem:[#allocation2 + $0x30] sm:$0xff] %v214
  %229 = vst [vmem:[#allocation2 + $0x38] sm:$0xff] %v219
  %v231 = vlaneseq
  %v232 = vshrl.u32 %v231, 7
  %v233 = vsub.s32 0, %v232
  %v234 = vrot.slane %v61, %v233
  %236 = vmatprep.subr.mxu0 0.0
  %237 = vmatpush1.msra.mxu0 0.0
  %238 = vmatprep.subr.mxu0 0.0
  %239 = vmatpush1.msra.mxu0 0.0
  %240 = vmatprep.subr.mxu0 0.0
  %241 = vmatpush1.msra.mxu0 0.0
  %242 = vmatprep.subr.mxu0 0.0
  %243 = vmatpush1.msra.mxu0 0.0
  %244 = vmatprep.subr.mxu0 0.0
  %245 = vmatpush1.msra.mxu0 0.0
  %246 = vmatprep.subr.mxu0 0.0
  %247 = vmatpush1.msra.mxu0 0.0
  %248 = vmatprep.subr.mxu0 0.0
  %249 = vmatpush1.msra.mxu0 0.0
  %250 = vmatprep.subr.mxu0 0.0
  %251 = vmatpush1.msra.mxu0 0.0
  %252 = vmatprep.subr.mxu0 0.0
  %253 = vmatpush1.msra.mxu0 0.0
  %254 = vmatprep.subr.mxu0 0.0
  %255 = vmatpush1.msra.mxu0 0.0
  %256 = vmatprep.subr.mxu0 0.0
  %257 = vmatpush1.msra.mxu0 0.0
  %258 = vmatprep.subr.mxu0 0.0
  %259 = vmatpush1.msra.mxu0 0.0
  %260 = vmatprep.subr.mxu0 0.0
  %261 = vmatpush1.msra.mxu0 %v60
  %262 = vmatprep.subr.mxu0 0.0
  %263 = vmatpush1.msra.mxu0 %v59
  %264 = vmatprep.subr.mxu0 0.0
  %265 = vmatpush1.msra.mxu0 %v58
  %266 = vmatprep.subr.mxu0 0.0
  %267 = vmatpush1.msra.mxu0 %v57
  %268 = vmatprep.subr.mxu0 0.0
  %269 = vmatpush2.msra.mxu0 0.0
  %270 = vmatprep.subr.mxu0 0.0
  %271 = vmatpush2.msra.mxu0 0.0
  %272 = vmatprep.subr.mxu0 0.0
  %273 = vmatpush2.msra.mxu0 0.0
  %274 = vmatprep.subr.mxu0 0.0
  %275 = vmatpush2.msra.mxu0 0.0
  %276 = vmatprep.subr.mxu0 0.0
  %277 = vmatpush2.msra.mxu0 0.0
  %278 = vmatprep.subr.mxu0 0.0
  %279 = vmatpush2.msra.mxu0 0.0
  %280 = vmatprep.subr.mxu0 0.0
  %281 = vmatpush2.msra.mxu0 0.0
  %282 = vmatprep.subr.mxu0 0.0
  %283 = vmatpush2.msra.mxu0 0.0
  %284 = vmatprep.subr.mxu0 0.0
  %285 = vmatpush2.msra.mxu0 0.0
  %286 = vmatprep.subr.mxu0 0.0
  %287 = vmatpush2.msra.mxu0 0.0
  %288 = vmatprep.subr.mxu0 0.0
  %289 = vmatpush2.msra.mxu0 0.0
  %290 = vmatprep.subr.mxu0 0.0
  %291 = vmatpush2.msra.mxu0 0.0
  %292 = vmatprep.subr.mxu0 0.0
  %293 = vmatpush2.msra.mxu0 0.0
  %294 = vmatprep.subr.mxu0 0.0
  %295 = vmatpush2.msra.mxu0 0.0
  %296 = vmatprep.subr.mxu0 0.0
  %297 = vmatpush2.msra.mxu0 0.0
  %298 = vmatprep.subr.mxu0 0.0
  %299 = vmatpush2.msra.mxu0 0.0
  %300 = vmatprep.mubr.f32.mxu0 0.0
  %301 = vmatmul.mubr.f32.gmra.mxu0 %v94
  %v302 = vpop.f32.mrf.mxu0
  %v303 = vadd.f32 %v234, %v302
  %v304 = vpop.f32.mrf.mxu0
  %305 = vmatprep.mubr.f32.mxu0 0.0
  %306 = vmatmul.mubr.f32.gmra.mxu0 %v97
  %v307 = vpop.f32.mrf.mxu0
  %v308 = vadd.f32 %v234, %v307
  %v309 = vpop.f32.mrf.mxu0
  %310 = vmatprep.mubr.f32.mxu0 0.0
  %311 = vmatmul.mubr.f32.gmra.mxu0 %v100
  %v312 = vpop.f32.mrf.mxu0
  %v313 = vadd.f32 %v234, %v312
  %v314 = vpop.f32.mrf.mxu0
  %315 = vmatprep.mubr.f32.mxu0 0.0
  %316 = vmatmul.mubr.f32.gmra.mxu0 %v103
  %v317 = vpop.f32.mrf.mxu0
  %v318 = vadd.f32 %v234, %v317
  %v319 = vpop.f32.mrf.mxu0
  %320 = vmatprep.mubr.f32.mxu0 0.0
  %321 = vmatmul.mubr.f32.gmra.mxu0 %v106
  %v322 = vpop.f32.mrf.mxu0
  %v323 = vadd.f32 %v234, %v322
  %v324 = vpop.f32.mrf.mxu0
  %325 = vmatprep.mubr.f32.mxu0 0.0
  %326 = vmatmul.mubr.f32.gmra.mxu0 %v109
  %v327 = vpop.f32.mrf.mxu0
  %v328 = vadd.f32 %v234, %v327
  %v329 = vpop.f32.mrf.mxu0
  %330 = vmatprep.mubr.f32.mxu0 0.0
  %331 = vmatmul.mubr.f32.gmra.mxu0 %v112
  %v332 = vpop.f32.mrf.mxu0
  %v333 = vadd.f32 %v234, %v332
  %v334 = vpop.f32.mrf.mxu0
  %335 = vmatprep.mubr.f32.mxu0 0.0
  %336 = vmatmul.mubr.f32.gmra.mxu0 %v115
  %v337 = vpop.f32.mrf.mxu0
  %v338 = vadd.f32 %v234, %v337
  %v339 = vpop.f32.mrf.mxu0
  %340 = vdwg.mxu0
  %341 = vst [vmem:[#allocation3] sm:$0xff] %v303
  %342 = vst [vmem:[#allocation3 + $0x8] sm:$0xff] %v308
  %343 = vst [vmem:[#allocation3 + $0x10] sm:$0xff] %v313
  %344 = vst [vmem:[#allocation3 + $0x18] sm:$0xff] %v318
  %345 = vst [vmem:[#allocation3 + $0x20] sm:$0xff] %v323
  %346 = vst [vmem:[#allocation3 + $0x28] sm:$0xff] %v328
  %347 = vst [vmem:[#allocation3 + $0x30] sm:$0xff] %v333
  %348 = vst [vmem:[#allocation3 + $0x38] sm:$0xff] %v338
  %v349 = vld [vmem:[%s2] sm:$0xff]
  %v350 = vld [vmem:[%s1] sm:$0xff]
  %vm351 = vcmask 523264
  %v353 = vsel %vm351, %v350, 0
  %355 = vmatprep.subr.mxu0 0.0
  %356 = vmatpush1.msra.mxu0 0.0
  %357 = vmatprep.subr.mxu0 0.0
  %358 = vmatpush1.msra.mxu0 0.0
  %359 = vmatprep.subr.mxu0 0.0
  %360 = vmatpush1.msra.mxu0 0.0
  %361 = vmatprep.subr.mxu0 0.0
  %362 = vmatpush1.msra.mxu0 0.0
  %363 = vmatprep.subr.mxu0 0.0
  %364 = vmatpush1.msra.mxu0 0.0
  %365 = vmatprep.subr.mxu0 0.0
  %366 = vmatpush1.msra.mxu0 0.0
  %367 = vmatprep.subr.mxu0 0.0
  %368 = vmatpush1.msra.mxu0 0.0
  %369 = vmatprep.subr.mxu0 0.0
  %370 = vmatpush1.msra.mxu0 0.0
  %371 = vmatprep.subr.mxu0 %v77
  %372 = vmatpush1.msra.mxu0 %v76
  %373 = vmatprep.subr.mxu0 %v75
  %374 = vmatpush1.msra.mxu0 %v74
  %375 = vmatprep.subr.mxu0 %v73
  %376 = vmatpush1.msra.mxu0 %v72
  %377 = vmatprep.subr.mxu0 %v71
  %378 = vmatpush1.msra.mxu0 %v70
  %379 = vmatprep.subr.mxu0 %v69
  %380 = vmatpush1.msra.mxu0 %v68
  %381 = vmatprep.subr.mxu0 %v67
  %382 = vmatpush1.msra.mxu0 %v66
  %383 = vmatprep.subr.mxu0 %v65
  %384 = vmatpush1.msra.mxu0 %v64
  %385 = vmatprep.subr.mxu0 %v63
  %386 = vmatpush1.msra.mxu0 %v62
  %387 = vmatprep.subr.mxu0 0.0
  %388 = vmatpush2.msra.mxu0 0.0
  %389 = vmatprep.subr.mxu0 0.0
  %390 = vmatpush2.msra.mxu0 0.0
  %391 = vmatprep.subr.mxu0 0.0
  %392 = vmatpush2.msra.mxu0 0.0
  %393 = vmatprep.subr.mxu0 0.0
  %394 = vmatpush2.msra.mxu0 0.0
  %395 = vmatprep.subr.mxu0 0.0
  %396 = vmatpush2.msra.mxu0 0.0
  %397 = vmatprep.subr.mxu0 0.0
  %398 = vmatpush2.msra.mxu0 0.0
  %399 = vmatprep.subr.mxu0 0.0
  %400 = vmatpush2.msra.mxu0 0.0
  %401 = vmatprep.subr.mxu0 0.0
  %402 = vmatpush2.msra.mxu0 0.0
  %403 = vmatprep.subr.mxu0 0.0
  %404 = vmatpush2.msra.mxu0 0.0
  %405 = vmatprep.subr.mxu0 0.0
  %406 = vmatpush2.msra.mxu0 0.0
  %407 = vmatprep.subr.mxu0 0.0
  %408 = vmatpush2.msra.mxu0 0.0
  %409 = vmatprep.subr.mxu0 0.0
  %410 = vmatpush2.msra.mxu0 0.0
  %411 = vmatprep.subr.mxu0 0.0
  %412 = vmatpush2.msra.mxu0 0.0
  %413 = vmatprep.subr.mxu0 0.0
  %414 = vmatpush2.msra.mxu0 0.0
  %415 = vmatprep.subr.mxu0 0.0
  %416 = vmatpush2.msra.mxu0 0.0
  %417 = vmatprep.subr.mxu0 0.0
  %418 = vmatpush2.msra.mxu0 0.0
  %419 = vmatprep.mubr.f32.mxu0 0.0
  %420 = vmatmul.mubr.f32.gmra.mxu0 %v353
  %v421 = vpop.f32.mrf.mxu0
  %v422 = vadd.f32 0.0, %v421
  %v423 = vpop.f32.mrf.mxu0
  %v424 = vadd.f32 0.0, %v423
  %425 = vdwg.mxu0
  %v426 = vld [vmem:[#allocation2] sm:$0xff]
  %v427 = vadd.f32 %v422, %v426
  %s428 = scalar_lea.vmem [#allocation3], 56
  %v429 = vld [vmem:[%s428] sm:$0xff]
  %v430 = vadd.f32 %v424, %v429
  %v431 = vxor.u32 %v427, 2147483648
  %v432 = vmul.f32 %v431, 1.442695
  %v433 = vpow.pop %v432
  %v434 = vadd.f32 %v433, 1.0
  %v435 = vrcp.pop %v434
  %v436 = vmul.f32 1.0, %v435
  %v437 = vtanh.pop %v427
  %v438 = vsel %vm51, %v437, %v436
  %440 = vrot.lane.b32.xlu0 %v349, 32
  %v441 = vpop.permute.xlu0 %440
  %v443 = vmul.f32 %v438, %v441
  %445 = vrot.lane.b32.xlu0 %v438, 64
  %v446 = vpop.permute.xlu0 %445
  %v448 = vmul.f32 %v438, %v446
  %450 = vrot.lane.b32.xlu0 %v448, 32
  %v451 = vpop.permute.xlu0 %450
  %v453 = vadd.f32 %v443, %v451
  %v454 = vtanh.pop %v453
  %456 = vrot.lane.b32.xlu0 %v454, 64
  %v457 = vpop.permute.xlu0 %456
  %v459 = vmul.f32 %v438, %v457
  %v460 = vxor.u32 %v430, 2147483648
  %v461 = vmul.f32 %v460, 1.442695
  %v462 = vpow.pop %v461
  %v463 = vadd.f32 %v462, 1.0
  %v464 = vrcp.pop %v463
  %v465 = vmul.f32 1.0, %v464
  %v466 = vtanh.pop %v430
  %v467 = vsel %vm51, %v466, %v465
  %v468 = vmul.f32 %v467, %v349
  %470 = vrot.lane.b32.xlu0 %v467, 64
  %v471 = vpop.permute.xlu0 %470
  %v473 = vmul.f32 %v467, %v471
  %475 = vrot.lane.b32.xlu0 %v473, 32
  %v476 = vpop.permute.xlu0 %475
  %v478 = vadd.f32 %v468, %v476
  %v479 = vtanh.pop %v478
  %481 = vrot.lane.b32.xlu0 %v479, 64
  %v482 = vpop.permute.xlu0 %481
  %v484 = vmul.f32 %v467, %v482
  %486 = vrot.lane.b32.xlu0 %v459, 32
  %v487 = vpop.permute.xlu0 %486
  %489 = vst.msk [vmem:[%s13] sm:$0xff] %vm92, %v487
  %491 = vrot.lane.b32.xlu0 %v484, 64
  %v492 = vpop.permute.xlu0 %491
  %s494 = scalar_lea.vmem %s13, 56
  %vm495 = vcmask 523520
  %496 = vst.msk [vmem:[%s494] sm:$0xff] %vm495, %v492
  %v497 = vsel %vm92, %v487, %v492
  %v499 = vsel %vm351, %v497, 0
  %501 = vmatprep.subr.mxu0 0.0
  %502 = vmatpush1.msra.mxu0 0.0
  %503 = vmatprep.subr.mxu0 0.0
  %504 = vmatpush1.msra.mxu0 0.0
  %505 = vmatprep.subr.mxu0 0.0
  %506 = vmatpush1.msra.mxu0 0.0
  %507 = vmatprep.subr.mxu0 0.0
  %508 = vmatpush1.msra.mxu0 0.0
  %509 = vmatprep.subr.mxu0 0.0
  %510 = vmatpush1.msra.mxu0 0.0
  %511 = vmatprep.subr.mxu0 0.0
  %512 = vmatpush1.msra.mxu0 0.0
  %513 = vmatprep.subr.mxu0 0.0
  %514 = vmatpush1.msra.mxu0 0.0
  %515 = vmatprep.subr.mxu0 0.0
  %516 = vmatpush1.msra.mxu0 0.0
  %517 = vmatprep.subr.mxu0 %v77
  %518 = vmatpush1.msra.mxu0 %v76
  %519 = vmatprep.subr.mxu0 %v75
  %520 = vmatpush1.msra.mxu0 %v74
  %521 = vmatprep.subr.mxu0 %v73
  %522 = vmatpush1.msra.mxu0 %v72
  %523 = vmatprep.subr.mxu0 %v71
  %524 = vmatpush1.msra.mxu0 %v70
  %525 = vmatprep.subr.mxu0 %v69
  %526 = vmatpush1.msra.mxu0 %v68
  %527 = vmatprep.subr.mxu0 %v67
  %528 = vmatpush1.msra.mxu0 %v66
  %529 = vmatprep.subr.mxu0 %v65
  %530 = vmatpush1.msra.mxu0 %v64
  %531 = vmatprep.subr.mxu0 %v63
  %532 = vmatpush1.msra.mxu0 %v62
  %533 = vmatprep.subr.mxu0 0.0
  %534 = vmatpush2.msra.mxu0 0.0
  %535 = vmatprep.subr.mxu0 0.0
  %536 = vmatpush2.msra.mxu0 0.0
  %537 = vmatprep.subr.mxu0 0.0
  %538 = vmatpush2.msra.mxu0 0.0
  %539 = vmatprep.subr.mxu0 0.0
  %540 = vmatpush2.msra.mxu0 0.0
  %541 = vmatprep.subr.mxu0 0.0
  %542 = vmatpush2.msra.mxu0 0.0
  %543 = vmatprep.subr.mxu0 0.0
  %544 = vmatpush2.msra.mxu0 0.0
  %545 = vmatprep.subr.mxu0 0.0
  %546 = vmatpush2.msra.mxu0 0.0
  %547 = vmatprep.subr.mxu0 0.0
  %548 = vmatpush2.msra.mxu0 0.0
  %549 = vmatprep.subr.mxu0 0.0
  %550 = vmatpush2.msra.mxu0 0.0
  %551 = vmatprep.subr.mxu0 0.0
  %552 = vmatpush2.msra.mxu0 0.0
  %553 = vmatprep.subr.mxu0 0.0
  %554 = vmatpush2.msra.mxu0 0.0
  %555 = vmatprep.subr.mxu0 0.0
  %556 = vmatpush2.msra.mxu0 0.0
  %557 = vmatprep.subr.mxu0 0.0
  %558 = vmatpush2.msra.mxu0 0.0
  %559 = vmatprep.subr.mxu0 0.0
  %560 = vmatpush2.msra.mxu0 0.0
  %561 = vmatprep.subr.mxu0 0.0
  %562 = vmatpush2.msra.mxu0 0.0
  %563 = vmatprep.subr.mxu0 0.0
  %564 = vmatpush2.msra.mxu0 0.0
  %565 = vmatprep.mubr.f32.mxu0 0.0
  %566 = vmatmul.mubr.f32.gmra.mxu0 %v499
  %v567 = vpop.f32.mrf.mxu0
  %v568 = vadd.f32 0.0, %v567
  %v569 = vpop.f32.mrf.mxu0
  %v570 = vadd.f32 0.0, %v569
  %571 = vdwg.mxu0
  %s572 = scalar_lea.vmem [#allocation2], 8
  %v573 = vld [vmem:[%s572] sm:$0xff]
  %v574 = vadd.f32 %v568, %v573
  %s575 = scalar_lea.vmem [#allocation3], 48
  %v576 = vld [vmem:[%s575] sm:$0xff]
  %v577 = vadd.f32 %v570, %v576
  %v578 = vxor.u32 %v574, 2147483648
  %v579 = vmul.f32 %v578, 1.442695
  %v580 = vpow.pop %v579
  %v581 = vadd.f32 %v580, 1.0
  %v582 = vrcp.pop %v581
  %v583 = vmul.f32 1.0, %v582
  %v584 = vtanh.pop %v574
  %v585 = vsel %vm51, %v584, %v583
  %v586 = vmul.f32 %v585, %v453
  %588 = vrot.lane.b32.xlu0 %v585, 64
  %v589 = vpop.permute.xlu0 %588
  %v591 = vmul.f32 %v585, %v589
  %593 = vrot.lane.b32.xlu0 %v591, 32
  %v594 = vpop.permute.xlu0 %593
  %v596 = vadd.f32 %v586, %v594
  %v597 = vtanh.pop %v596
  %599 = vrot.lane.b32.xlu0 %v597, 64
  %v600 = vpop.permute.xlu0 %599
  %v602 = vmul.f32 %v585, %v600
  %v603 = vxor.u32 %v577, 2147483648
  %v604 = vmul.f32 %v603, 1.442695
  %v605 = vpow.pop %v604
  %v606 = vadd.f32 %v605, 1.0
  %v607 = vrcp.pop %v606
  %v608 = vmul.f32 1.0, %v607
  %v609 = vtanh.pop %v577
  %v610 = vsel %vm51, %v609, %v608
  %v611 = vmul.f32 %v610, %v478
  %613 = vrot.lane.b32.xlu0 %v610, 64
  %v614 = vpop.permute.xlu0 %613
  %v616 = vmul.f32 %v610, %v614
  %618 = vrot.lane.b32.xlu0 %v616, 32
  %v619 = vpop.permute.xlu0 %618
  %v621 = vadd.f32 %v611, %v619
  %v622 = vtanh.pop %v621
  %624 = vrot.lane.b32.xlu0 %v622, 64
  %v625 = vpop.permute.xlu0 %624
  %v627 = vmul.f32 %v610, %v625
  %629 = vrot.lane.b32.xlu0 %v602, 32
  %v630 = vpop.permute.xlu0 %629
  %s632 = scalar_lea.vmem %s13, 8
  %633 = vst.msk [vmem:[%s632] sm:$0xff] %vm92, %v630
  %635 = vrot.lane.b32.xlu0 %v627, 64
  %v636 = vpop.permute.xlu0 %635
  %s638 = scalar_lea.vmem %s13, 48
  %639 = vst.msk [vmem:[%s638] sm:$0xff] %vm495, %v636
  %v640 = vsel %vm92, %v630, %v636
  %v642 = vsel %vm351, %v640, 0
  %644 = vmatprep.subr.mxu0 0.0
  %645 = vmatpush1.msra.mxu0 0.0
  %646 = vmatprep.subr.mxu0 0.0
  %647 = vmatpush1.msra.mxu0 0.0
  %648 = vmatprep.subr.mxu0 0.0
  %649 = vmatpush1.msra.mxu0 0.0
  %650 = vmatprep.subr.mxu0 0.0
  %651 = vmatpush1.msra.mxu0 0.0
  %652 = vmatprep.subr.mxu0 0.0
  %653 = vmatpush1.msra.mxu0 0.0
  %654 = vmatprep.subr.mxu0 0.0
  %655 = vmatpush1.msra.mxu0 0.0
  %656 = vmatprep.subr.mxu0 0.0
  %657 = vmatpush1.msra.mxu0 0.0
  %658 = vmatprep.subr.mxu0 0.0
  %659 = vmatpush1.msra.mxu0 0.0
  %660 = vmatprep.subr.mxu0 %v77
  %661 = vmatpush1.msra.mxu0 %v76
  %662 = vmatprep.subr.mxu0 %v75
  %663 = vmatpush1.msra.mxu0 %v74
  %664 = vmatprep.subr.mxu0 %v73
  %665 = vmatpush1.msra.mxu0 %v72
  %666 = vmatprep.subr.mxu0 %v71
  %667 = vmatpush1.msra.mxu0 %v70
  %668 = vmatprep.subr.mxu0 %v69
  %669 = vmatpush1.msra.mxu0 %v68
  %670 = vmatprep.subr.mxu0 %v67
  %671 = vmatpush1.msra.mxu0 %v66
  %672 = vmatprep.subr.mxu0 %v65
  %673 = vmatpush1.msra.mxu0 %v64
  %674 = vmatprep.subr.mxu0 %v63
  %675 = vmatpush1.msra.mxu0 %v62
  %676 = vmatprep.subr.mxu0 0.0
  %677 = vmatpush2.msra.mxu0 0.0
  %678 = vmatprep.subr.mxu0 0.0
  %679 = vmatpush2.msra.mxu0 0.0
  %680 = vmatprep.subr.mxu0 0.0
  %681 = vmatpush2.msra.mxu0 0.0
  %682 = vmatprep.subr.mxu0 0.0
  %683 = vmatpush2.msra.mxu0 0.0
  %684 = vmatprep.subr.mxu0 0.0
  %685 = vmatpush2.msra.mxu0 0.0
  %686 = vmatprep.subr.mxu0 0.0
  %687 = vmatpush2.msra.mxu0 0.0
  %688 = vmatprep.subr.mxu0 0.0
  %689 = vmatpush2.msra.mxu0 0.0
  %690 = vmatprep.subr.mxu0 0.0
  %691 = vmatpush2.msra.mxu0 0.0
  %692 = vmatprep.subr.mxu0 0.0
  %693 = vmatpush2.msra.mxu0 0.0
  %694 = vmatprep.subr.mxu0 0.0
  %695 = vmatpush2.msra.mxu0 0.0
  %696 = vmatprep.subr.mxu0 0.0
  %697 = vmatpush2.msra.mxu0 0.0
  %698 = vmatprep.subr.mxu0 0.0
  %699 = vmatpush2.msra.mxu0 0.0
  %700 = vmatprep.subr.mxu0 0.0
  %701 = vmatpush2.msra.mxu0 0.0
  %702 = vmatprep.subr.mxu0 0.0
  %703 = vmatpush2.msra.mxu0 0.0
  %704 = vmatprep.subr.mxu0 0.0
  %705 = vmatpush2.msra.mxu0 0.0
  %706 = vmatprep.subr.mxu0 0.0
  %707 = vmatpush2.msra.mxu0 0.0
  %708 = vmatprep.mubr.f32.mxu0 0.0
  %709 = vmatmul.mubr.f32.gmra.mxu0 %v642
  %v710 = vpop.f32.mrf.mxu0
  %v711 = vadd.f32 0.0, %v710
  %v712 = vpop.f32.mrf.mxu0
  %v713 = vadd.f32 0.0, %v712
  %714 = vdwg.mxu0
  %s715 = scalar_lea.vmem [#allocation2], 16
  %v716 = vld [vmem:[%s715] sm:$0xff]
  %v717 = vadd.f32 %v711, %v716
  %s718 = scalar_lea.vmem [#allocation3], 40
  %v719 = vld [vmem:[%s718] sm:$0xff]
  %v720 = vadd.f32 %v713, %v719
  %v721 = vxor.u32 %v717, 2147483648
  %v722 = vmul.f32 %v721, 1.442695
  %v723 = vpow.pop %v722
  %v724 = vadd.f32 %v723, 1.0
  %v725 = vrcp.pop %v724
  %v726 = vmul.f32 1.0, %v725
  %v727 = vtanh.pop %v717
  %v728 = vsel %vm51, %v727, %v726
  %v729 = vmul.f32 %v728, %v596
  %731 = vrot.lane.b32.xlu0 %v728, 64
  %v732 = vpop.permute.xlu0 %731
  %v734 = vmul.f32 %v728, %v732
  %736 = vrot.lane.b32.xlu0 %v734, 32
  %v737 = vpop.permute.xlu0 %736
  %v739 = vadd.f32 %v729, %v737
  %v740 = vtanh.pop %v739
  %742 = vrot.lane.b32.xlu0 %v740, 64
  %v743 = vpop.permute.xlu0 %742
  %v745 = vmul.f32 %v728, %v743
  %v746 = vxor.u32 %v720, 2147483648
  %v747 = vmul.f32 %v746, 1.442695
  %v748 = vpow.pop %v747
  %v749 = vadd.f32 %v748, 1.0
  %v750 = vrcp.pop %v749
  %v751 = vmul.f32 1.0, %v750
  %v752 = vtanh.pop %v720
  %v753 = vsel %vm51, %v752, %v751
  %v754 = vmul.f32 %v753, %v621
  %756 = vrot.lane.b32.xlu0 %v753, 64
  %v757 = vpop.permute.xlu0 %756
  %v759 = vmul.f32 %v753, %v757
  %761 = vrot.lane.b32.xlu0 %v759, 32
  %v762 = vpop.permute.xlu0 %761
  %v764 = vadd.f32 %v754, %v762
  %v765 = vtanh.pop %v764
  %767 = vrot.lane.b32.xlu0 %v765, 64
  %v768 = vpop.permute.xlu0 %767
  %v770 = vmul.f32 %v753, %v768
  %772 = vrot.lane.b32.xlu0 %v745, 32
  %v773 = vpop.permute.xlu0 %772
  %s775 = scalar_lea.vmem %s13, 16
  %776 = vst.msk [vmem:[%s775] sm:$0xff] %vm92, %v773
  %778 = vrot.lane.b32.xlu0 %v770, 64
  %v779 = vpop.permute.xlu0 %778
  %s781 = scalar_lea.vmem %s13, 40
  %782 = vst.msk [vmem:[%s781] sm:$0xff] %vm495, %v779
  %v783 = vsel %vm92, %v773, %v779
  %v785 = vsel %vm351, %v783, 0
  %787 = vmatprep.subr.mxu0 0.0
  %788 = vmatpush1.msra.mxu0 0.0
  %789 = vmatprep.subr.mxu0 0.0
  %790 = vmatpush1.msra.mxu0 0.0
  %791 = vmatprep.subr.mxu0 0.0
  %792 = vmatpush1.msra.mxu0 0.0
  %793 = vmatprep.subr.mxu0 0.0
  %794 = vmatpush1.msra.mxu0 0.0
  %795 = vmatprep.subr.mxu0 0.0
  %796 = vmatpush1.msra.mxu0 0.0
  %797 = vmatprep.subr.mxu0 0.0
  %798 = vmatpush1.msra.mxu0 0.0
  %799 = vmatprep.subr.mxu0 0.0
  %800 = vmatpush1.msra.mxu0 0.0
  %801 = vmatprep.subr.mxu0 0.0
  %802 = vmatpush1.msra.mxu0 0.0
  %803 = vmatprep.subr.mxu0 %v77
  %804 = vmatpush1.msra.mxu0 %v76
  %805 = vmatprep.subr.mxu0 %v75
  %806 = vmatpush1.msra.mxu0 %v74
  %807 = vmatprep.subr.mxu0 %v73
  %808 = vmatpush1.msra.mxu0 %v72
  %809 = vmatprep.subr.mxu0 %v71
  %810 = vmatpush1.msra.mxu0 %v70
  %811 = vmatprep.subr.mxu0 %v69
  %812 = vmatpush1.msra.mxu0 %v68
  %813 = vmatprep.subr.mxu0 %v67
  %814 = vmatpush1.msra.mxu0 %v66
  %815 = vmatprep.subr.mxu0 %v65
  %816 = vmatpush1.msra.mxu0 %v64
  %817 = vmatprep.subr.mxu0 %v63
  %818 = vmatpush1.msra.mxu0 %v62
  %819 = vmatprep.subr.mxu0 0.0
  %820 = vmatpush2.msra.mxu0 0.0
  %821 = vmatprep.subr.mxu0 0.0
  %822 = vmatpush2.msra.mxu0 0.0
  %823 = vmatprep.subr.mxu0 0.0
  %824 = vmatpush2.msra.mxu0 0.0
  %825 = vmatprep.subr.mxu0 0.0
  %826 = vmatpush2.msra.mxu0 0.0
  %827 = vmatprep.subr.mxu0 0.0
  %828 = vmatpush2.msra.mxu0 0.0
  %829 = vmatprep.subr.mxu0 0.0
  %830 = vmatpush2.msra.mxu0 0.0
  %831 = vmatprep.subr.mxu0 0.0
  %832 = vmatpush2.msra.mxu0 0.0
  %833 = vmatprep.subr.mxu0 0.0
  %834 = vmatpush2.msra.mxu0 0.0
  %835 = vmatprep.subr.mxu0 0.0
  %836 = vmatpush2.msra.mxu0 0.0
  %837 = vmatprep.subr.mxu0 0.0
  %838 = vmatpush2.msra.mxu0 0.0
  %839 = vmatprep.subr.mxu0 0.0
  %840 = vmatpush2.msra.mxu0 0.0
  %841 = vmatprep.subr.mxu0 0.0
  %842 = vmatpush2.msra.mxu0 0.0
  %843 = vmatprep.subr.mxu0 0.0
  %844 = vmatpush2.msra.mxu0 0.0
  %845 = vmatprep.subr.mxu0 0.0
  %846 = vmatpush2.msra.mxu0 0.0
  %847 = vmatprep.subr.mxu0 0.0
  %848 = vmatpush2.msra.mxu0 0.0
  %849 = vmatprep.subr.mxu0 0.0
  %850 = vmatpush2.msra.mxu0 0.0
  %851 = vmatprep.mubr.f32.mxu0 0.0
  %852 = vmatmul.mubr.f32.gmra.mxu0 %v785
  %v853 = vpop.f32.mrf.mxu0
  %v854 = vadd.f32 0.0, %v853
  %v855 = vpop.f32.mrf.mxu0
  %v856 = vadd.f32 0.0, %v855
  %857 = vdwg.mxu0
  %s858 = scalar_lea.vmem [#allocation2], 24
  %v859 = vld [vmem:[%s858] sm:$0xff]
  %v860 = vadd.f32 %v854, %v859
  %s861 = scalar_lea.vmem [#allocation3], 32
  %v862 = vld [vmem:[%s861] sm:$0xff]
  %v863 = vadd.f32 %v856, %v862
  %v864 = vxor.u32 %v860, 2147483648
  %v865 = vmul.f32 %v864, 1.442695
  %v866 = vpow.pop %v865
  %v867 = vadd.f32 %v866, 1.0
  %v868 = vrcp.pop %v867
  %v869 = vmul.f32 1.0, %v868
  %v870 = vtanh.pop %v860
  %v871 = vsel %vm51, %v870, %v869
  %v872 = vmul.f32 %v871, %v739
  %874 = vrot.lane.b32.xlu0 %v871, 64
  %v875 = vpop.permute.xlu0 %874
  %v877 = vmul.f32 %v871, %v875
  %879 = vrot.lane.b32.xlu0 %v877, 32
  %v880 = vpop.permute.xlu0 %879
  %v882 = vadd.f32 %v872, %v880
  %v883 = vtanh.pop %v882
  %885 = vrot.lane.b32.xlu0 %v883, 64
  %v886 = vpop.permute.xlu0 %885
  %v888 = vmul.f32 %v871, %v886
  %v889 = vxor.u32 %v863, 2147483648
  %v890 = vmul.f32 %v889, 1.442695
  %v891 = vpow.pop %v890
  %v892 = vadd.f32 %v891, 1.0
  %v893 = vrcp.pop %v892
  %v894 = vmul.f32 1.0, %v893
  %v895 = vtanh.pop %v863
  %v896 = vsel %vm51, %v895, %v894
  %v897 = vmul.f32 %v896, %v764
  %899 = vrot.lane.b32.xlu0 %v896, 64
  %v900 = vpop.permute.xlu0 %899
  %v902 = vmul.f32 %v896, %v900
  %904 = vrot.lane.b32.xlu0 %v902, 32
  %v905 = vpop.permute.xlu0 %904
  %v907 = vadd.f32 %v897, %v905
  %v908 = vtanh.pop %v907
  %910 = vrot.lane.b32.xlu0 %v908, 64
  %v911 = vpop.permute.xlu0 %910
  %v913 = vmul.f32 %v896, %v911
  %915 = vrot.lane.b32.xlu0 %v888, 32
  %v916 = vpop.permute.xlu0 %915
  %s918 = scalar_lea.vmem %s13, 24
  %919 = vst.msk [vmem:[%s918] sm:$0xff] %vm92, %v916
  %921 = vrot.lane.b32.xlu0 %v913, 64
  %v922 = vpop.permute.xlu0 %921
  %s924 = scalar_lea.vmem %s13, 32
  %925 = vst.msk [vmem:[%s924] sm:$0xff] %vm495, %v922
  %v926 = vsel %vm92, %v916, %v922
  %v928 = vsel %vm351, %v926, 0
  %930 = vmatprep.subr.mxu0 0.0
  %931 = vmatpush1.msra.mxu0 0.0
  %932 = vmatprep.subr.mxu0 0.0
  %933 = vmatpush1.msra.mxu0 0.0
  %934 = vmatprep.subr.mxu0 0.0
  %935 = vmatpush1.msra.mxu0 0.0
  %936 = vmatprep.subr.mxu0 0.0
  %937 = vmatpush1.msra.mxu0 0.0
  %938 = vmatprep.subr.mxu0 0.0
  %939 = vmatpush1.msra.mxu0 0.0
  %940 = vmatprep.subr.mxu0 0.0
  %941 = vmatpush1.msra.mxu0 0.0
  %942 = vmatprep.subr.mxu0 0.0
  %943 = vmatpush1.msra.mxu0 0.0
  %944 = vmatprep.subr.mxu0 0.0
  %945 = vmatpush1.msra.mxu0 0.0
  %946 = vmatprep.subr.mxu0 %v77
  %947 = vmatpush1.msra.mxu0 %v76
  %948 = vmatprep.subr.mxu0 %v75
  %949 = vmatpush1.msra.mxu0 %v74
  %950 = vmatprep.subr.mxu0 %v73
  %951 = vmatpush1.msra.mxu0 %v72
  %952 = vmatprep.subr.mxu0 %v71
  %953 = vmatpush1.msra.mxu0 %v70
  %954 = vmatprep.subr.mxu0 %v69
  %955 = vmatpush1.msra.mxu0 %v68
  %956 = vmatprep.subr.mxu0 %v67
  %957 = vmatpush1.msra.mxu0 %v66
  %958 = vmatprep.subr.mxu0 %v65
  %959 = vmatpush1.msra.mxu0 %v64
  %960 = vmatprep.subr.mxu0 %v63
  %961 = vmatpush1.msra.mxu0 %v62
  %962 = vmatprep.subr.mxu0 0.0
  %963 = vmatpush2.msra.mxu0 0.0
  %964 = vmatprep.subr.mxu0 0.0
  %965 = vmatpush2.msra.mxu0 0.0
  %966 = vmatprep.subr.mxu0 0.0
  %967 = vmatpush2.msra.mxu0 0.0
  %968 = vmatprep.subr.mxu0 0.0
  %969 = vmatpush2.msra.mxu0 0.0
  %970 = vmatprep.subr.mxu0 0.0
  %971 = vmatpush2.msra.mxu0 0.0
  %972 = vmatprep.subr.mxu0 0.0
  %973 = vmatpush2.msra.mxu0 0.0
  %974 = vmatprep.subr.mxu0 0.0
  %975 = vmatpush2.msra.mxu0 0.0
  %976 = vmatprep.subr.mxu0 0.0
  %977 = vmatpush2.msra.mxu0 0.0
  %978 = vmatprep.subr.mxu0 0.0
  %979 = vmatpush2.msra.mxu0 0.0
  %980 = vmatprep.subr.mxu0 0.0
  %981 = vmatpush2.msra.mxu0 0.0
  %982 = vmatprep.subr.mxu0 0.0
  %983 = vmatpush2.msra.mxu0 0.0
  %984 = vmatprep.subr.mxu0 0.0
  %985 = vmatpush2.msra.mxu0 0.0
  %986 = vmatprep.subr.mxu0 0.0
  %987 = vmatpush2.msra.mxu0 0.0
  %988 = vmatprep.subr.mxu0 0.0
  %989 = vmatpush2.msra.mxu0 0.0
  %990 = vmatprep.subr.mxu0 0.0
  %991 = vmatpush2.msra.mxu0 0.0
  %992 = vmatprep.subr.mxu0 0.0
  %993 = vmatpush2.msra.mxu0 0.0
  %994 = vmatprep.mubr.f32.mxu0 0.0
  %995 = vmatmul.mubr.f32.gmra.mxu0 %v928
  %v996 = vpop.f32.mrf.mxu0
  %v997 = vadd.f32 0.0, %v996
  %v998 = vpop.f32.mrf.mxu0
  %v999 = vadd.f32 0.0, %v998
  %1000 = vdwg.mxu0
  %s1001 = scalar_lea.vmem [#allocation2], 32
  %v1002 = vld [vmem:[%s1001] sm:$0xff]
  %v1003 = vadd.f32 %v997, %v1002
  %s1004 = scalar_lea.vmem [#allocation3], 24
  %v1005 = vld [vmem:[%s1004] sm:$0xff]
  %v1006 = vadd.f32 %v999, %v1005
  %v1007 = vxor.u32 %v1003, 2147483648
  %v1008 = vmul.f32 %v1007, 1.442695
  %v1009 = vpow.pop %v1008
  %v1010 = vadd.f32 %v1009, 1.0
  %v1011 = vrcp.pop %v1010
  %v1012 = vmul.f32 1.0, %v1011
  %v1013 = vtanh.pop %v1003
  %v1014 = vsel %vm51, %v1013, %v1012
  %v1015 = vmul.f32 %v1014, %v882
  %1017 = vrot.lane.b32.xlu0 %v1014, 64
  %v1018 = vpop.permute.xlu0 %1017
  %v1020 = vmul.f32 %v1014, %v1018
  %1022 = vrot.lane.b32.xlu0 %v1020, 32
  %v1023 = vpop.permute.xlu0 %1022
  %v1025 = vadd.f32 %v1015, %v1023
  %v1026 = vtanh.pop %v1025
  %1028 = vrot.lane.b32.xlu0 %v1026, 64
  %v1029 = vpop.permute.xlu0 %1028
  %v1031 = vmul.f32 %v1014, %v1029
  %v1032 = vxor.u32 %v1006, 2147483648
  %v1033 = vmul.f32 %v1032, 1.442695
  %v1034 = vpow.pop %v1033
  %v1035 = vadd.f32 %v1034, 1.0
  %v1036 = vrcp.pop %v1035
  %v1037 = vmul.f32 1.0, %v1036
  %v1038 = vtanh.pop %v1006
  %v1039 = vsel %vm51, %v1038, %v1037
  %v1040 = vmul.f32 %v1039, %v907
  %1042 = vrot.lane.b32.xlu0 %v1039, 64
  %v1043 = vpop.permute.xlu0 %1042
  %v1045 = vmul.f32 %v1039, %v1043
  %1047 = vrot.lane.b32.xlu0 %v1045, 32
  %v1048 = vpop.permute.xlu0 %1047
  %v1050 = vadd.f32 %v1040, %v1048
  %v1051 = vtanh.pop %v1050
  %1053 = vrot.lane.b32.xlu0 %v1051, 64
  %v1054 = vpop.permute.xlu0 %1053
  %v1056 = vmul.f32 %v1039, %v1054
  %1058 = vrot.lane.b32.xlu0 %v1031, 32
  %v1059 = vpop.permute.xlu0 %1058
  %1061 = vst.msk [vmem:[%s924] sm:$0xff] %vm92, %v1059
  %1063 = vrot.lane.b32.xlu0 %v1056, 64
  %v1064 = vpop.permute.xlu0 %1063
  %1066 = vst.msk [vmem:[%s918] sm:$0xff] %vm495, %v1064
  %v1067 = vsel %vm92, %v1059, %v1064
  %v1069 = vsel %vm351, %v1067, 0
  %1071 = vmatprep.subr.mxu0 0.0
  %1072 = vmatpush1.msra.mxu0 0.0
  %1073 = vmatprep.subr.mxu0 0.0
  %1074 = vmatpush1.msra.mxu0 0.0
  %1075 = vmatprep.subr.mxu0 0.0
  %1076 = vmatpush1.msra.mxu0 0.0
  %1077 = vmatprep.subr.mxu0 0.0
  %1078 = vmatpush1.msra.mxu0 0.0
  %1079 = vmatprep.subr.mxu0 0.0
  %1080 = vmatpush1.msra.mxu0 0.0
  %1081 = vmatprep.subr.mxu0 0.0
  %1082 = vmatpush1.msra.mxu0 0.0
  %1083 = vmatprep.subr.mxu0 0.0
  %1084 = vmatpush1.msra.mxu0 0.0
  %1085 = vmatprep.subr.mxu0 0.0
  %1086 = vmatpush1.msra.mxu0 0.0
  %1087 = vmatprep.subr.mxu0 %v77
  %1088 = vmatpush1.msra.mxu0 %v76
  %1089 = vmatprep.subr.mxu0 %v75
  %1090 = vmatpush1.msra.mxu0 %v74
  %1091 = vmatprep.subr.mxu0 %v73
  %1092 = vmatpush1.msra.mxu0 %v72
  %1093 = vmatprep.subr.mxu0 %v71
  %1094 = vmatpush1.msra.mxu0 %v70
  %1095 = vmatprep.subr.mxu0 %v69
  %1096 = vmatpush1.msra.mxu0 %v68
  %1097 = vmatprep.subr.mxu0 %v67
  %1098 = vmatpush1.msra.mxu0 %v66
  %1099 = vmatprep.subr.mxu0 %v65
  %1100 = vmatpush1.msra.mxu0 %v64
  %1101 = vmatprep.subr.mxu0 %v63
  %1102 = vmatpush1.msra.mxu0 %v62
  %1103 = vmatprep.subr.mxu0 0.0
  %1104 = vmatpush2.msra.mxu0 0.0
  %1105 = vmatprep.subr.mxu0 0.0
  %1106 = vmatpush2.msra.mxu0 0.0
  %1107 = vmatprep.subr.mxu0 0.0
  %1108 = vmatpush2.msra.mxu0 0.0
  %1109 = vmatprep.subr.mxu0 0.0
  %1110 = vmatpush2.msra.mxu0 0.0
  %1111 = vmatprep.subr.mxu0 0.0
  %1112 = vmatpush2.msra.mxu0 0.0
  %1113 = vmatprep.subr.mxu0 0.0
  %1114 = vmatpush2.msra.mxu0 0.0
  %1115 = vmatprep.subr.mxu0 0.0
  %1116 = vmatpush2.msra.mxu0 0.0
  %1117 = vmatprep.subr.mxu0 0.0
  %1118 = vmatpush2.msra.mxu0 0.0
  %1119 = vmatprep.subr.mxu0 0.0
  %1120 = vmatpush2.msra.mxu0 0.0
  %1121 = vmatprep.subr.mxu0 0.0
  %1122 = vmatpush2.msra.mxu0 0.0
  %1123 = vmatprep.subr.mxu0 0.0
  %1124 = vmatpush2.msra.mxu0 0.0
  %1125 = vmatprep.subr.mxu0 0.0
  %1126 = vmatpush2.msra.mxu0 0.0
  %1127 = vmatprep.subr.mxu0 0.0
  %1128 = vmatpush2.msra.mxu0 0.0
  %1129 = vmatprep.subr.mxu0 0.0
  %1130 = vmatpush2.msra.mxu0 0.0
  %1131 = vmatprep.subr.mxu0 0.0
  %1132 = vmatpush2.msra.mxu0 0.0
  %1133 = vmatprep.subr.mxu0 0.0
  %1134 = vmatpush2.msra.mxu0 0.0
  %1135 = vmatprep.mubr.f32.mxu0 0.0
  %1136 = vmatmul.mubr.f32.gmra.mxu0 %v1069
  %v1137 = vpop.f32.mrf.mxu0
  %v1138 = vadd.f32 0.0, %v1137
  %v1139 = vpop.f32.mrf.mxu0
  %v1140 = vadd.f32 0.0, %v1139
  %1141 = vdwg.mxu0
  %s1142 = scalar_lea.vmem [#allocation2], 40
  %v1143 = vld [vmem:[%s1142] sm:$0xff]
  %v1144 = vadd.f32 %v1138, %v1143
  %s1145 = scalar_lea.vmem [#allocation3], 16
  %v1146 = vld [vmem:[%s1145] sm:$0xff]
  %v1147 = vadd.f32 %v1140, %v1146
  %v1148 = vxor.u32 %v1144, 2147483648
  %v1149 = vmul.f32 %v1148, 1.442695
  %v1150 = vpow.pop %v1149
  %v1151 = vadd.f32 %v1150, 1.0
  %v1152 = vrcp.pop %v1151
  %v1153 = vmul.f32 1.0, %v1152
  %v1154 = vtanh.pop %v1144
  %v1155 = vsel %vm51, %v1154, %v1153
  %v1156 = vmul.f32 %v1155, %v1025
  %1158 = vrot.lane.b32.xlu0 %v1155, 64
  %v1159 = vpop.permute.xlu0 %1158
  %v1161 = vmul.f32 %v1155, %v1159
  %1163 = vrot.lane.b32.xlu0 %v1161, 32
  %v1164 = vpop.permute.xlu0 %1163
  %v1166 = vadd.f32 %v1156, %v1164
  %v1167 = vtanh.pop %v1166
  %1169 = vrot.lane.b32.xlu0 %v1167, 64
  %v1170 = vpop.permute.xlu0 %1169
  %v1172 = vmul.f32 %v1155, %v1170
  %v1173 = vxor.u32 %v1147, 2147483648
  %v1174 = vmul.f32 %v1173, 1.442695
  %v1175 = vpow.pop %v1174
  %v1176 = vadd.f32 %v1175, 1.0
  %v1177 = vrcp.pop %v1176
  %v1178 = vmul.f32 1.0, %v1177
  %v1179 = vtanh.pop %v1147
  %v1180 = vsel %vm51, %v1179, %v1178
  %v1181 = vmul.f32 %v1180, %v1050
  %1183 = vrot.lane.b32.xlu0 %v1180, 64
  %v1184 = vpop.permute.xlu0 %1183
  %v1186 = vmul.f32 %v1180, %v1184
  %1188 = vrot.lane.b32.xlu0 %v1186, 32
  %v1189 = vpop.permute.xlu0 %1188
  %v1191 = vadd.f32 %v1181, %v1189
  %v1192 = vtanh.pop %v1191
  %1194 = vrot.lane.b32.xlu0 %v1192, 64
  %v1195 = vpop.permute.xlu0 %1194
  %v1197 = vmul.f32 %v1180, %v1195
  %1199 = vrot.lane.b32.xlu0 %v1172, 32
  %v1200 = vpop.permute.xlu0 %1199
  %1202 = vst.msk [vmem:[%s781] sm:$0xff] %vm92, %v1200
  %1204 = vrot.lane.b32.xlu0 %v1197, 64
  %v1205 = vpop.permute.xlu0 %1204
  %1207 = vst.msk [vmem:[%s775] sm:$0xff] %vm495, %v1205
  %v1208 = vsel %vm92, %v1200, %v1205
  %v1210 = vsel %vm351, %v1208, 0
  %1212 = vmatprep.subr.mxu0 0.0
  %1213 = vmatpush1.msra.mxu0 0.0
  %1214 = vmatprep.subr.mxu0 0.0
  %1215 = vmatpush1.msra.mxu0 0.0
  %1216 = vmatprep.subr.mxu0 0.0
  %1217 = vmatpush1.msra.mxu0 0.0
  %1218 = vmatprep.subr.mxu0 0.0
  %1219 = vmatpush1.msra.mxu0 0.0
  %1220 = vmatprep.subr.mxu0 0.0
  %1221 = vmatpush1.msra.mxu0 0.0
  %1222 = vmatprep.subr.mxu0 0.0
  %1223 = vmatpush1.msra.mxu0 0.0
  %1224 = vmatprep.subr.mxu0 0.0
  %1225 = vmatpush1.msra.mxu0 0.0
  %1226 = vmatprep.subr.mxu0 0.0
  %1227 = vmatpush1.msra.mxu0 0.0
  %1228 = vmatprep.subr.mxu0 %v77
  %1229 = vmatpush1.msra.mxu0 %v76
  %1230 = vmatprep.subr.mxu0 %v75
  %1231 = vmatpush1.msra.mxu0 %v74
  %1232 = vmatprep.subr.mxu0 %v73
  %1233 = vmatpush1.msra.mxu0 %v72
  %1234 = vmatprep.subr.mxu0 %v71
  %1235 = vmatpush1.msra.mxu0 %v70
  %1236 = vmatprep.subr.mxu0 %v69
  %1237 = vmatpush1.msra.mxu0 %v68
  %1238 = vmatprep.subr.mxu0 %v67
  %1239 = vmatpush1.msra.mxu0 %v66
  %1240 = vmatprep.subr.mxu0 %v65
  %1241 = vmatpush1.msra.mxu0 %v64
  %1242 = vmatprep.subr.mxu0 %v63
  %1243 = vmatpush1.msra.mxu0 %v62
  %1244 = vmatprep.subr.mxu0 0.0
  %1245 = vmatpush2.msra.mxu0 0.0
  %1246 = vmatprep.subr.mxu0 0.0
  %1247 = vmatpush2.msra.mxu0 0.0
  %1248 = vmatprep.subr.mxu0 0.0
  %1249 = vmatpush2.msra.mxu0 0.0
  %1250 = vmatprep.subr.mxu0 0.0
  %1251 = vmatpush2.msra.mxu0 0.0
  %1252 = vmatprep.subr.mxu0 0.0
  %1253 = vmatpush2.msra.mxu0 0.0
  %1254 = vmatprep.subr.mxu0 0.0
  %1255 = vmatpush2.msra.mxu0 0.0
  %1256 = vmatprep.subr.mxu0 0.0
  %1257 = vmatpush2.msra.mxu0 0.0
  %1258 = vmatprep.subr.mxu0 0.0
  %1259 = vmatpush2.msra.mxu0 0.0
  %1260 = vmatprep.subr.mxu0 0.0
  %1261 = vmatpush2.msra.mxu0 0.0
  %1262 = vmatprep.subr.mxu0 0.0
  %1263 = vmatpush2.msra.mxu0 0.0
  %1264 = vmatprep.subr.mxu0 0.0
  %1265 = vmatpush2.msra.mxu0 0.0
  %1266 = vmatprep.subr.mxu0 0.0
  %1267 = vmatpush2.msra.mxu0 0.0
  %1268 = vmatprep.subr.mxu0 0.0
  %1269 = vmatpush2.msra.mxu0 0.0
  %1270 = vmatprep.subr.mxu0 0.0
  %1271 = vmatpush2.msra.mxu0 0.0
  %1272 = vmatprep.subr.mxu0 0.0
  %1273 = vmatpush2.msra.mxu0 0.0
  %1274 = vmatprep.subr.mxu0 0.0
  %1275 = vmatpush2.msra.mxu0 0.0
  %1276 = vmatprep.mubr.f32.mxu0 0.0
  %1277 = vmatmul.mubr.f32.gmra.mxu0 %v1210
  %v1278 = vpop.f32.mrf.mxu0
  %v1279 = vadd.f32 0.0, %v1278
  %v1280 = vpop.f32.mrf.mxu0
  %v1281 = vadd.f32 0.0, %v1280
  %1282 = vdwg.mxu0
  %s1283 = scalar_lea.vmem [#allocation2], 48
  %v1284 = vld [vmem:[%s1283] sm:$0xff]
  %v1285 = vadd.f32 %v1279, %v1284
  %s1286 = scalar_lea.vmem [#allocation3], 8
  %v1287 = vld [vmem:[%s1286] sm:$0xff]
  %v1288 = vadd.f32 %v1281, %v1287
  %v1289 = vxor.u32 %v1285, 2147483648
  %v1290 = vmul.f32 %v1289, 1.442695
  %v1291 = vpow.pop %v1290
  %v1292 = vadd.f32 %v1291, 1.0
  %v1293 = vrcp.pop %v1292
  %v1294 = vmul.f32 1.0, %v1293
  %v1295 = vtanh.pop %v1285
  %v1296 = vsel %vm51, %v1295, %v1294
  %v1297 = vmul.f32 %v1296, %v1166
  %1299 = vrot.lane.b32.xlu0 %v1296, 64
  %v1300 = vpop.permute.xlu0 %1299
  %v1302 = vmul.f32 %v1296, %v1300
  %1304 = vrot.lane.b32.xlu0 %v1302, 32
  %v1305 = vpop.permute.xlu0 %1304
  %v1307 = vadd.f32 %v1297, %v1305
  %v1308 = vtanh.pop %v1307
  %1310 = vrot.lane.b32.xlu0 %v1308, 64
  %v1311 = vpop.permute.xlu0 %1310
  %v1313 = vmul.f32 %v1296, %v1311
  %v1314 = vxor.u32 %v1288, 2147483648
  %v1315 = vmul.f32 %v1314, 1.442695
  %v1316 = vpow.pop %v1315
  %v1317 = vadd.f32 %v1316, 1.0
  %v1318 = vrcp.pop %v1317
  %v1319 = vmul.f32 1.0, %v1318
  %v1320 = vtanh.pop %v1288
  %v1321 = vsel %vm51, %v1320, %v1319
  %v1322 = vmul.f32 %v1321, %v1191
  %1324 = vrot.lane.b32.xlu0 %v1321, 64
  %v1325 = vpop.permute.xlu0 %1324
  %v1327 = vmul.f32 %v1321, %v1325
  %1329 = vrot.lane.b32.xlu0 %v1327, 32
  %v1330 = vpop.permute.xlu0 %1329
  %v1332 = vadd.f32 %v1322, %v1330
  %v1333 = vtanh.pop %v1332
  %1335 = vrot.lane.b32.xlu0 %v1333, 64
  %v1336 = vpop.permute.xlu0 %1335
  %v1338 = vmul.f32 %v1321, %v1336
  %1340 = vrot.lane.b32.xlu0 %v1313, 32
  %v1341 = vpop.permute.xlu0 %1340
  %1343 = vst.msk [vmem:[%s638] sm:$0xff] %vm92, %v1341
  %1345 = vrot.lane.b32.xlu0 %v1338, 64
  %v1346 = vpop.permute.xlu0 %1345
  %1348 = vst.msk [vmem:[%s632] sm:$0xff] %vm495, %v1346
  %v1349 = vsel %vm92, %v1341, %v1346
  %v1351 = vsel %vm351, %v1349, 0
  %1353 = vmatprep.subr.mxu0 0.0
  %1354 = vmatpush1.msra.mxu0 0.0
  %1355 = vmatprep.subr.mxu0 0.0
  %1356 = vmatpush1.msra.mxu0 0.0
  %1357 = vmatprep.subr.mxu0 0.0
  %1358 = vmatpush1.msra.mxu0 0.0
  %1359 = vmatprep.subr.mxu0 0.0
  %1360 = vmatpush1.msra.mxu0 0.0
  %1361 = vmatprep.subr.mxu0 0.0
  %1362 = vmatpush1.msra.mxu0 0.0
  %1363 = vmatprep.subr.mxu0 0.0
  %1364 = vmatpush1.msra.mxu0 0.0
  %1365 = vmatprep.subr.mxu0 0.0
  %1366 = vmatpush1.msra.mxu0 0.0
  %1367 = vmatprep.subr.mxu0 0.0
  %1368 = vmatpush1.msra.mxu0 0.0
  %1369 = vmatprep.subr.mxu0 %v77
  %1370 = vmatpush1.msra.mxu0 %v76
  %1371 = vmatprep.subr.mxu0 %v75
  %1372 = vmatpush1.msra.mxu0 %v74
  %1373 = vmatprep.subr.mxu0 %v73
  %1374 = vmatpush1.msra.mxu0 %v72
  %1375 = vmatprep.subr.mxu0 %v71
  %1376 = vmatpush1.msra.mxu0 %v70
  %1377 = vmatprep.subr.mxu0 %v69
  %1378 = vmatpush1.msra.mxu0 %v68
  %1379 = vmatprep.subr.mxu0 %v67
  %1380 = vmatpush1.msra.mxu0 %v66
  %1381 = vmatprep.subr.mxu0 %v65
  %1382 = vmatpush1.msra.mxu0 %v64
  %1383 = vmatprep.subr.mxu0 %v63
  %1384 = vmatpush1.msra.mxu0 %v62
  %1385 = vmatprep.subr.mxu0 0.0
  %1386 = vmatpush2.msra.mxu0 0.0
  %1387 = vmatprep.subr.mxu0 0.0
  %1388 = vmatpush2.msra.mxu0 0.0
  %1389 = vmatprep.subr.mxu0 0.0
  %1390 = vmatpush2.msra.mxu0 0.0
  %1391 = vmatprep.subr.mxu0 0.0
  %1392 = vmatpush2.msra.mxu0 0.0
  %1393 = vmatprep.subr.mxu0 0.0
  %1394 = vmatpush2.msra.mxu0 0.0
  %1395 = vmatprep.subr.mxu0 0.0
  %1396 = vmatpush2.msra.mxu0 0.0
  %1397 = vmatprep.subr.mxu0 0.0
  %1398 = vmatpush2.msra.mxu0 0.0
  %1399 = vmatprep.subr.mxu0 0.0
  %1400 = vmatpush2.msra.mxu0 0.0
  %1401 = vmatprep.subr.mxu0 0.0
  %1402 = vmatpush2.msra.mxu0 0.0
  %1403 = vmatprep.subr.mxu0 0.0
  %1404 = vmatpush2.msra.mxu0 0.0
  %1405 = vmatprep.subr.mxu0 0.0
  %1406 = vmatpush2.msra.mxu0 0.0
  %1407 = vmatprep.subr.mxu0 0.0
  %1408 = vmatpush2.msra.mxu0 0.0
  %1409 = vmatprep.subr.mxu0 0.0
  %1410 = vmatpush2.msra.mxu0 0.0
  %1411 = vmatprep.subr.mxu0 0.0
  %1412 = vmatpush2.msra.mxu0 0.0
  %1413 = vmatprep.subr.mxu0 0.0
  %1414 = vmatpush2.msra.mxu0 0.0
  %1415 = vmatprep.subr.mxu0 0.0
  %1416 = vmatpush2.msra.mxu0 0.0
  %1417 = vmatprep.mubr.f32.mxu0 0.0
  %1418 = vmatmul.mubr.f32.gmra.mxu0 %v1351
  %v1419 = vpop.f32.mrf.mxu0
  %v1420 = vadd.f32 0.0, %v1419
  %v1421 = vpop.f32.mrf.mxu0
  %v1422 = vadd.f32 0.0, %v1421
  %1423 = vdwg.mxu0
  %s1424 = scalar_lea.vmem [#allocation2], 56
  %v1425 = vld [vmem:[%s1424] sm:$0xff]
  %v1426 = vadd.f32 %v1420, %v1425
  %v1427 = vld [vmem:[#allocation3] sm:$0xff]
  %v1428 = vadd.f32 %v1422, %v1427
  %v1429 = vxor.u32 %v1426, 2147483648
  %v1430 = vmul.f32 %v1429, 1.442695
  %v1431 = vpow.pop %v1430
  %v1432 = vadd.f32 %v1431, 1.0
  %v1433 = vrcp.pop %v1432
  %v1434 = vmul.f32 1.0, %v1433
  %v1435 = vtanh.pop %v1426
  %v1436 = vsel %vm51, %v1435, %v1434
  %v1437 = vmul.f32 %v1436, %v1307
  %1439 = vrot.lane.b32.xlu0 %v1436, 64
  %v1440 = vpop.permute.xlu0 %1439
  %v1442 = vmul.f32 %v1436, %v1440
  %1444 = vrot.lane.b32.xlu0 %v1442, 32
  %v1445 = vpop.permute.xlu0 %1444
  %v1447 = vadd.f32 %v1437, %v1445
  %v1448 = vtanh.pop %v1447
  %1450 = vrot.lane.b32.xlu0 %v1448, 64
  %v1451 = vpop.permute.xlu0 %1450
  %v1453 = vmul.f32 %v1436, %v1451
  %v1454 = vxor.u32 %v1428, 2147483648
  %v1455 = vmul.f32 %v1454, 1.442695
  %v1456 = vpow.pop %v1455
  %v1457 = vadd.f32 %v1456, 1.0
  %v1458 = vrcp.pop %v1457
  %v1459 = vmul.f32 1.0, %v1458
  %v1460 = vtanh.pop %v1428
  %v1461 = vsel %vm51, %v1460, %v1459
  %v1462 = vmul.f32 %v1461, %v1332
  %1464 = vrot.lane.b32.xlu0 %v1461, 64
  %v1465 = vpop.permute.xlu0 %1464
  %v1467 = vmul.f32 %v1461, %v1465
  %1469 = vrot.lane.b32.xlu0 %v1467, 32
  %v1470 = vpop.permute.xlu0 %1469
  %v1472 = vadd.f32 %v1462, %v1470
  %v1473 = vtanh.pop %v1472
  %1475 = vrot.lane.b32.xlu0 %v1473, 64
  %v1476 = vpop.permute.xlu0 %1475
  %v1478 = vmul.f32 %v1461, %v1476
  %1480 = vrot.lane.b32.xlu0 %v1453, 32
  %v1481 = vpop.permute.xlu0 %1480
  %1483 = vst.msk [vmem:[%s494] sm:$0xff] %vm92, %v1481
  %1485 = vrot.lane.b32.xlu0 %v1478, 64
  %v1486 = vpop.permute.xlu0 %1485
  %1488 = vst.msk [vmem:[%s13] sm:$0xff] %vm495, %v1486
  %v1489 = vsel %vm92, %v1481, %v1486
  %1490 = vst.msk [vmem:[%s14] sm:$0xff] %vm351, %v1489
  %1492 = vrot.lane.b32.xlu0 %v1447, 96
  %v1493 = vpop.permute.xlu0 %1492
  %v1495 = vsel %vm92, %v1493, %v1472
  %1496 = vst.msk [vmem:[%s15] sm:$0xff] %vm351, %v1495
  %v1497 = vld [vmem:[%s8] sm:$0xff]
  %v1498 = vld [vmem:[%s8 + $0x8] sm:$0xff]
  %v1499 = vld [vmem:[%s8 + $0x10] sm:$0xff]
  %v1500 = vld [vmem:[%s8 + $0x18] sm:$0xff]
  %v1501 = vld [vmem:[%s8 + $0x20] sm:$0xff]
  %v1502 = vld [vmem:[%s8 + $0x28] sm:$0xff]
  %v1503 = vld [vmem:[%s8 + $0x30] sm:$0xff]
  %v1504 = vld [vmem:[%s8 + $0x38] sm:$0xff]
  %v1505 = vld [vmem:[%s9] sm:$0x1]
  %v1506 = vld [vmem:[%s10] sm:$0xff]
  %v1507 = vld [vmem:[%s10 + $0x8] sm:$0xff]
  %v1508 = vld [vmem:[%s10 + $0x10] sm:$0xff]
  %v1509 = vld [vmem:[%s10 + $0x18] sm:$0xff]
  %v1510 = vld [vmem:[%s10 + $0x20] sm:$0xff]
  %v1511 = vld [vmem:[%s10 + $0x28] sm:$0xff]
  %v1512 = vld [vmem:[%s10 + $0x30] sm:$0xff]
  %v1513 = vld [vmem:[%s10 + $0x38] sm:$0xff]
  %v1514 = vld [vmem:[%s11] sm:$0x1]
  %v1515 = vld [vmem:[%s12] sm:$0xff]
  %v1516 = vld [vmem:[%s12 + $0x8] sm:$0xff]
  %v1517 = vld [vmem:[%s12 + $0x10] sm:$0xff]
  %v1518 = vld [vmem:[%s12 + $0x18] sm:$0xff]
  %v1519 = vld [vmem:[%s12 + $0x20] sm:$0xff]
  %v1520 = vld [vmem:[%s12 + $0x28] sm:$0xff]
  %v1521 = vld [vmem:[%s12 + $0x30] sm:$0xff]
  %v1522 = vld [vmem:[%s12 + $0x38] sm:$0xff]
  %v1523 = vld [vmem:[%s12 + $0x40] sm:$0xff]
  %v1524 = vld [vmem:[%s12 + $0x48] sm:$0xff]
  %v1525 = vld [vmem:[%s12 + $0x50] sm:$0xff]
  %v1526 = vld [vmem:[%s12 + $0x58] sm:$0xff]
  %v1527 = vld [vmem:[%s12 + $0x60] sm:$0xff]
  %v1528 = vld [vmem:[%s12 + $0x68] sm:$0xff]
  %v1529 = vld [vmem:[%s12 + $0x70] sm:$0xff]
  %v1530 = vld [vmem:[%s12 + $0x78] sm:$0xff]
  %v1531 = vld [vmem:[%s13] sm:$0xff]
  %v1532 = vld [vmem:[%s13 + $0x8] sm:$0xff]
  %v1533 = vld [vmem:[%s13 + $0x10] sm:$0xff]
  %v1534 = vld [vmem:[%s13 + $0x18] sm:$0xff]
  %v1535 = vld [vmem:[%s13 + $0x20] sm:$0xff]
  %v1536 = vld [vmem:[%s13 + $0x28] sm:$0xff]
  %v1537 = vld [vmem:[%s13 + $0x30] sm:$0xff]
  %v1538 = vld [vmem:[%s13 + $0x38] sm:$0xff]
  %v1540 = vlaneseq
  %v1541 = vshrl.u32 %v1540, 7
  %v1542 = vsub.s32 0, %v1541
  %v1543 = vrot.slane %v1505, %v1542
  %v1546 = vsel %vm351, %v1531, 0
  %v1549 = vsel %vm351, %v1532, 0
  %v1552 = vsel %vm351, %v1533, 0
  %v1555 = vsel %vm351, %v1534, 0
  %v1558 = vsel %vm351, %v1535, 0
  %v1561 = vsel %vm351, %v1536, 0
  %v1564 = vsel %vm351, %v1537, 0
  %v1567 = vsel %vm351, %v1538, 0
  %1569 = vmatprep.subr.mxu0 0.0
  %1570 = vmatpush1.msra.mxu0 0.0
  %1571 = vmatprep.subr.mxu0 0.0
  %1572 = vmatpush1.msra.mxu0 0.0
  %1573 = vmatprep.subr.mxu0 0.0
  %1574 = vmatpush1.msra.mxu0 0.0
  %1575 = vmatprep.subr.mxu0 0.0
  %1576 = vmatpush1.msra.mxu0 0.0
  %1577 = vmatprep.subr.mxu0 0.0
  %1578 = vmatpush1.msra.mxu0 0.0
  %1579 = vmatprep.subr.mxu0 0.0
  %1580 = vmatpush1.msra.mxu0 0.0
  %1581 = vmatprep.subr.mxu0 0.0
  %1582 = vmatpush1.msra.mxu0 0.0
  %1583 = vmatprep.subr.mxu0 0.0
  %1584 = vmatpush1.msra.mxu0 0.0
  %1585 = vmatprep.subr.mxu0 0.0
  %1586 = vmatpush1.msra.mxu0 %v1504
  %1587 = vmatprep.subr.mxu0 0.0
  %1588 = vmatpush1.msra.mxu0 %v1503
  %1589 = vmatprep.subr.mxu0 0.0
  %1590 = vmatpush1.msra.mxu0 %v1502
  %1591 = vmatprep.subr.mxu0 0.0
  %1592 = vmatpush1.msra.mxu0 %v1501
  %1593 = vmatprep.subr.mxu0 0.0
  %1594 = vmatpush1.msra.mxu0 %v1500
  %1595 = vmatprep.subr.mxu0 0.0
  %1596 = vmatpush1.msra.mxu0 %v1499
  %1597 = vmatprep.subr.mxu0 0.0
  %1598 = vmatpush1.msra.mxu0 %v1498
  %1599 = vmatprep.subr.mxu0 0.0
  %1600 = vmatpush1.msra.mxu0 %v1497
  %1601 = vmatprep.subr.mxu0 0.0
  %1602 = vmatpush2.msra.mxu0 0.0
  %1603 = vmatprep.subr.mxu0 0.0
  %1604 = vmatpush2.msra.mxu0 0.0
  %1605 = vmatprep.subr.mxu0 0.0
  %1606 = vmatpush2.msra.mxu0 0.0
  %1607 = vmatprep.subr.mxu0 0.0
  %1608 = vmatpush2.msra.mxu0 0.0
  %1609 = vmatprep.subr.mxu0 0.0
  %1610 = vmatpush2.msra.mxu0 0.0
  %1611 = vmatprep.subr.mxu0 0.0
  %1612 = vmatpush2.msra.mxu0 0.0
  %1613 = vmatprep.subr.mxu0 0.0
  %1614 = vmatpush2.msra.mxu0 0.0
  %1615 = vmatprep.subr.mxu0 0.0
  %1616 = vmatpush2.msra.mxu0 0.0
  %1617 = vmatprep.subr.mxu0 0.0
  %1618 = vmatpush2.msra.mxu0 0.0
  %1619 = vmatprep.subr.mxu0 0.0
  %1620 = vmatpush2.msra.mxu0 0.0
  %1621 = vmatprep.subr.mxu0 0.0
  %1622 = vmatpush2.msra.mxu0 0.0
  %1623 = vmatprep.subr.mxu0 0.0
  %1624 = vmatpush2.msra.mxu0 0.0
  %1625 = vmatprep.subr.mxu0 0.0
  %1626 = vmatpush2.msra.mxu0 0.0
  %1627 = vmatprep.subr.mxu0 0.0
  %1628 = vmatpush2.msra.mxu0 0.0
  %1629 = vmatprep.subr.mxu0 0.0
  %1630 = vmatpush2.msra.mxu0 0.0
  %1631 = vmatprep.subr.mxu0 0.0
  %1632 = vmatpush2.msra.mxu0 0.0
  %1633 = vmatprep.mubr.f32.mxu0 0.0
  %1634 = vmatmul.mubr.f32.gmra.mxu0 %v1546
  %v1635 = vpop.f32.mrf.mxu0
  %v1636 = vadd.f32 %v1543, %v1635
  %v1637 = vpop.f32.mrf.mxu0
  %1638 = vmatprep.mubr.f32.mxu0 0.0
  %1639 = vmatmul.mubr.f32.gmra.mxu0 %v1549
  %v1640 = vpop.f32.mrf.mxu0
  %v1641 = vadd.f32 %v1543, %v1640
  %v1642 = vpop.f32.mrf.mxu0
  %1643 = vmatprep.mubr.f32.mxu0 0.0
  %1644 = vmatmul.mubr.f32.gmra.mxu0 %v1552
  %v1645 = vpop.f32.mrf.mxu0
  %v1646 = vadd.f32 %v1543, %v1645
  %v1647 = vpop.f32.mrf.mxu0
  %1648 = vmatprep.mubr.f32.mxu0 0.0
  %1649 = vmatmul.mubr.f32.gmra.mxu0 %v1555
  %v1650 = vpop.f32.mrf.mxu0
  %v1651 = vadd.f32 %v1543, %v1650
  %v1652 = vpop.f32.mrf.mxu0
  %1653 = vmatprep.mubr.f32.mxu0 0.0
  %1654 = vmatmul.mubr.f32.gmra.mxu0 %v1558
  %v1655 = vpop.f32.mrf.mxu0
  %v1656 = vadd.f32 %v1543, %v1655
  %v1657 = vpop.f32.mrf.mxu0
  %1658 = vmatprep.mubr.f32.mxu0 0.0
  %1659 = vmatmul.mubr.f32.gmra.mxu0 %v1561
  %v1660 = vpop.f32.mrf.mxu0
  %v1661 = vadd.f32 %v1543, %v1660
  %v1662 = vpop.f32.mrf.mxu0
  %1663 = vmatprep.mubr.f32.mxu0 0.0
  %1664 = vmatmul.mubr.f32.gmra.mxu0 %v1564
  %v1665 = vpop.f32.mrf.mxu0
  %v1666 = vadd.f32 %v1543, %v1665
  %v1667 = vpop.f32.mrf.mxu0
  %1668 = vmatprep.mubr.f32.mxu0 0.0
  %1669 = vmatmul.mubr.f32.gmra.mxu0 %v1567
  %v1670 = vpop.f32.mrf.mxu0
  %v1671 = vadd.f32 %v1543, %v1670
  %v1672 = vpop.f32.mrf.mxu0
  %1673 = vdwg.mxu0
  %1674 = vst [vmem:[#allocation2] sm:$0xff] %v1636
  %1675 = vst [vmem:[#allocation2 + $0x8] sm:$0xff] %v1641
  %1676 = vst [vmem:[#allocation2 + $0x10] sm:$0xff] %v1646
  %1677 = vst [vmem:[#allocation2 + $0x18] sm:$0xff] %v1651
  %1678 = vst [vmem:[#allocation2 + $0x20] sm:$0xff] %v1656
  %1679 = vst [vmem:[#allocation2 + $0x28] sm:$0xff] %v1661
  %1680 = vst [vmem:[#allocation2 + $0x30] sm:$0xff] %v1666
  %1681 = vst [vmem:[#allocation2 + $0x38] sm:$0xff] %v1671
  %v1683 = vlaneseq
  %v1684 = vshrl.u32 %v1683, 7
  %v1685 = vsub.s32 0, %v1684
  %v1686 = vrot.slane %v1514, %v1685
  %1688 = vmatprep.subr.mxu0 0.0
  %1689 = vmatpush1.msra.mxu0 0.0
  %1690 = vmatprep.subr.mxu0 0.0
  %1691 = vmatpush1.msra.mxu0 0.0
  %1692 = vmatprep.subr.mxu0 0.0
  %1693 = vmatpush1.msra.mxu0 0.0
  %1694 = vmatprep.subr.mxu0 0.0
  %1695 = vmatpush1.msra.mxu0 0.0
  %1696 = vmatprep.subr.mxu0 0.0
  %1697 = vmatpush1.msra.mxu0 0.0
  %1698 = vmatprep.subr.mxu0 0.0
  %1699 = vmatpush1.msra.mxu0 0.0
  %1700 = vmatprep.subr.mxu0 0.0
  %1701 = vmatpush1.msra.mxu0 0.0
  %1702 = vmatprep.subr.mxu0 0.0
  %1703 = vmatpush1.msra.mxu0 0.0
  %1704 = vmatprep.subr.mxu0 0.0
  %1705 = vmatpush1.msra.mxu0 %v1513
  %1706 = vmatprep.subr.mxu0 0.0
  %1707 = vmatpush1.msra.mxu0 %v1512
  %1708 = vmatprep.subr.mxu0 0.0
  %1709 = vmatpush1.msra.mxu0 %v1511
  %1710 = vmatprep.subr.mxu0 0.0
  %1711 = vmatpush1.msra.mxu0 %v1510
  %1712 = vmatprep.subr.mxu0 0.0
  %1713 = vmatpush1.msra.mxu0 %v1509
  %1714 = vmatprep.subr.mxu0 0.0
  %1715 = vmatpush1.msra.mxu0 %v1508
  %1716 = vmatprep.subr.mxu0 0.0
  %1717 = vmatpush1.msra.mxu0 %v1507
  %1718 = vmatprep.subr.mxu0 0.0
  %1719 = vmatpush1.msra.mxu0 %v1506
  %1720 = vmatprep.subr.mxu0 0.0
  %1721 = vmatpush2.msra.mxu0 0.0
  %1722 = vmatprep.subr.mxu0 0.0
  %1723 = vmatpush2.msra.mxu0 0.0
  %1724 = vmatprep.subr.mxu0 0.0
  %1725 = vmatpush2.msra.mxu0 0.0
  %1726 = vmatprep.subr.mxu0 0.0
  %1727 = vmatpush2.msra.mxu0 0.0
  %1728 = vmatprep.subr.mxu0 0.0
  %1729 = vmatpush2.msra.mxu0 0.0
  %1730 = vmatprep.subr.mxu0 0.0
  %1731 = vmatpush2.msra.mxu0 0.0
  %1732 = vmatprep.subr.mxu0 0.0
  %1733 = vmatpush2.msra.mxu0 0.0
  %1734 = vmatprep.subr.mxu0 0.0
  %1735 = vmatpush2.msra.mxu0 0.0
  %1736 = vmatprep.subr.mxu0 0.0
  %1737 = vmatpush2.msra.mxu0 0.0
  %1738 = vmatprep.subr.mxu0 0.0
  %1739 = vmatpush2.msra.mxu0 0.0
  %1740 = vmatprep.subr.mxu0 0.0
  %1741 = vmatpush2.msra.mxu0 0.0
  %1742 = vmatprep.subr.mxu0 0.0
  %1743 = vmatpush2.msra.mxu0 0.0
  %1744 = vmatprep.subr.mxu0 0.0
  %1745 = vmatpush2.msra.mxu0 0.0
  %1746 = vmatprep.subr.mxu0 0.0
  %1747 = vmatpush2.msra.mxu0 0.0
  %1748 = vmatprep.subr.mxu0 0.0
  %1749 = vmatpush2.msra.mxu0 0.0
  %1750 = vmatprep.subr.mxu0 0.0
  %1751 = vmatpush2.msra.mxu0 0.0
  %1752 = vmatprep.mubr.f32.mxu0 0.0
  %1753 = vmatmul.mubr.f32.gmra.mxu0 %v1546
  %v1754 = vpop.f32.mrf.mxu0
  %v1755 = vadd.f32 %v1686, %v1754
  %v1756 = vpop.f32.mrf.mxu0
  %1757 = vmatprep.mubr.f32.mxu0 0.0
  %1758 = vmatmul.mubr.f32.gmra.mxu0 %v1549
  %v1759 = vpop.f32.mrf.mxu0
  %v1760 = vadd.f32 %v1686, %v1759
  %v1761 = vpop.f32.mrf.mxu0
  %1762 = vmatprep.mubr.f32.mxu0 0.0
  %1763 = vmatmul.mubr.f32.gmra.mxu0 %v1552
  %v1764 = vpop.f32.mrf.mxu0
  %v1765 = vadd.f32 %v1686, %v1764
  %v1766 = vpop.f32.mrf.mxu0
  %1767 = vmatprep.mubr.f32.mxu0 0.0
  %1768 = vmatmul.mubr.f32.gmra.mxu0 %v1555
  %v1769 = vpop.f32.mrf.mxu0
  %v1770 = vadd.f32 %v1686, %v1769
  %v1771 = vpop.f32.mrf.mxu0
  %1772 = vmatprep.mubr.f32.mxu0 0.0
  %1773 = vmatmul.mubr.f32.gmra.mxu0 %v1558
  %v1774 = vpop.f32.mrf.mxu0
  %v1775 = vadd.f32 %v1686, %v1774
  %v1776 = vpop.f32.mrf.mxu0
  %1777 = vmatprep.mubr.f32.mxu0 0.0
  %1778 = vmatmul.mubr.f32.gmra.mxu0 %v1561
  %v1779 = vpop.f32.mrf.mxu0
  %v1780 = vadd.f32 %v1686, %v1779
  %v1781 = vpop.f32.mrf.mxu0
  %1782 = vmatprep.mubr.f32.mxu0 0.0
  %1783 = vmatmul.mubr.f32.gmra.mxu0 %v1564
  %v1784 = vpop.f32.mrf.mxu0
  %v1785 = vadd.f32 %v1686, %v1784
  %v1786 = vpop.f32.mrf.mxu0
  %1787 = vmatprep.mubr.f32.mxu0 0.0
  %1788 = vmatmul.mubr.f32.gmra.mxu0 %v1567
  %v1789 = vpop.f32.mrf.mxu0
  %v1790 = vadd.f32 %v1686, %v1789
  %v1791 = vpop.f32.mrf.mxu0
  %1792 = vdwg.mxu0
  %1793 = vst [vmem:[#allocation3] sm:$0xff] %v1755
  %1794 = vst [vmem:[#allocation3 + $0x8] sm:$0xff] %v1760
  %1795 = vst [vmem:[#allocation3 + $0x10] sm:$0xff] %v1765
  %1796 = vst [vmem:[#allocation3 + $0x18] sm:$0xff] %v1770
  %1797 = vst [vmem:[#allocation3 + $0x20] sm:$0xff] %v1775
  %1798 = vst [vmem:[#allocation3 + $0x28] sm:$0xff] %v1780
  %1799 = vst [vmem:[#allocation3 + $0x30] sm:$0xff] %v1785
  %1800 = vst [vmem:[#allocation3 + $0x38] sm:$0xff] %v1790
  %s1801 = scalar_lea.vmem %s2, 8
  %v1802 = vld [vmem:[%s1801] sm:$0xff]
  %s1803 = scalar_lea.vmem %s1, 8
  %v1804 = vld [vmem:[%s1803] sm:$0xff]
  %v1806 = vsel %vm351, %v1804, 0
  %1808 = vmatprep.subr.mxu0 0.0
  %1809 = vmatpush1.msra.mxu0 0.0
  %1810 = vmatprep.subr.mxu0 0.0
  %1811 = vmatpush1.msra.mxu0 0.0
  %1812 = vmatprep.subr.mxu0 0.0
  %1813 = vmatpush1.msra.mxu0 0.0
  %1814 = vmatprep.subr.mxu0 0.0
  %1815 = vmatpush1.msra.mxu0 0.0
  %1816 = vmatprep.subr.mxu0 0.0
  %1817 = vmatpush1.msra.mxu0 0.0
  %1818 = vmatprep.subr.mxu0 0.0
  %1819 = vmatpush1.msra.mxu0 0.0
  %1820 = vmatprep.subr.mxu0 0.0
  %1821 = vmatpush1.msra.mxu0 0.0
  %1822 = vmatprep.subr.mxu0 0.0
  %1823 = vmatpush1.msra.mxu0 0.0
  %1824 = vmatprep.subr.mxu0 %v1530
  %1825 = vmatpush1.msra.mxu0 %v1529
  %1826 = vmatprep.subr.mxu0 %v1528
  %1827 = vmatpush1.msra.mxu0 %v1527
  %1828 = vmatprep.subr.mxu0 %v1526
  %1829 = vmatpush1.msra.mxu0 %v1525
  %1830 = vmatprep.subr.mxu0 %v1524
  %1831 = vmatpush1.msra.mxu0 %v1523
  %1832 = vmatprep.subr.mxu0 %v1522
  %1833 = vmatpush1.msra.mxu0 %v1521
  %1834 = vmatprep.subr.mxu0 %v1520
  %1835 = vmatpush1.msra.mxu0 %v1519
  %1836 = vmatprep.subr.mxu0 %v1518
  %1837 = vmatpush1.msra.mxu0 %v1517
  %1838 = vmatprep.subr.mxu0 %v1516
  %1839 = vmatpush1.msra.mxu0 %v1515
  %1840 = vmatprep.subr.mxu0 0.0
  %1841 = vmatpush2.msra.mxu0 0.0
  %1842 = vmatprep.subr.mxu0 0.0
  %1843 = vmatpush2.msra.mxu0 0.0
  %1844 = vmatprep.subr.mxu0 0.0
  %1845 = vmatpush2.msra.mxu0 0.0
  %1846 = vmatprep.subr.mxu0 0.0
  %1847 = vmatpush2.msra.mxu0 0.0
  %1848 = vmatprep.subr.mxu0 0.0
  %1849 = vmatpush2.msra.mxu0 0.0
  %1850 = vmatprep.subr.mxu0 0.0
  %1851 = vmatpush2.msra.mxu0 0.0
  %1852 = vmatprep.subr.mxu0 0.0
  %1853 = vmatpush2.msra.mxu0 0.0
  %1854 = vmatprep.subr.mxu0 0.0
  %1855 = vmatpush2.msra.mxu0 0.0
  %1856 = vmatprep.subr.mxu0 0.0
  %1857 = vmatpush2.msra.mxu0 0.0
  %1858 = vmatprep.subr.mxu0 0.0
  %1859 = vmatpush2.msra.mxu0 0.0
  %1860 = vmatprep.subr.mxu0 0.0
  %1861 = vmatpush2.msra.mxu0 0.0
  %1862 = vmatprep.subr.mxu0 0.0
  %1863 = vmatpush2.msra.mxu0 0.0
  %1864 = vmatprep.subr.mxu0 0.0
  %1865 = vmatpush2.msra.mxu0 0.0
  %1866 = vmatprep.subr.mxu0 0.0
  %1867 = vmatpush2.msra.mxu0 0.0
  %1868 = vmatprep.subr.mxu0 0.0
  %1869 = vmatpush2.msra.mxu0 0.0
  %1870 = vmatprep.subr.mxu0 0.0
  %1871 = vmatpush2.msra.mxu0 0.0
  %1872 = vmatprep.mubr.f32.mxu0 0.0
  %1873 = vmatmul.mubr.f32.gmra.mxu0 %v1806
  %v1874 = vpop.f32.mrf.mxu0
  %v1875 = vadd.f32 0.0, %v1874
  %v1876 = vpop.f32.mrf.mxu0
  %v1877 = vadd.f32 0.0, %v1876
  %1878 = vdwg.mxu0
  %v1879 = vld [vmem:[#allocation2] sm:$0xff]
  %v1880 = vadd.f32 %v1875, %v1879
  %v1881 = vld [vmem:[%s428] sm:$0xff]
  %v1882 = vadd.f32 %v1877, %v1881
  %v1883 = vxor.u32 %v1880, 2147483648
  %v1884 = vmul.f32 %v1883, 1.442695
  %v1885 = vpow.pop %v1884
  %v1886 = vadd.f32 %v1885, 1.0
  %v1887 = vrcp.pop %v1886
  %v1888 = vmul.f32 1.0, %v1887
  %v1889 = vtanh.pop %v1880
  %v1890 = vsel %vm51, %v1889, %v1888
  %1892 = vrot.lane.b32.xlu0 %v1802, 32
  %v1893 = vpop.permute.xlu0 %1892
  %v1895 = vmul.f32 %v1890, %v1893
  %1897 = vrot.lane.b32.xlu0 %v1890, 64
  %v1898 = vpop.permute.xlu0 %1897
  %v1900 = vmul.f32 %v1890, %v1898
  %1902 = vrot.lane.b32.xlu0 %v1900, 32
  %v1903 = vpop.permute.xlu0 %1902
  %v1905 = vadd.f32 %v1895, %v1903
  %v1906 = vtanh.pop %v1905
  %1908 = vrot.lane.b32.xlu0 %v1906, 64
  %v1909 = vpop.permute.xlu0 %1908
  %v1911 = vmul.f32 %v1890, %v1909
  %v1912 = vxor.u32 %v1882, 2147483648
  %v1913 = vmul.f32 %v1912, 1.442695
  %v1914 = vpow.pop %v1913
  %v1915 = vadd.f32 %v1914, 1.0
  %v1916 = vrcp.pop %v1915
  %v1917 = vmul.f32 1.0, %v1916
  %v1918 = vtanh.pop %v1882
  %v1919 = vsel %vm51, %v1918, %v1917
  %v1920 = vmul.f32 %v1919, %v1802
  %1922 = vrot.lane.b32.xlu0 %v1919, 64
  %v1923 = vpop.permute.xlu0 %1922
  %v1925 = vmul.f32 %v1919, %v1923
  %1927 = vrot.lane.b32.xlu0 %v1925, 32
  %v1928 = vpop.permute.xlu0 %1927
  %v1930 = vadd.f32 %v1920, %v1928
  %v1931 = vtanh.pop %v1930
  %1933 = vrot.lane.b32.xlu0 %v1931, 64
  %v1934 = vpop.permute.xlu0 %1933
  %v1936 = vmul.f32 %v1919, %v1934
  %1938 = vrot.lane.b32.xlu0 %v1911, 32
  %v1939 = vpop.permute.xlu0 %1938
  %1941 = vst.msk [vmem:[%s13] sm:$0xff] %vm92, %v1939
  %1943 = vrot.lane.b32.xlu0 %v1936, 64
  %v1944 = vpop.permute.xlu0 %1943
  %1946 = vst.msk [vmem:[%s494] sm:$0xff] %vm495, %v1944
  %v1947 = vsel %vm92, %v1939, %v1944
  %v1949 = vsel %vm351, %v1947, 0
  %1951 = vmatprep.subr.mxu0 0.0
  %1952 = vmatpush1.msra.mxu0 0.0
  %1953 = vmatprep.subr.mxu0 0.0
  %1954 = vmatpush1.msra.mxu0 0.0
  %1955 = vmatprep.subr.mxu0 0.0
  %1956 = vmatpush1.msra.mxu0 0.0
  %1957 = vmatprep.subr.mxu0 0.0
  %1958 = vmatpush1.msra.mxu0 0.0
  %1959 = vmatprep.subr.mxu0 0.0
  %1960 = vmatpush1.msra.mxu0 0.0
  %1961 = vmatprep.subr.mxu0 0.0
  %1962 = vmatpush1.msra.mxu0 0.0
  %1963 = vmatprep.subr.mxu0 0.0
  %1964 = vmatpush1.msra.mxu0 0.0
  %1965 = vmatprep.subr.mxu0 0.0
  %1966 = vmatpush1.msra.mxu0 0.0
  %1967 = vmatprep.subr.mxu0 %v1530
  %1968 = vmatpush1.msra.mxu0 %v1529
  %1969 = vmatprep.subr.mxu0 %v1528
  %1970 = vmatpush1.msra.mxu0 %v1527
  %1971 = vmatprep.subr.mxu0 %v1526
  %1972 = vmatpush1.msra.mxu0 %v1525
  %1973 = vmatprep.subr.mxu0 %v1524
  %1974 = vmatpush1.msra.mxu0 %v1523
  %1975 = vmatprep.subr.mxu0 %v1522
  %1976 = vmatpush1.msra.mxu0 %v1521
  %1977 = vmatprep.subr.mxu0 %v1520
  %1978 = vmatpush1.msra.mxu0 %v1519
  %1979 = vmatprep.subr.mxu0 %v1518
  %1980 = vmatpush1.msra.mxu0 %v1517
  %1981 = vmatprep.subr.mxu0 %v1516
  %1982 = vmatpush1.msra.mxu0 %v1515
  %1983 = vmatprep.subr.mxu0 0.0
  %1984 = vmatpush2.msra.mxu0 0.0
  %1985 = vmatprep.subr.mxu0 0.0
  %1986 = vmatpush2.msra.mxu0 0.0
  %1987 = vmatprep.subr.mxu0 0.0
  %1988 = vmatpush2.msra.mxu0 0.0
  %1989 = vmatprep.subr.mxu0 0.0
  %1990 = vmatpush2.msra.mxu0 0.0
  %1991 = vmatprep.subr.mxu0 0.0
  %1992 = vmatpush2.msra.mxu0 0.0
  %1993 = vmatprep.subr.mxu0 0.0
  %1994 = vmatpush2.msra.mxu0 0.0
  %1995 = vmatprep.subr.mxu0 0.0
  %1996 = vmatpush2.msra.mxu0 0.0
  %1997 = vmatprep.subr.mxu0 0.0
  %1998 = vmatpush2.msra.mxu0 0.0
  %1999 = vmatprep.subr.mxu0 0.0
  %2000 = vmatpush2.msra.mxu0 0.0
  %2001 = vmatprep.subr.mxu0 0.0
  %2002 = vmatpush2.msra.mxu0 0.0
  %2003 = vmatprep.subr.mxu0 0.0
  %2004 = vmatpush2.msra.mxu0 0.0
  %2005 = vmatprep.subr.mxu0 0.0
  %2006 = vmatpush2.msra.mxu0 0.0
  %2007 = vmatprep.subr.mxu0 0.0
  %2008 = vmatpush2.msra.mxu0 0.0
  %2009 = vmatprep.subr.mxu0 0.0
  %2010 = vmatpush2.msra.mxu0 0.0
  %2011 = vmatprep.subr.mxu0 0.0
  %2012 = vmatpush2.msra.mxu0 0.0
  %2013 = vmatprep.subr.mxu0 0.0
  %2014 = vmatpush2.msra.mxu0 0.0
  %2015 = vmatprep.mubr.f32.mxu0 0.0
  %2016 = vmatmul.mubr.f32.gmra.mxu0 %v1949
  %v2017 = vpop.f32.mrf.mxu0
  %v2018 = vadd.f32 0.0, %v2017
  %v2019 = vpop.f32.mrf.mxu0
  %v2020 = vadd.f32 0.0, %v2019
  %2021 = vdwg.mxu0
  %v2022 = vld [vmem:[%s572] sm:$0xff]
  %v2023 = vadd.f32 %v2018, %v2022
  %v2024 = vld [vmem:[%s575] sm:$0xff]
  %v2025 = vadd.f32 %v2020, %v2024
  %v2026 = vxor.u32 %v2023, 2147483648
  %v2027 = vmul.f32 %v2026, 1.442695
  %v2028 = vpow.pop %v2027
  %v2029 = vadd.f32 %v2028, 1.0
  %v2030 = vrcp.pop %v2029
  %v2031 = vmul.f32 1.0, %v2030
  %v2032 = vtanh.pop %v2023
  %v2033 = vsel %vm51, %v2032, %v2031
  %v2034 = vmul.f32 %v2033, %v1905
  %2036 = vrot.lane.b32.xlu0 %v2033, 64
  %v2037 = vpop.permute.xlu0 %2036
  %v2039 = vmul.f32 %v2033, %v2037
  %2041 = vrot.lane.b32.xlu0 %v2039, 32
  %v2042 = vpop.permute.xlu0 %2041
  %v2044 = vadd.f32 %v2034, %v2042
  %v2045 = vtanh.pop %v2044
  %2047 = vrot.lane.b32.xlu0 %v2045, 64
  %v2048 = vpop.permute.xlu0 %2047
  %v2050 = vmul.f32 %v2033, %v2048
  %v2051 = vxor.u32 %v2025, 2147483648
  %v2052 = vmul.f32 %v2051, 1.442695
  %v2053 = vpow.pop %v2052
  %v2054 = vadd.f32 %v2053, 1.0
  %v2055 = vrcp.pop %v2054
  %v2056 = vmul.f32 1.0, %v2055
  %v2057 = vtanh.pop %v2025
  %v2058 = vsel %vm51, %v2057, %v2056
  %v2059 = vmul.f32 %v2058, %v1930
  %2061 = vrot.lane.b32.xlu0 %v2058, 64
  %v2062 = vpop.permute.xlu0 %2061
  %v2064 = vmul.f32 %v2058, %v2062
  %2066 = vrot.lane.b32.xlu0 %v2064, 32
  %v2067 = vpop.permute.xlu0 %2066
  %v2069 = vadd.f32 %v2059, %v2067
  %v2070 = vtanh.pop %v2069
  %2072 = vrot.lane.b32.xlu0 %v2070, 64
  %v2073 = vpop.permute.xlu0 %2072
  %v2075 = vmul.f32 %v2058, %v2073
  %2077 = vrot.lane.b32.xlu0 %v2050, 32
  %v2078 = vpop.permute.xlu0 %2077
  %2080 = vst.msk [vmem:[%s632] sm:$0xff] %vm92, %v2078
  %2082 = vrot.lane.b32.xlu0 %v2075, 64
  %v2083 = vpop.permute.xlu0 %2082
  %2085 = vst.msk [vmem:[%s638] sm:$0xff] %vm495, %v2083
  %v2086 = vsel %vm92, %v2078, %v2083
  %v2088 = vsel %vm351, %v2086, 0
  %2090 = vmatprep.subr.mxu0 0.0
  %2091 = vmatpush1.msra.mxu0 0.0
  %2092 = vmatprep.subr.mxu0 0.0
  %2093 = vmatpush1.msra.mxu0 0.0
  %2094 = vmatprep.subr.mxu0 0.0
  %2095 = vmatpush1.msra.mxu0 0.0
  %2096 = vmatprep.subr.mxu0 0.0
  %2097 = vmatpush1.msra.mxu0 0.0
  %2098 = vmatprep.subr.mxu0 0.0
  %2099 = vmatpush1.msra.mxu0 0.0
  %2100 = vmatprep.subr.mxu0 0.0
  %2101 = vmatpush1.msra.mxu0 0.0
  %2102 = vmatprep.subr.mxu0 0.0
  %2103 = vmatpush1.msra.mxu0 0.0
  %2104 = vmatprep.subr.mxu0 0.0
  %2105 = vmatpush1.msra.mxu0 0.0
  %2106 = vmatprep.subr.mxu0 %v1530
  %2107 = vmatpush1.msra.mxu0 %v1529
  %2108 = vmatprep.subr.mxu0 %v1528
  %2109 = vmatpush1.msra.mxu0 %v1527
  %2110 = vmatprep.subr.mxu0 %v1526
  %2111 = vmatpush1.msra.mxu0 %v1525
  %2112 = vmatprep.subr.mxu0 %v1524
  %2113 = vmatpush1.msra.mxu0 %v1523
  %2114 = vmatprep.subr.mxu0 %v1522
  %2115 = vmatpush1.msra.mxu0 %v1521
  %2116 = vmatprep.subr.mxu0 %v1520
  %2117 = vmatpush1.msra.mxu0 %v1519
  %2118 = vmatprep.subr.mxu0 %v1518
  %2119 = vmatpush1.msra.mxu0 %v1517
  %2120 = vmatprep.subr.mxu0 %v1516
  %2121 = vmatpush1.msra.mxu0 %v1515
  %2122 = vmatprep.subr.mxu0 0.0
  %2123 = vmatpush2.msra.mxu0 0.0
  %2124 = vmatprep.subr.mxu0 0.0
  %2125 = vmatpush2.msra.mxu0 0.0
  %2126 = vmatprep.subr.mxu0 0.0
  %2127 = vmatpush2.msra.mxu0 0.0
  %2128 = vmatprep.subr.mxu0 0.0
  %2129 = vmatpush2.msra.mxu0 0.0
  %2130 = vmatprep.subr.mxu0 0.0
  %2131 = vmatpush2.msra.mxu0 0.0
  %2132 = vmatprep.subr.mxu0 0.0
  %2133 = vmatpush2.msra.mxu0 0.0
  %2134 = vmatprep.subr.mxu0 0.0
  %2135 = vmatpush2.msra.mxu0 0.0
  %2136 = vmatprep.subr.mxu0 0.0
  %2137 = vmatpush2.msra.mxu0 0.0
  %2138 = vmatprep.subr.mxu0 0.0
  %2139 = vmatpush2.msra.mxu0 0.0
  %2140 = vmatprep.subr.mxu0 0.0
  %2141 = vmatpush2.msra.mxu0 0.0
  %2142 = vmatprep.subr.mxu0 0.0
  %2143 = vmatpush2.msra.mxu0 0.0
  %2144 = vmatprep.subr.mxu0 0.0
  %2145 = vmatpush2.msra.mxu0 0.0
  %2146 = vmatprep.subr.mxu0 0.0
  %2147 = vmatpush2.msra.mxu0 0.0
  %2148 = vmatprep.subr.mxu0 0.0
  %2149 = vmatpush2.msra.mxu0 0.0
  %2150 = vmatprep.subr.mxu0 0.0
  %2151 = vmatpush2.msra.mxu0 0.0
  %2152 = vmatprep.subr.mxu0 0.0
  %2153 = vmatpush2.msra.mxu0 0.0
  %2154 = vmatprep.mubr.f32.mxu0 0.0
  %2155 = vmatmul.mubr.f32.gmra.mxu0 %v2088
  %v2156 = vpop.f32.mrf.mxu0
  %v2157 = vadd.f32 0.0, %v2156
  %v2158 = vpop.f32.mrf.mxu0
  %v2159 = vadd.f32 0.0, %v2158
  %2160 = vdwg.mxu0
  %v2161 = vld [vmem:[%s715] sm:$0xff]
  %v2162 = vadd.f32 %v2157, %v2161
  %v2163 = vld [vmem:[%s718] sm:$0xff]
  %v2164 = vadd.f32 %v2159, %v2163
  %v2165 = vxor.u32 %v2162, 2147483648
  %v2166 = vmul.f32 %v2165, 1.442695
  %v2167 = vpow.pop %v2166
  %v2168 = vadd.f32 %v2167, 1.0
  %v2169 = vrcp.pop %v2168
  %v2170 = vmul.f32 1.0, %v2169
  %v2171 = vtanh.pop %v2162
  %v2172 = vsel %vm51, %v2171, %v2170
  %v2173 = vmul.f32 %v2172, %v2044
  %2175 = vrot.lane.b32.xlu0 %v2172, 64
  %v2176 = vpop.permute.xlu0 %2175
  %v2178 = vmul.f32 %v2172, %v2176
  %2180 = vrot.lane.b32.xlu0 %v2178, 32
  %v2181 = vpop.permute.xlu0 %2180
  %v2183 = vadd.f32 %v2173, %v2181
  %v2184 = vtanh.pop %v2183
  %2186 = vrot.lane.b32.xlu0 %v2184, 64
  %v2187 = vpop.permute.xlu0 %2186
  %v2189 = vmul.f32 %v2172, %v2187
  %v2190 = vxor.u32 %v2164, 2147483648
  %v2191 = vmul.f32 %v2190, 1.442695
  %v2192 = vpow.pop %v2191
  %v2193 = vadd.f32 %v2192, 1.0
  %v2194 = vrcp.pop %v2193
  %v2195 = vmul.f32 1.0, %v2194
  %v2196 = vtanh.pop %v2164
  %v2197 = vsel %vm51, %v2196, %v2195
  %v2198 = vmul.f32 %v2197, %v2069
  %2200 = vrot.lane.b32.xlu0 %v2197, 64
  %v2201 = vpop.permute.xlu0 %2200
  %v2203 = vmul.f32 %v2197, %v2201
  %2205 = vrot.lane.b32.xlu0 %v2203, 32
  %v2206 = vpop.permute.xlu0 %2205
  %v2208 = vadd.f32 %v2198, %v2206
  %v2209 = vtanh.pop %v2208
  %2211 = vrot.lane.b32.xlu0 %v2209, 64
  %v2212 = vpop.permute.xlu0 %2211
  %v2214 = vmul.f32 %v2197, %v2212
  %2216 = vrot.lane.b32.xlu0 %v2189, 32
  %v2217 = vpop.permute.xlu0 %2216
  %2219 = vst.msk [vmem:[%s775] sm:$0xff] %vm92, %v2217
  %2221 = vrot.lane.b32.xlu0 %v2214, 64
  %v2222 = vpop.permute.xlu0 %2221
  %2224 = vst.msk [vmem:[%s781] sm:$0xff] %vm495, %v2222
  %v2225 = vsel %vm92, %v2217, %v2222
  %v2227 = vsel %vm351, %v2225, 0
  %2229 = vmatprep.subr.mxu0 0.0
  %2230 = vmatpush1.msra.mxu0 0.0
  %2231 = vmatprep.subr.mxu0 0.0
  %2232 = vmatpush1.msra.mxu0 0.0
  %2233 = vmatprep.subr.mxu0 0.0
  %2234 = vmatpush1.msra.mxu0 0.0
  %2235 = vmatprep.subr.mxu0 0.0
  %2236 = vmatpush1.msra.mxu0 0.0
  %2237 = vmatprep.subr.mxu0 0.0
  %2238 = vmatpush1.msra.mxu0 0.0
  %2239 = vmatprep.subr.mxu0 0.0
  %2240 = vmatpush1.msra.mxu0 0.0
  %2241 = vmatprep.subr.mxu0 0.0
  %2242 = vmatpush1.msra.mxu0 0.0
  %2243 = vmatprep.subr.mxu0 0.0
  %2244 = vmatpush1.msra.mxu0 0.0
  %2245 = vmatprep.subr.mxu0 %v1530
  %2246 = vmatpush1.msra.mxu0 %v1529
  %2247 = vmatprep.subr.mxu0 %v1528
  %2248 = vmatpush1.msra.mxu0 %v1527
  %2249 = vmatprep.subr.mxu0 %v1526
  %2250 = vmatpush1.msra.mxu0 %v1525
  %2251 = vmatprep.subr.mxu0 %v1524
  %2252 = vmatpush1.msra.mxu0 %v1523
  %2253 = vmatprep.subr.mxu0 %v1522
  %2254 = vmatpush1.msra.mxu0 %v1521
  %2255 = vmatprep.subr.mxu0 %v1520
  %2256 = vmatpush1.msra.mxu0 %v1519
  %2257 = vmatprep.subr.mxu0 %v1518
  %2258 = vmatpush1.msra.mxu0 %v1517
  %2259 = vmatprep.subr.mxu0 %v1516
  %2260 = vmatpush1.msra.mxu0 %v1515
  %2261 = vmatprep.subr.mxu0 0.0
  %2262 = vmatpush2.msra.mxu0 0.0
  %2263 = vmatprep.subr.mxu0 0.0
  %2264 = vmatpush2.msra.mxu0 0.0
  %2265 = vmatprep.subr.mxu0 0.0
  %2266 = vmatpush2.msra.mxu0 0.0
  %2267 = vmatprep.subr.mxu0 0.0
  %2268 = vmatpush2.msra.mxu0 0.0
  %2269 = vmatprep.subr.mxu0 0.0
  %2270 = vmatpush2.msra.mxu0 0.0
  %2271 = vmatprep.subr.mxu0 0.0
  %2272 = vmatpush2.msra.mxu0 0.0
  %2273 = vmatprep.subr.mxu0 0.0
  %2274 = vmatpush2.msra.mxu0 0.0
  %2275 = vmatprep.subr.mxu0 0.0
  %2276 = vmatpush2.msra.mxu0 0.0
  %2277 = vmatprep.subr.mxu0 0.0
  %2278 = vmatpush2.msra.mxu0 0.0
  %2279 = vmatprep.subr.mxu0 0.0
  %2280 = vmatpush2.msra.mxu0 0.0
  %2281 = vmatprep.subr.mxu0 0.0
  %2282 = vmatpush2.msra.mxu0 0.0
  %2283 = vmatprep.subr.mxu0 0.0
  %2284 = vmatpush2.msra.mxu0 0.0
  %2285 = vmatprep.subr.mxu0 0.0
  %2286 = vmatpush2.msra.mxu0 0.0
  %2287 = vmatprep.subr.mxu0 0.0
  %2288 = vmatpush2.msra.mxu0 0.0
  %2289 = vmatprep.subr.mxu0 0.0
  %2290 = vmatpush2.msra.mxu0 0.0
  %2291 = vmatprep.subr.mxu0 0.0
  %2292 = vmatpush2.msra.mxu0 0.0
  %2293 = vmatprep.mubr.f32.mxu0 0.0
  %2294 = vmatmul.mubr.f32.gmra.mxu0 %v2227
  %v2295 = vpop.f32.mrf.mxu0
  %v2296 = vadd.f32 0.0, %v2295
  %v2297 = vpop.f32.mrf.mxu0
  %v2298 = vadd.f32 0.0, %v2297
  %2299 = vdwg.mxu0
  %v2300 = vld [vmem:[%s858] sm:$0xff]
  %v2301 = vadd.f32 %v2296, %v2300
  %v2302 = vld [vmem:[%s861] sm:$0xff]
  %v2303 = vadd.f32 %v2298, %v2302
  %v2304 = vxor.u32 %v2301, 2147483648
  %v2305 = vmul.f32 %v2304, 1.442695
  %v2306 = vpow.pop %v2305
  %v2307 = vadd.f32 %v2306, 1.0
  %v2308 = vrcp.pop %v2307
  %v2309 = vmul.f32 1.0, %v2308
  %v2310 = vtanh.pop %v2301
  %v2311 = vsel %vm51, %v2310, %v2309
  %v2312 = vmul.f32 %v2311, %v2183
  %2314 = vrot.lane.b32.xlu0 %v2311, 64
  %v2315 = vpop.permute.xlu0 %2314
  %v2317 = vmul.f32 %v2311, %v2315
  %2319 = vrot.lane.b32.xlu0 %v2317, 32
  %v2320 = vpop.permute.xlu0 %2319
  %v2322 = vadd.f32 %v2312, %v2320
  %v2323 = vtanh.pop %v2322
  %2325 = vrot.lane.b32.xlu0 %v2323, 64
  %v2326 = vpop.permute.xlu0 %2325
  %v2328 = vmul.f32 %v2311, %v2326
  %v2329 = vxor.u32 %v2303, 2147483648
  %v2330 = vmul.f32 %v2329, 1.442695
  %v2331 = vpow.pop %v2330
  %v2332 = vadd.f32 %v2331, 1.0
  %v2333 = vrcp.pop %v2332
  %v2334 = vmul.f32 1.0, %v2333
  %v2335 = vtanh.pop %v2303
  %v2336 = vsel %vm51, %v2335, %v2334
  %v2337 = vmul.f32 %v2336, %v2208
  %2339 = vrot.lane.b32.xlu0 %v2336, 64
  %v2340 = vpop.permute.xlu0 %2339
  %v2342 = vmul.f32 %v2336, %v2340
  %2344 = vrot.lane.b32.xlu0 %v2342, 32
  %v2345 = vpop.permute.xlu0 %2344
  %v2347 = vadd.f32 %v2337, %v2345
  %v2348 = vtanh.pop %v2347
  %2350 = vrot.lane.b32.xlu0 %v2348, 64
  %v2351 = vpop.permute.xlu0 %2350
  %v2353 = vmul.f32 %v2336, %v2351
  %2355 = vrot.lane.b32.xlu0 %v2328, 32
  %v2356 = vpop.permute.xlu0 %2355
  %2358 = vst.msk [vmem:[%s918] sm:$0xff] %vm92, %v2356
  %2360 = vrot.lane.b32.xlu0 %v2353, 64
  %v2361 = vpop.permute.xlu0 %2360
  %2363 = vst.msk [vmem:[%s924] sm:$0xff] %vm495, %v2361
  %v2364 = vsel %vm92, %v2356, %v2361
  %v2366 = vsel %vm351, %v2364, 0
  %2368 = vmatprep.subr.mxu0 0.0
  %2369 = vmatpush1.msra.mxu0 0.0
  %2370 = vmatprep.subr.mxu0 0.0
  %2371 = vmatpush1.msra.mxu0 0.0
  %2372 = vmatprep.subr.mxu0 0.0
  %2373 = vmatpush1.msra.mxu0 0.0
  %2374 = vmatprep.subr.mxu0 0.0
  %2375 = vmatpush1.msra.mxu0 0.0
  %2376 = vmatprep.subr.mxu0 0.0
  %2377 = vmatpush1.msra.mxu0 0.0
  %2378 = vmatprep.subr.mxu0 0.0
  %2379 = vmatpush1.msra.mxu0 0.0
  %2380 = vmatprep.subr.mxu0 0.0
  %2381 = vmatpush1.msra.mxu0 0.0
  %2382 = vmatprep.subr.mxu0 0.0
  %2383 = vmatpush1.msra.mxu0 0.0
  %2384 = vmatprep.subr.mxu0 %v1530
  %2385 = vmatpush1.msra.mxu0 %v1529
  %2386 = vmatprep.subr.mxu0 %v1528
  %2387 = vmatpush1.msra.mxu0 %v1527
  %2388 = vmatprep.subr.mxu0 %v1526
  %2389 = vmatpush1.msra.mxu0 %v1525
  %2390 = vmatprep.subr.mxu0 %v1524
  %2391 = vmatpush1.msra.mxu0 %v1523
  %2392 = vmatprep.subr.mxu0 %v1522
  %2393 = vmatpush1.msra.mxu0 %v1521
  %2394 = vmatprep.subr.mxu0 %v1520
  %2395 = vmatpush1.msra.mxu0 %v1519
  %2396 = vmatprep.subr.mxu0 %v1518
  %2397 = vmatpush1.msra.mxu0 %v1517
  %2398 = vmatprep.subr.mxu0 %v1516
  %2399 = vmatpush1.msra.mxu0 %v1515
  %2400 = vmatprep.subr.mxu0 0.0
  %2401 = vmatpush2.msra.mxu0 0.0
  %2402 = vmatprep.subr.mxu0 0.0
  %2403 = vmatpush2.msra.mxu0 0.0
  %2404 = vmatprep.subr.mxu0 0.0
  %2405 = vmatpush2.msra.mxu0 0.0
  %2406 = vmatprep.subr.mxu0 0.0
  %2407 = vmatpush2.msra.mxu0 0.0
  %2408 = vmatprep.subr.mxu0 0.0
  %2409 = vmatpush2.msra.mxu0 0.0
  %2410 = vmatprep.subr.mxu0 0.0
  %2411 = vmatpush2.msra.mxu0 0.0
  %2412 = vmatprep.subr.mxu0 0.0
  %2413 = vmatpush2.msra.mxu0 0.0
  %2414 = vmatprep.subr.mxu0 0.0
  %2415 = vmatpush2.msra.mxu0 0.0
  %2416 = vmatprep.subr.mxu0 0.0
  %2417 = vmatpush2.msra.mxu0 0.0
  %2418 = vmatprep.subr.mxu0 0.0
  %2419 = vmatpush2.msra.mxu0 0.0
  %2420 = vmatprep.subr.mxu0 0.0
  %2421 = vmatpush2.msra.mxu0 0.0
  %2422 = vmatprep.subr.mxu0 0.0
  %2423 = vmatpush2.msra.mxu0 0.0
  %2424 = vmatprep.subr.mxu0 0.0
  %2425 = vmatpush2.msra.mxu0 0.0
  %2426 = vmatprep.subr.mxu0 0.0
  %2427 = vmatpush2.msra.mxu0 0.0
  %2428 = vmatprep.subr.mxu0 0.0
  %2429 = vmatpush2.msra.mxu0 0.0
  %2430 = vmatprep.subr.mxu0 0.0
  %2431 = vmatpush2.msra.mxu0 0.0
  %2432 = vmatprep.mubr.f32.mxu0 0.0
  %2433 = vmatmul.mubr.f32.gmra.mxu0 %v2366
  %v2434 = vpop.f32.mrf.mxu0
  %v2435 = vadd.f32 0.0, %v2434
  %v2436 = vpop.f32.mrf.mxu0
  %v2437 = vadd.f32 0.0, %v2436
  %2438 = vdwg.mxu0
  %v2439 = vld [vmem:[%s1001] sm:$0xff]
  %v2440 = vadd.f32 %v2435, %v2439
  %v2441 = vld [vmem:[%s1004] sm:$0xff]
  %v2442 = vadd.f32 %v2437, %v2441
  %v2443 = vxor.u32 %v2440, 2147483648
  %v2444 = vmul.f32 %v2443, 1.442695
  %v2445 = vpow.pop %v2444
  %v2446 = vadd.f32 %v2445, 1.0
  %v2447 = vrcp.pop %v2446
  %v2448 = vmul.f32 1.0, %v2447
  %v2449 = vtanh.pop %v2440
  %v2450 = vsel %vm51, %v2449, %v2448
  %v2451 = vmul.f32 %v2450, %v2322
  %2453 = vrot.lane.b32.xlu0 %v2450, 64
  %v2454 = vpop.permute.xlu0 %2453
  %v2456 = vmul.f32 %v2450, %v2454
  %2458 = vrot.lane.b32.xlu0 %v2456, 32
  %v2459 = vpop.permute.xlu0 %2458
  %v2461 = vadd.f32 %v2451, %v2459
  %v2462 = vtanh.pop %v2461
  %2464 = vrot.lane.b32.xlu0 %v2462, 64
  %v2465 = vpop.permute.xlu0 %2464
  %v2467 = vmul.f32 %v2450, %v2465
  %v2468 = vxor.u32 %v2442, 2147483648
  %v2469 = vmul.f32 %v2468, 1.442695
  %v2470 = vpow.pop %v2469
  %v2471 = vadd.f32 %v2470, 1.0
  %v2472 = vrcp.pop %v2471
  %v2473 = vmul.f32 1.0, %v2472
  %v2474 = vtanh.pop %v2442
  %v2475 = vsel %vm51, %v2474, %v2473
  %v2476 = vmul.f32 %v2475, %v2347
  %2478 = vrot.lane.b32.xlu0 %v2475, 64
  %v2479 = vpop.permute.xlu0 %2478
  %v2481 = vmul.f32 %v2475, %v2479
  %2483 = vrot.lane.b32.xlu0 %v2481, 32
  %v2484 = vpop.permute.xlu0 %2483
  %v2486 = vadd.f32 %v2476, %v2484
  %v2487 = vtanh.pop %v2486
  %2489 = vrot.lane.b32.xlu0 %v2487, 64
  %v2490 = vpop.permute.xlu0 %2489
  %v2492 = vmul.f32 %v2475, %v2490
  %2494 = vrot.lane.b32.xlu0 %v2467, 32
  %v2495 = vpop.permute.xlu0 %2494
  %2497 = vst.msk [vmem:[%s924] sm:$0xff] %vm92, %v2495
  %2499 = vrot.lane.b32.xlu0 %v2492, 64
  %v2500 = vpop.permute.xlu0 %2499
  %2502 = vst.msk [vmem:[%s918] sm:$0xff] %vm495, %v2500
  %v2503 = vsel %vm92, %v2495, %v2500
  %v2505 = vsel %vm351, %v2503, 0
  %2507 = vmatprep.subr.mxu0 0.0
  %2508 = vmatpush1.msra.mxu0 0.0
  %2509 = vmatprep.subr.mxu0 0.0
  %2510 = vmatpush1.msra.mxu0 0.0
  %2511 = vmatprep.subr.mxu0 0.0
  %2512 = vmatpush1.msra.mxu0 0.0
  %2513 = vmatprep.subr.mxu0 0.0
  %2514 = vmatpush1.msra.mxu0 0.0
  %2515 = vmatprep.subr.mxu0 0.0
  %2516 = vmatpush1.msra.mxu0 0.0
  %2517 = vmatprep.subr.mxu0 0.0
  %2518 = vmatpush1.msra.mxu0 0.0
  %2519 = vmatprep.subr.mxu0 0.0
  %2520 = vmatpush1.msra.mxu0 0.0
  %2521 = vmatprep.subr.mxu0 0.0
  %2522 = vmatpush1.msra.mxu0 0.0
  %2523 = vmatprep.subr.mxu0 %v1530
  %2524 = vmatpush1.msra.mxu0 %v1529
  %2525 = vmatprep.subr.mxu0 %v1528
  %2526 = vmatpush1.msra.mxu0 %v1527
  %2527 = vmatprep.subr.mxu0 %v1526
  %2528 = vmatpush1.msra.mxu0 %v1525
  %2529 = vmatprep.subr.mxu0 %v1524
  %2530 = vmatpush1.msra.mxu0 %v1523
  %2531 = vmatprep.subr.mxu0 %v1522
  %2532 = vmatpush1.msra.mxu0 %v1521
  %2533 = vmatprep.subr.mxu0 %v1520
  %2534 = vmatpush1.msra.mxu0 %v1519
  %2535 = vmatprep.subr.mxu0 %v1518
  %2536 = vmatpush1.msra.mxu0 %v1517
  %2537 = vmatprep.subr.mxu0 %v1516
  %2538 = vmatpush1.msra.mxu0 %v1515
  %2539 = vmatprep.subr.mxu0 0.0
  %2540 = vmatpush2.msra.mxu0 0.0
  %2541 = vmatprep.subr.mxu0 0.0
  %2542 = vmatpush2.msra.mxu0 0.0
  %2543 = vmatprep.subr.mxu0 0.0
  %2544 = vmatpush2.msra.mxu0 0.0
  %2545 = vmatprep.subr.mxu0 0.0
  %2546 = vmatpush2.msra.mxu0 0.0
  %2547 = vmatprep.subr.mxu0 0.0
  %2548 = vmatpush2.msra.mxu0 0.0
  %2549 = vmatprep.subr.mxu0 0.0
  %2550 = vmatpush2.msra.mxu0 0.0
  %2551 = vmatprep.subr.mxu0 0.0
  %2552 = vmatpush2.msra.mxu0 0.0
  %2553 = vmatprep.subr.mxu0 0.0
  %2554 = vmatpush2.msra.mxu0 0.0
  %2555 = vmatprep.subr.mxu0 0.0
  %2556 = vmatpush2.msra.mxu0 0.0
  %2557 = vmatprep.subr.mxu0 0.0
  %2558 = vmatpush2.msra.mxu0 0.0
  %2559 = vmatprep.subr.mxu0 0.0
  %2560 = vmatpush2.msra.mxu0 0.0
  %2561 = vmatprep.subr.mxu0 0.0
  %2562 = vmatpush2.msra.mxu0 0.0
  %2563 = vmatprep.subr.mxu0 0.0
  %2564 = vmatpush2.msra.mxu0 0.0
  %2565 = vmatprep.subr.mxu0 0.0
  %2566 = vmatpush2.msra.mxu0 0.0
  %2567 = vmatprep.subr.mxu0 0.0
  %2568 = vmatpush2.msra.mxu0 0.0
  %2569 = vmatprep.subr.mxu0 0.0
  %2570 = vmatpush2.msra.mxu0 0.0
  %2571 = vmatprep.mubr.f32.mxu0 0.0
  %2572 = vmatmul.mubr.f32.gmra.mxu0 %v2505
  %v2573 = vpop.f32.mrf.mxu0
  %v2574 = vadd.f32 0.0, %v2573
  %v2575 = vpop.f32.mrf.mxu0
  %v2576 = vadd.f32 0.0, %v2575
  %2577 = vdwg.mxu0
  %v2578 = vld [vmem:[%s1142] sm:$0xff]
  %v2579 = vadd.f32 %v2574, %v2578
  %v2580 = vld [vmem:[%s1145] sm:$0xff]
  %v2581 = vadd.f32 %v2576, %v2580
  %v2582 = vxor.u32 %v2579, 2147483648
  %v2583 = vmul.f32 %v2582, 1.442695
  %v2584 = vpow.pop %v2583
  %v2585 = vadd.f32 %v2584, 1.0
  %v2586 = vrcp.pop %v2585
  %v2587 = vmul.f32 1.0, %v2586
  %v2588 = vtanh.pop %v2579
  %v2589 = vsel %vm51, %v2588, %v2587
  %v2590 = vmul.f32 %v2589, %v2461
  %2592 = vrot.lane.b32.xlu0 %v2589, 64
  %v2593 = vpop.permute.xlu0 %2592
  %v2595 = vmul.f32 %v2589, %v2593
  %2597 = vrot.lane.b32.xlu0 %v2595, 32
  %v2598 = vpop.permute.xlu0 %2597
  %v2600 = vadd.f32 %v2590, %v2598
  %v2601 = vtanh.pop %v2600
  %2603 = vrot.lane.b32.xlu0 %v2601, 64
  %v2604 = vpop.permute.xlu0 %2603
  %v2606 = vmul.f32 %v2589, %v2604
  %v2607 = vxor.u32 %v2581, 2147483648
  %v2608 = vmul.f32 %v2607, 1.442695
  %v2609 = vpow.pop %v2608
  %v2610 = vadd.f32 %v2609, 1.0
  %v2611 = vrcp.pop %v2610
  %v2612 = vmul.f32 1.0, %v2611
  %v2613 = vtanh.pop %v2581
  %v2614 = vsel %vm51, %v2613, %v2612
  %v2615 = vmul.f32 %v2614, %v2486
  %2617 = vrot.lane.b32.xlu0 %v2614, 64
  %v2618 = vpop.permute.xlu0 %2617
  %v2620 = vmul.f32 %v2614, %v2618
  %2622 = vrot.lane.b32.xlu0 %v2620, 32
  %v2623 = vpop.permute.xlu0 %2622
  %v2625 = vadd.f32 %v2615, %v2623
  %v2626 = vtanh.pop %v2625
  %2628 = vrot.lane.b32.xlu0 %v2626, 64
  %v2629 = vpop.permute.xlu0 %2628
  %v2631 = vmul.f32 %v2614, %v2629
  %2633 = vrot.lane.b32.xlu0 %v2606, 32
  %v2634 = vpop.permute.xlu0 %2633
  %2636 = vst.msk [vmem:[%s781] sm:$0xff] %vm92, %v2634
  %2638 = vrot.lane.b32.xlu0 %v2631, 64
  %v2639 = vpop.permute.xlu0 %2638
  %2641 = vst.msk [vmem:[%s775] sm:$0xff] %vm495, %v2639
  %v2642 = vsel %vm92, %v2634, %v2639
  %v2644 = vsel %vm351, %v2642, 0
  %2646 = vmatprep.subr.mxu0 0.0
  %2647 = vmatpush1.msra.mxu0 0.0
  %2648 = vmatprep.subr.mxu0 0.0
  %2649 = vmatpush1.msra.mxu0 0.0
  %2650 = vmatprep.subr.mxu0 0.0
  %2651 = vmatpush1.msra.mxu0 0.0
  %2652 = vmatprep.subr.mxu0 0.0
  %2653 = vmatpush1.msra.mxu0 0.0
  %2654 = vmatprep.subr.mxu0 0.0
  %2655 = vmatpush1.msra.mxu0 0.0
  %2656 = vmatprep.subr.mxu0 0.0
  %2657 = vmatpush1.msra.mxu0 0.0
  %2658 = vmatprep.subr.mxu0 0.0
  %2659 = vmatpush1.msra.mxu0 0.0
  %2660 = vmatprep.subr.mxu0 0.0
  %2661 = vmatpush1.msra.mxu0 0.0
  %2662 = vmatprep.subr.mxu0 %v1530
  %2663 = vmatpush1.msra.mxu0 %v1529
  %2664 = vmatprep.subr.mxu0 %v1528
  %2665 = vmatpush1.msra.mxu0 %v1527
  %2666 = vmatprep.subr.mxu0 %v1526
  %2667 = vmatpush1.msra.mxu0 %v1525
  %2668 = vmatprep.subr.mxu0 %v1524
  %2669 = vmatpush1.msra.mxu0 %v1523
  %2670 = vmatprep.subr.mxu0 %v1522
  %2671 = vmatpush1.msra.mxu0 %v1521
  %2672 = vmatprep.subr.mxu0 %v1520
  %2673 = vmatpush1.msra.mxu0 %v1519
  %2674 = vmatprep.subr.mxu0 %v1518
  %2675 = vmatpush1.msra.mxu0 %v1517
  %2676 = vmatprep.subr.mxu0 %v1516
  %2677 = vmatpush1.msra.mxu0 %v1515
  %2678 = vmatprep.subr.mxu0 0.0
  %2679 = vmatpush2.msra.mxu0 0.0
  %2680 = vmatprep.subr.mxu0 0.0
  %2681 = vmatpush2.msra.mxu0 0.0
  %2682 = vmatprep.subr.mxu0 0.0
  %2683 = vmatpush2.msra.mxu0 0.0
  %2684 = vmatprep.subr.mxu0 0.0
  %2685 = vmatpush2.msra.mxu0 0.0
  %2686 = vmatprep.subr.mxu0 0.0
  %2687 = vmatpush2.msra.mxu0 0.0
  %2688 = vmatprep.subr.mxu0 0.0
  %2689 = vmatpush2.msra.mxu0 0.0
  %2690 = vmatprep.subr.mxu0 0.0
  %2691 = vmatpush2.msra.mxu0 0.0
  %2692 = vmatprep.subr.mxu0 0.0
  %2693 = vmatpush2.msra.mxu0 0.0
  %2694 = vmatprep.subr.mxu0 0.0
  %2695 = vmatpush2.msra.mxu0 0.0
  %2696 = vmatprep.subr.mxu0 0.0
  %2697 = vmatpush2.msra.mxu0 0.0
  %2698 = vmatprep.subr.mxu0 0.0
  %2699 = vmatpush2.msra.mxu0 0.0
  %2700 = vmatprep.subr.mxu0 0.0
  %2701 = vmatpush2.msra.mxu0 0.0
  %2702 = vmatprep.subr.mxu0 0.0
  %2703 = vmatpush2.msra.mxu0 0.0
  %2704 = vmatprep.subr.mxu0 0.0
  %2705 = vmatpush2.msra.mxu0 0.0
  %2706 = vmatprep.subr.mxu0 0.0
  %2707 = vmatpush2.msra.mxu0 0.0
  %2708 = vmatprep.subr.mxu0 0.0
  %2709 = vmatpush2.msra.mxu0 0.0
  %2710 = vmatprep.mubr.f32.mxu0 0.0
  %2711 = vmatmul.mubr.f32.gmra.mxu0 %v2644
  %v2712 = vpop.f32.mrf.mxu0
  %v2713 = vadd.f32 0.0, %v2712
  %v2714 = vpop.f32.mrf.mxu0
  %v2715 = vadd.f32 0.0, %v2714
  %2716 = vdwg.mxu0
  %v2717 = vld [vmem:[%s1283] sm:$0xff]
  %v2718 = vadd.f32 %v2713, %v2717
  %v2719 = vld [vmem:[%s1286] sm:$0xff]
  %v2720 = vadd.f32 %v2715, %v2719
  %v2721 = vxor.u32 %v2718, 2147483648
  %v2722 = vmul.f32 %v2721, 1.442695
  %v2723 = vpow.pop %v2722
  %v2724 = vadd.f32 %v2723, 1.0
  %v2725 = vrcp.pop %v2724
  %v2726 = vmul.f32 1.0, %v2725
  %v2727 = vtanh.pop %v2718
  %v2728 = vsel %vm51, %v2727, %v2726
  %v2729 = vmul.f32 %v2728, %v2600
  %2731 = vrot.lane.b32.xlu0 %v2728, 64
  %v2732 = vpop.permute.xlu0 %2731
  %v2734 = vmul.f32 %v2728, %v2732
  %2736 = vrot.lane.b32.xlu0 %v2734, 32
  %v2737 = vpop.permute.xlu0 %2736
  %v2739 = vadd.f32 %v2729, %v2737
  %v2740 = vtanh.pop %v2739
  %2742 = vrot.lane.b32.xlu0 %v2740, 64
  %v2743 = vpop.permute.xlu0 %2742
  %v2745 = vmul.f32 %v2728, %v2743
  %v2746 = vxor.u32 %v2720, 2147483648
  %v2747 = vmul.f32 %v2746, 1.442695
  %v2748 = vpow.pop %v2747
  %v2749 = vadd.f32 %v2748, 1.0
  %v2750 = vrcp.pop %v2749
  %v2751 = vmul.f32 1.0, %v2750
  %v2752 = vtanh.pop %v2720
  %v2753 = vsel %vm51, %v2752, %v2751
  %v2754 = vmul.f32 %v2753, %v2625
  %2756 = vrot.lane.b32.xlu0 %v2753, 64
  %v2757 = vpop.permute.xlu0 %2756
  %v2759 = vmul.f32 %v2753, %v2757
  %2761 = vrot.lane.b32.xlu0 %v2759, 32
  %v2762 = vpop.permute.xlu0 %2761
  %v2764 = vadd.f32 %v2754, %v2762
  %v2765 = vtanh.pop %v2764
  %2767 = vrot.lane.b32.xlu0 %v2765, 64
  %v2768 = vpop.permute.xlu0 %2767
  %v2770 = vmul.f32 %v2753, %v2768
  %2772 = vrot.lane.b32.xlu0 %v2745, 32
  %v2773 = vpop.permute.xlu0 %2772
  %2775 = vst.msk [vmem:[%s638] sm:$0xff] %vm92, %v2773
  %2777 = vrot.lane.b32.xlu0 %v2770, 64
  %v2778 = vpop.permute.xlu0 %2777
  %2780 = vst.msk [vmem:[%s632] sm:$0xff] %vm495, %v2778
  %v2781 = vsel %vm92, %v2773, %v2778
  %v2783 = vsel %vm351, %v2781, 0
  %2785 = vmatprep.subr.mxu0 0.0
  %2786 = vmatpush1.msra.mxu0 0.0
  %2787 = vmatprep.subr.mxu0 0.0
  %2788 = vmatpush1.msra.mxu0 0.0
  %2789 = vmatprep.subr.mxu0 0.0
  %2790 = vmatpush1.msra.mxu0 0.0
  %2791 = vmatprep.subr.mxu0 0.0
  %2792 = vmatpush1.msra.mxu0 0.0
  %2793 = vmatprep.subr.mxu0 0.0
  %2794 = vmatpush1.msra.mxu0 0.0
  %2795 = vmatprep.subr.mxu0 0.0
  %2796 = vmatpush1.msra.mxu0 0.0
  %2797 = vmatprep.subr.mxu0 0.0
  %2798 = vmatpush1.msra.mxu0 0.0
  %2799 = vmatprep.subr.mxu0 0.0
  %2800 = vmatpush1.msra.mxu0 0.0
  %2801 = vmatprep.subr.mxu0 %v1530
  %2802 = vmatpush1.msra.mxu0 %v1529
  %2803 = vmatprep.subr.mxu0 %v1528
  %2804 = vmatpush1.msra.mxu0 %v1527
  %2805 = vmatprep.subr.mxu0 %v1526
  %2806 = vmatpush1.msra.mxu0 %v1525
  %2807 = vmatprep.subr.mxu0 %v1524
  %2808 = vmatpush1.msra.mxu0 %v1523
  %2809 = vmatprep.subr.mxu0 %v1522
  %2810 = vmatpush1.msra.mxu0 %v1521
  %2811 = vmatprep.subr.mxu0 %v1520
  %2812 = vmatpush1.msra.mxu0 %v1519
  %2813 = vmatprep.subr.mxu0 %v1518
  %2814 = vmatpush1.msra.mxu0 %v1517
  %2815 = vmatprep.subr.mxu0 %v1516
  %2816 = vmatpush1.msra.mxu0 %v1515
  %2817 = vmatprep.subr.mxu0 0.0
  %2818 = vmatpush2.msra.mxu0 0.0
  %2819 = vmatprep.subr.mxu0 0.0
  %2820 = vmatpush2.msra.mxu0 0.0
  %2821 = vmatprep.subr.mxu0 0.0
  %2822 = vmatpush2.msra.mxu0 0.0
  %2823 = vmatprep.subr.mxu0 0.0
  %2824 = vmatpush2.msra.mxu0 0.0
  %2825 = vmatprep.subr.mxu0 0.0
  %2826 = vmatpush2.msra.mxu0 0.0
  %2827 = vmatprep.subr.mxu0 0.0
  %2828 = vmatpush2.msra.mxu0 0.0
  %2829 = vmatprep.subr.mxu0 0.0
  %2830 = vmatpush2.msra.mxu0 0.0
  %2831 = vmatprep.subr.mxu0 0.0
  %2832 = vmatpush2.msra.mxu0 0.0
  %2833 = vmatprep.subr.mxu0 0.0
  %2834 = vmatpush2.msra.mxu0 0.0
  %2835 = vmatprep.subr.mxu0 0.0
  %2836 = vmatpush2.msra.mxu0 0.0
  %2837 = vmatprep.subr.mxu0 0.0
  %2838 = vmatpush2.msra.mxu0 0.0
  %2839 = vmatprep.subr.mxu0 0.0
  %2840 = vmatpush2.msra.mxu0 0.0
  %2841 = vmatprep.subr.mxu0 0.0
  %2842 = vmatpush2.msra.mxu0 0.0
  %2843 = vmatprep.subr.mxu0 0.0
  %2844 = vmatpush2.msra.mxu0 0.0
  %2845 = vmatprep.subr.mxu0 0.0
  %2846 = vmatpush2.msra.mxu0 0.0
  %2847 = vmatprep.subr.mxu0 0.0
  %2848 = vmatpush2.msra.mxu0 0.0
  %2849 = vmatprep.mubr.f32.mxu0 0.0
  %2850 = vmatmul.mubr.f32.gmra.mxu0 %v2783
  %v2851 = vpop.f32.mrf.mxu0
  %v2852 = vadd.f32 0.0, %v2851
  %v2853 = vpop.f32.mrf.mxu0
  %v2854 = vadd.f32 0.0, %v2853
  %2855 = vdwg.mxu0
  %v2856 = vld [vmem:[%s1424] sm:$0xff]
  %v2857 = vadd.f32 %v2852, %v2856
  %v2858 = vld [vmem:[#allocation3] sm:$0xff]
  %v2859 = vadd.f32 %v2854, %v2858
  %v2860 = vxor.u32 %v2857, 2147483648
  %v2861 = vmul.f32 %v2860, 1.442695
  %v2862 = vpow.pop %v2861
  %v2863 = vadd.f32 %v2862, 1.0
  %v2864 = vrcp.pop %v2863
  %v2865 = vmul.f32 1.0, %v2864
  %v2866 = vtanh.pop %v2857
  %v2867 = vsel %vm51, %v2866, %v2865
  %v2868 = vmul.f32 %v2867, %v2739
  %2870 = vrot.lane.b32.xlu0 %v2867, 64
  %v2871 = vpop.permute.xlu0 %2870
  %v2873 = vmul.f32 %v2867, %v2871
  %2875 = vrot.lane.b32.xlu0 %v2873, 32
  %v2876 = vpop.permute.xlu0 %2875
  %v2878 = vadd.f32 %v2868, %v2876
  %v2879 = vtanh.pop %v2878
  %2881 = vrot.lane.b32.xlu0 %v2879, 64
  %v2882 = vpop.permute.xlu0 %2881
  %v2884 = vmul.f32 %v2867, %v2882
  %v2885 = vxor.u32 %v2859, 2147483648
  %v2886 = vmul.f32 %v2885, 1.442695
  %v2887 = vpow.pop %v2886
  %v2888 = vadd.f32 %v2887, 1.0
  %v2889 = vrcp.pop %v2888
  %v2890 = vmul.f32 1.0, %v2889
  %v2891 = vtanh.pop %v2859
  %v2892 = vsel %vm51, %v2891, %v2890
  %v2893 = vmul.f32 %v2892, %v2764
  %2895 = vrot.lane.b32.xlu0 %v2892, 64
  %v2896 = vpop.permute.xlu0 %2895
  %v2898 = vmul.f32 %v2892, %v2896
  %2900 = vrot.lane.b32.xlu0 %v2898, 32
  %v2901 = vpop.permute.xlu0 %2900
  %v2903 = vadd.f32 %v2893, %v2901
  %v2904 = vtanh.pop %v2903
  %2906 = vrot.lane.b32.xlu0 %v2904, 64
  %v2907 = vpop.permute.xlu0 %2906
  %v2909 = vmul.f32 %v2892, %v2907
  %2911 = vrot.lane.b32.xlu0 %v2884, 32
  %v2912 = vpop.permute.xlu0 %2911
  %2914 = vst.msk [vmem:[%s494] sm:$0xff] %vm92, %v2912
  %2916 = vrot.lane.b32.xlu0 %v2909, 64
  %v2917 = vpop.permute.xlu0 %2916
  %2919 = vst.msk [vmem:[%s13] sm:$0xff] %vm495, %v2917
  %v2920 = vsel %vm92, %v2912, %v2917
  %s2921 = scalar_lea.vmem %s14, 8
  %2922 = vst.msk [vmem:[%s2921] sm:$0xff] %vm351, %v2920
  %2924 = vrot.lane.b32.xlu0 %v2878, 96
  %v2925 = vpop.permute.xlu0 %2924
  %v2927 = vsel %vm92, %v2925, %v2903
  %s2928 = scalar_lea.vmem %s15, 8
  %2929 = vst.msk [vmem:[%s2928] sm:$0xff] %vm351, %v2927
  // Predicated region
  $region54: #{decoder_forward.1} parent=0 // pred_check
    _
  $region55: #{decoder_forward.1} parent=0 // pred_check_branch
    %2931 = sbr.rel (0) target = $region57
  $region56: #{decoder_forward.1} parent=0 // pred_region
    _
  $region57: #{decoder_forward.1} parent=0 // pred_fallthru
    _
  // Predicated region
  $region58: #{decoder_forward.1} parent=0 // pred_check
    _
  $region59: #{decoder_forward.1} parent=0 // pred_check_branch
    %2933 = sbr.rel (0) target = $region61
  $region60: #{decoder_forward.1} parent=0 // pred_region
    _
  $region61: #{decoder_forward.1} parent=0 // pred_fallthru
    _
  // Predicated region
  $region62: #{decoder_forward.1} parent=0 // pred_check
    _
  $region63: #{decoder_forward.1} parent=0 // pred_check_branch
    %2935 = sbr.rel (0) target = $region65
  $region64: #{decoder_forward.1} parent=0 // pred_region
    _
  $region65: #{decoder_forward.1} parent=0 // pred_fallthru
    _
  // Predicated region
  $region66: #{decoder_forward.1} parent=0 // pred_check
    _
  $region67: #{decoder_forward.1} parent=0 // pred_check_branch
    %2937 = sbr.rel (0) target = $region69
  $region68: #{decoder_forward.1} parent=0 // pred_region
    _
  $region69: #{decoder_forward.1} parent=0 // pred_fallthru
    _
  // Predicated region
  $region70: #{decoder_forward.1} parent=0 // pred_check
    _
  $region71: #{decoder_forward.1} parent=0 // pred_check_branch
    %2939 = sbr.rel (0) target = $region73
  $region72: #{decoder_forward.1} parent=0 // pred_region
    _
  $region73: #{decoder_forward.1} parent=0 // pred_fallthru
    _
  // Predicated region
  $region74: #{decoder_forward.1} parent=0 // pred_check
    _
  $region75: #{decoder_forward.1} parent=0 // pred_check_branch
    %2941 = sbr.rel (0) target = $region77
  $region76: #{decoder_forward.1} parent=0 // pred_region
    _
  $region77: #{decoder_forward.1} parent=0 // pred_fallthru
    _

</llo_original>
